<compile_context>
chip_gen: v5e
topology: v5e:2x2
jax: 0.10.0
libtpu: 0.0.40
codegen_flags: <defaults>
</compile_context>

<pallas_src>
import functools

import jax
import jax.numpy as jnp
from jax import lax
from jax.experimental import pallas as pl
from jax.experimental.pallas import tpu as pltpu


# --------------------------------------------------------------------------
# small in-kernel reduction helpers (only contiguous slices + elementwise ops)
# --------------------------------------------------------------------------
def _reduce_axis1(x, op):
    """(A, M, N) -> (A, N): reduce axis 1 with `op` via a static slice loop."""
    acc = x[:, 0:1, :]
    for i in range(1, x.shape[1]):
        acc = op(acc, x[:, i:i + 1, :])
    return acc.reshape(x.shape[0], x.shape[2])


def _reduce_lane_groups(x, ngroups, op):
    """(A, ngroups*G) -> (A, G): reduce over lane groups with `op`."""
    g = x.shape[1] // ngroups
    acc = x[:, 0:g]
    for k in range(1, ngroups):
        acc = op(acc, x[:, k * g:(k + 1) * g])
    return acc


def _pick_block(bt):
    """Largest frame block (multiple of 8) that divides BT, capped at 64."""
    for cand in (64, 32, 16, 8):
        if bt % cand == 0:
            return cand
    return bt  # fall back to the full (legal: block == full dim)


# --------------------------------------------------------------------------
# Kernel 1: Conv3d(1,3,3)/(1,2,2)/(0,1,1) + adaptive mean/max spatial pooling.
# Input is the pixel-block layout xq[bt, hq, wq*4C + ph*2C + pw*C + c]
#   = x_padded[bt, c, 2*hq + ph, 2*wq + pw].
# The 3x3/stride-2 conv becomes   conv = g0 @ BW0 + g1 @ BW1   with
#   g_i = xq[:, i : i+Ho, :]   and BW_i block-banded weight matrices.
# --------------------------------------------------------------------------
def conv_pool_kernel(xq_ref, bw_ref, bias_ref, out_ref):
    # xq_ref : (BTb, Hq, L)   L = Wq*4C
    # bw_ref : (2, L, N)      N = Wo*2C
    # bias_ref: (1, 2C)
    # out_ref: (BTb, 4C)      [spatial mean | spatial max]
    xv = xq_ref[...]
    BTb, Hq, L = xv.shape
    Ho = Hq - 1
    N = bw_ref.shape[2]
    O = bias_ref.shape[1]
    Wo = N // O

    g0 = xv[:, 0:Ho, :].reshape(BTb * Ho, L)
    g1 = xv[:, 1:Hq, :].reshape(BTb * Ho, L)
    conv = (jnp.dot(g0, bw_ref[0], preferred_element_type=jnp.float32)
            + jnp.dot(g1, bw_ref[1], preferred_element_type=jnp.float32))

    cv = conv.reshape(BTb, Ho, N)                       # rows=oh, lanes=(ow, o)
    s = _reduce_axis1(cv, jnp.add)                      # (BTb, N)
    m = _reduce_axis1(cv, jnp.maximum)                  # (BTb, N)
    s = _reduce_lane_groups(s, Wo, jnp.add)             # (BTb, 2C)
    m = _reduce_lane_groups(m, Wo, jnp.maximum)         # (BTb, 2C)

    bias = bias_ref[...]
    mean = s * (1.0 / float(Ho * Wo)) + bias
    mx = m + bias
    out_ref[...] = jnp.concatenate([mean, mx], axis=-1)  # (BTb, 4C)


def conv_pool_call(xq, bw, bias, btb):
    BT, Hq, L = xq.shape
    N = bw.shape[-1]
    O = bias.shape[-1]
    return pl.pallas_call(
        conv_pool_kernel,
        out_shape=jax.ShapeDtypeStruct((BT, 2 * O), jnp.float32),
        grid=(BT // btb,),
        in_specs=[pl.BlockSpec((btb, Hq, L), lambda i: (i, 0, 0)),
                  pl.BlockSpec((2, L, N), lambda i: (0, 0, 0)),
                  pl.BlockSpec((1, O), lambda i: (0, 0))],
        out_specs=pl.BlockSpec((btb, 2 * O), lambda i: (i, 0)),
        compiler_params=pltpu.CompilerParams(
            dimension_semantics=("parallel",)),
    )(xq, bw, bias)


# --------------------------------------------------------------------------
# Kernel 2: bidirectional GRU (PyTorch gate order r, z, n) + fc + sigmoid.
#   * input projections for both directions and all gates are computed as
#     batched matmuls BEFORE the recurrence (only recurrent matmuls remain
#     on the serial path),
#   * recurrent weights are pre-split per gate -> no per-step lane slicing,
#   * fwd/bwd cells interleaved in an unrolled fori_loop,
#   * epilogue: att = sigmoid(h_f @ Wf + h_b @ Wb + b) for all T*B rows.
# --------------------------------------------------------------------------
def bigru_fc_kernel(T, B, x_ref, wi_ref, wh_ref, b_ref, wf_ref, wb_ref,
                    fcb_ref, att_ref, gi_sc, hf_sc, hb_sc):
    # x_ref : (T*B, D) time-major rows       wi_ref: (2, 3, D, H)
    # wh_ref: (2, 3, H, H)                   b_ref : (2, 4, 1, H)
    #   b_ref[d] = [b_ir+b_hr, b_iz+b_hz, b_in, b_hn]
    # wf_ref/wb_ref: (H, C)                  fcb_ref: (1, C)
    # att_ref: (T*B, C) output               gi_sc: (2, 3, T*B, H) scratch
    Hd = wh_ref.shape[-1]
    x = x_ref[...]

    # ---- input projections hoisted out of the recurrence
    for d in range(2):
        for g in range(3):
            gi_sc[d, g] = (jnp.dot(x, wi_ref[d, g],
                                   preferred_element_type=jnp.float32)
                           + b_ref[d, g])

    wh = [[wh_ref[d, g] for g in range(3)] for d in range(2)]
    bhn = [b_ref[d, 3] for d in range(2)]

    def cell(d, t, h):
        sl = pl.ds(t * B, B)
        r = jax.nn.sigmoid(
            gi_sc[d, 0, sl, :]
            + jnp.dot(h, wh[d][0], preferred_element_type=jnp.float32))
        z = jax.nn.sigmoid(
            gi_sc[d, 1, sl, :]
            + jnp.dot(h, wh[d][1], preferred_element_type=jnp.float32))
        n = jnp.tanh(
            gi_sc[d, 2, sl, :]
            + r * (jnp.dot(h, wh[d][2], preferred_element_type=jnp.float32)
                   + bhn[d]))
        return (1.0 - z) * n + z * h

    def body(t, carry):
        hf, hb = carry
        hf = cell(0, t, hf)
        hf_sc[pl.ds(t * B, B), :] = hf
        tb = T - 1 - t
        hb = cell(1, tb, hb)
        hb_sc[pl.ds(tb * B, B), :] = hb
        return hf, hb

    h0 = jnp.zeros((B, Hd), jnp.float32)
    # T is small/static here; full unroll gives the scheduler visibility.
    # TODO(synk): for large T, switch to a bounded unroll factor + T-chunked
    # pipelining (and a 2-core direction split on v7x).
    lax.fori_loop(0, T, body, (h0, h0), unroll=True)

    # ---- fc + sigmoid epilogue over all T*B rows (hoisted out of the gate grid)
    att_ref[...] = jax.nn.sigmoid(
        jnp.dot(hf_sc[...], wf_ref[...], preferred_element_type=jnp.float32)
        + jnp.dot(hb_sc[...], wb_ref[...], preferred_element_type=jnp.float32)
        + fcb_ref[...])


def bigru_fc_call(x2d, wi_all, wh_all, b_all, wf, wb, fcb, T, B):
    TB, _ = x2d.shape
    Hd = wh_all.shape[-1]
    C = wf.shape[-1]
    vmem = pl.BlockSpec(memory_space=pltpu.MemorySpace.VMEM)
    return pl.pallas_call(
        functools.partial(bigru_fc_kernel, T, B),
        out_shape=jax.ShapeDtypeStruct((TB, C), jnp.float32),
        in_specs=[vmem] * 7,
        out_specs=vmem,
        scratch_shapes=[pltpu.VMEM((2, 3, TB, Hd), jnp.float32),
                        pltpu.VMEM((TB, Hd), jnp.float32),
                        pltpu.VMEM((TB, Hd), jnp.float32)],
    )(x2d, wi_all, wh_all, b_all, wf, wb, fcb)


# --------------------------------------------------------------------------
# Kernel 3: purely elementwise gating in (B, C, T, H*W) layout (lane-dense,
# no transposes of the big tensor); attention broadcasts along lanes.
# --------------------------------------------------------------------------
def gate_kernel(att_ref, x_ref, y_ref):
    # att_ref: (1, C, T, 1)   x_ref/y_ref: (1, C, T, HW)
    y_ref[...] = x_ref[...] * att_ref[...]


def gate_call(att_bct1, x4):
    B, C, T, HW = x4.shape
    return pl.pallas_call(
        gate_kernel,
        out_shape=jax.ShapeDtypeStruct((B, C, T, HW), jnp.float32),
        grid=(B,),
        in_specs=[pl.BlockSpec((1, C, T, 1), lambda b: (b, 0, 0, 0)),
                  pl.BlockSpec((1, C, T, HW), lambda b: (b, 0, 0, 0))],
        out_specs=pl.BlockSpec((1, C, T, HW), lambda b: (b, 0, 0, 0)),
        compiler_params=pltpu.CompilerParams(
            dimension_semantics=("parallel",)),
    )(att_bct1, x4)


# --------------------------------------------------------------------------
# Full forward (data_len=None path; dropout is identity in eval mode).
# --------------------------------------------------------------------------
def rnn_attention_pallas(x, params):
    B, C, T, H, W = x.shape
    Hd = 4 * C                       # GRU hidden size
    D = 4 * C                        # GRU input size
    O = 2 * C                        # conv output channels
    Ho = (H - 1) // 2 + 1
    Wo = (W - 1) // 2 + 1
    Hq, Wq = Ho + 1, Wo + 1
    BT = B * T

    # ---- pixel-block ("space-to-depth") layout for the conv kernel ----
    # xq[bt, hq, wq*4C + ph*2C + pw*C + c] = x_padded[bt, c, 2*hq+ph, 2*wq+pw]
    xpad = jnp.pad(x, ((0, 0), (0, 0), (0, 0),
                       (1, 2 * Hq - H - 1), (1, 2 * Wq - W - 1)))
    xq = xpad.reshape(B, C, T, Hq, 2, Wq, 2)
    xq = jnp.transpose(xq, (0, 2, 3, 5, 4, 6, 1))       # (B,T,Hq,Wq,ph,pw,C)
    xq = xq.reshape(BT, Hq, Wq * 4 * C)

    # block-banded conv weights: BW_i[wq*4C + ph*2C + pw*C + c, ow*2C + o]
    #   = W[o, c, 2*i+ph, 2*(wq-ow)+pw]  (0 <= wq-ow <= 1, out-of-range taps = 0)
    Wc = params['conv_w'][:, :, 0]                       # (O, C, 3, 3)
    Wp4 = jnp.pad(Wc, ((0, 0), (0, 0), (0, 1), (0, 1)))  # (O, C, 4, 4)
    S = Wp4.reshape(O, C, 2, 2, 2, 2).transpose(2, 4, 3, 5, 1, 0)
    S = S.reshape(2, 2, 4 * C, O)                        # (i, dj, 4C, O)
    dj = jnp.arange(Wq)[:, None] - jnp.arange(Wo)[None, :]
    m0 = (dj == 0).astype(jnp.float32)
    m1 = (dj == 1).astype(jnp.float32)
    bw = (m0[None, :, None, :, None] * S[:, 0][:, None, :, None, :]
          + m1[None, :, None, :, None] * S[:, 1][:, None, :, None, :])
    bw = bw.reshape(2, Wq * 4 * C, Wo * O)
    bias2c = params['conv_b'].reshape(1, O)

    btb = _pick_block(BT)
    pooled = conv_pool_call(xq, bw, bias2c, btb)         # (BT, 4C) [mean|max]
    # NOTE: nn.Dropout is identity in eval mode (inference semantics).

    # ---- bi-GRU + fc + sigmoid (time-major rows, per-gate split weights) ----
    att_in = pooled.reshape(B, T, D)
    x2d = jnp.transpose(att_in, (1, 0, 2)).reshape(T * B, D)

    def split_gates(w):          # (3H, K) -> (3, K, H)
        return jnp.stack([w[g * Hd:(g + 1) * Hd].T for g in range(3)], axis=0)

    def bias_pack(bi, bh):       # (3H,), (3H,) -> (4, 1, H)
        return jnp.stack([bi[0:Hd] + bh[0:Hd],
                          bi[Hd:2 * Hd] + bh[Hd:2 * Hd],
                          bi[2 * Hd:3 * Hd],
                          bh[2 * Hd:3 * Hd]], axis=0).reshape(4, 1, Hd)

    wi_all = jnp.stack([split_gates(params['gru_wi_f']),
                        split_gates(params['gru_wi_b'])])        # (2,3,D,H)
    wh_all = jnp.stack([split_gates(params['gru_wh_f']),
                        split_gates(params['gru_wh_b'])])        # (2,3,H,H)
    b_all = jnp.stack([bias_pack(params['gru_bi_f'], params['gru_bh_f']),
                       bias_pack(params['gru_bi_b'], params['gru_bh_b'])])
    wf = params['fc_w'][:, :Hd].T                                 # (H, C)
    wb = params['fc_w'][:, Hd:].T                                 # (H, C)
    fcb = params['fc_b'].reshape(1, C)

    att2d = bigru_fc_call(x2d, wi_all, wh_all, b_all, wf, wb, fcb, T, B)

    # ---- lane-dense gating: x viewed as (B, C, T, H*W), no big transposes ----
    att_bct1 = jnp.transpose(att2d.reshape(T, B, C), (1, 2, 0)).reshape(B, C, T, 1)
    x4 = x.reshape(B, C, T, H * W)
    y4 = gate_call(att_bct1, x4)
    return y4.reshape(B, C, T, H, W)

    # TODO(synk): data_len path (pack_padded_sequence + -inf masking) not
    # implemented; only the data_len=None branch is reproduced.


# --------------------------------------------------------------------------
# Pure-JAX reference (for numerical verification).
# --------------------------------------------------------------------------
def reference_forward(x, params):
    B, C, T, H, W = x.shape
    Hd = 4 * C
    xf = jnp.transpose(x, (0, 2, 1, 3, 4)).reshape(B * T, C, H, W)
    conv = lax.conv_general_dilated(
        xf, params['conv_w'][:, :, 0], window_strides=(2, 2),
        padding=((1, 1), (1, 1)), dimension_numbers=('NCHW', 'OIHW', 'NCHW'))
    conv = conv + params['conv_b'][None, :, None, None]
    x_mean = conv.mean(axis=(2, 3)).reshape(B, T, 2 * C)
    x_max = conv.max(axis=(2, 3)).reshape(B, T, 2 * C)
    att = jnp.concatenate([x_mean, x_max], axis=-1)

    def run_dir(seq, wi, wh, bi, bh):
        def step(h, x_t):
            gi = x_t @ wi.T + bi
            gh = h @ wh.T + bh
            r = jax.nn.sigmoid(gi[:, :Hd] + gh[:, :Hd])
            z = jax.nn.sigmoid(gi[:, Hd:2 * Hd] + gh[:, Hd:2 * Hd])
            n = jnp.tanh(gi[:, 2 * Hd:] + r * gh[:, 2 * Hd:])
            h_new = (1.0 - z) * n + z * h
            return h_new, h_new
        h0 = jnp.zeros((seq.shape[1], Hd), jnp.float32)
        _, outs = lax.scan(step, h0, seq)
        return outs

    seq = att.transpose(1, 0, 2)
    outf = run_dir(seq, params['gru_wi_f'], params['gru_wh_f'],
                   params['gru_bi_f'], params['gru_bh_f'])
    outb = run_dir(seq[::-1], params['gru_wi_b'], params['gru_wh_b'],
                   params['gru_bi_b'], params['gru_bh_b'])[::-1]
    gru_out = jnp.concatenate([outf, outb], axis=-1).transpose(1, 0, 2)
    logits = gru_out @ params['fc_w'].T + params['fc_b']
    att_w = jax.nn.sigmoid(logits).transpose(0, 2, 1)
    return x * att_w[:, :, :, None, None]


def init_params(key, C):
    Hd = 4 * C
    ks = jax.random.split(key, 12)

    def rn(k, shape, scale=0.1):
        return scale * jax.random.normal(k, shape, dtype=jnp.float32)

    return {
        'conv_w': rn(ks[0], (2 * C, C, 1, 3, 3)),
        'conv_b': rn(ks[1], (2 * C,)),
        'gru_wi_f': rn(ks[2], (3 * Hd, 4 * C)),
        'gru_wh_f': rn(ks[3], (3 * Hd, Hd)),
        'gru_bi_f': rn(ks[4], (3 * Hd,)),
        'gru_bh_f': rn(ks[5], (3 * Hd,)),
        'gru_wi_b': rn(ks[6], (3 * Hd, 4 * C)),
        'gru_wh_b': rn(ks[7], (3 * Hd, Hd)),
        'gru_bi_b': rn(ks[8], (3 * Hd,)),
        'gru_bh_b': rn(ks[9], (3 * Hd,)),
        'fc_w': rn(ks[10], (C, 2 * Hd)),
        'fc_b': rn(ks[11], (C,)),
    }


if __name__ == "__main__":
    key = jax.random.PRNGKey(0)
    kx, kp = jax.random.split(key)
    B, C, T, H, W = 2, 4, 8, 16, 16
    x = jax.random.normal(kx, (B, C, T, H, W), dtype=jnp.float32)
    params = init_params(kp, C)

    y = jax.jit(rnn_attention_pallas)(x, params)
    y = jax.block_until_ready(y)

    y_ref = reference_forward(x, params)
    assert y.shape == (B, C, T, H, W)
    err = float(jnp.max(jnp.abs(y - y_ref)))
    assert jnp.allclose(y, y_ref, atol=2e-4, rtol=2e-4), err
    print("KERNEL_OK")
</pallas_src>

<mosaic_0001>
module attributes {stable_mosaic.version = 11 : i64} {
  func.func @conv_pool_kernel(%arg0: i32, %arg1: memref<16x9x144xf32, #tpu.memory_space<vmem>>, %arg2: memref<2x144x64xf32, #tpu.memory_space<vmem>>, %arg3: memref<1x8xf32, #tpu.memory_space<vmem>>, %arg4: memref<16x16xf32, #tpu.memory_space<vmem>>) attributes {dimension_semantics = [#tpu.dimension_semantics<parallel>], iteration_bounds = array<i64: 1>, scalar_prefetch = 0 : i64, scratch_operands = 0 : i64, tpu.core_type = #tpu.core_type<tc>, window_params = [{transform_indices = @transform_0, window_bounds = array<i64: 16, 9, 144>}, {pipeline_mode = #tpu.pipeline_mode<synchronous>, transform_indices = @transform_1, window_bounds = array<i64: 2, 144, 64>}, {pipeline_mode = #tpu.pipeline_mode<synchronous>, transform_indices = @transform_2, window_bounds = array<i64: 1, 8>}, {transform_indices = @transform_3, window_bounds = array<i64: 16, 16>}]} {
    %c0 = arith.constant 0 : index
    %c0_0 = arith.constant 0 : index
    %c0_1 = arith.constant 0 : index
    %0 = vector.load %arg1[%c0, %c0_0, %c0_1] : memref<16x9x144xf32, #tpu.memory_space<vmem>>, vector<16x9x144xf32>
    %1 = vector.extract_strided_slice %0 {offsets = [0, 0, 0], sizes = [16, 8, 144], strides = [1, 1, 1]} : vector<16x9x144xf32> to vector<16x8x144xf32>
    %2 = vector.shape_cast %1 : vector<16x8x144xf32> to vector<128x144xf32>
    %3 = vector.extract_strided_slice %0 {offsets = [0, 1, 0], sizes = [16, 8, 144], strides = [1, 1, 1]} : vector<16x9x144xf32> to vector<16x8x144xf32>
    %4 = vector.shape_cast %3 : vector<16x8x144xf32> to vector<128x144xf32>
    %c0_2 = arith.constant 0 : index
    %c0_3 = arith.constant 0 : index
    %c0_4 = arith.constant 0 : index
    %5 = vector.load %arg2[%c0_2, %c0_3, %c0_4] : memref<2x144x64xf32, #tpu.memory_space<vmem>>, vector<1x144x64xf32>
    %6 = vector.shape_cast %5 : vector<1x144x64xf32> to vector<144x64xf32>
    %cst = arith.constant dense<0.000000e+00> : vector<128x64xf32>
    %7 = tpu.matmul %2, %6, %cst {dimension_numbers = #tpu.dot_dimension_numbers<[1], [0], [0], [1], [0, 0, 1, 1], [], []>} : vector<128x144xf32>, vector<144x64xf32>, vector<128x64xf32> -> vector<128x64xf32>
    %c1 = arith.constant 1 : index
    %c0_5 = arith.constant 0 : index
    %c0_6 = arith.constant 0 : index
    %8 = vector.load %arg2[%c1, %c0_5, %c0_6] : memref<2x144x64xf32, #tpu.memory_space<vmem>>, vector<1x144x64xf32>
    %9 = vector.shape_cast %8 : vector<1x144x64xf32> to vector<144x64xf32>
    %cst_7 = arith.constant dense<0.000000e+00> : vector<128x64xf32>
    %10 = tpu.matmul %4, %9, %cst_7 {dimension_numbers = #tpu.dot_dimension_numbers<[1], [0], [0], [1], [0, 0, 1, 1], [], []>} : vector<128x144xf32>, vector<144x64xf32>, vector<128x64xf32> -> vector<128x64xf32>
    %11 = arith.addf %7, %10 : vector<128x64xf32>
    %12 = vector.shape_cast %11 : vector<128x64xf32> to vector<16x8x64xf32>
    %13 = vector.extract_strided_slice %12 {offsets = [0, 0, 0], sizes = [16, 1, 64], strides = [1, 1, 1]} : vector<16x8x64xf32> to vector<16x1x64xf32>
    %14 = vector.extract_strided_slice %12 {offsets = [0, 1, 0], sizes = [16, 1, 64], strides = [1, 1, 1]} : vector<16x8x64xf32> to vector<16x1x64xf32>
    %15 = arith.addf %13, %14 : vector<16x1x64xf32>
    %16 = vector.extract_strided_slice %12 {offsets = [0, 2, 0], sizes = [16, 1, 64], strides = [1, 1, 1]} : vector<16x8x64xf32> to vector<16x1x64xf32>
    %17 = arith.addf %15, %16 : vector<16x1x64xf32>
    %18 = vector.extract_strided_slice %12 {offsets = [0, 3, 0], sizes = [16, 1, 64], strides = [1, 1, 1]} : vector<16x8x64xf32> to vector<16x1x64xf32>
    %19 = arith.addf %17, %18 : vector<16x1x64xf32>
    %20 = vector.extract_strided_slice %12 {offsets = [0, 4, 0], sizes = [16, 1, 64], strides = [1, 1, 1]} : vector<16x8x64xf32> to vector<16x1x64xf32>
    %21 = arith.addf %19, %20 : vector<16x1x64xf32>
    %22 = vector.extract_strided_slice %12 {offsets = [0, 5, 0], sizes = [16, 1, 64], strides = [1, 1, 1]} : vector<16x8x64xf32> to vector<16x1x64xf32>
    %23 = arith.addf %21, %22 : vector<16x1x64xf32>
    %24 = vector.extract_strided_slice %12 {offsets = [0, 6, 0], sizes = [16, 1, 64], strides = [1, 1, 1]} : vector<16x8x64xf32> to vector<16x1x64xf32>
    %25 = arith.addf %23, %24 : vector<16x1x64xf32>
    %26 = vector.extract_strided_slice %12 {offsets = [0, 7, 0], sizes = [16, 1, 64], strides = [1, 1, 1]} : vector<16x8x64xf32> to vector<16x1x64xf32>
    %27 = arith.addf %25, %26 : vector<16x1x64xf32>
    %28 = vector.shape_cast %27 : vector<16x1x64xf32> to vector<16x64xf32>
    %29 = vector.extract_strided_slice %12 {offsets = [0, 0, 0], sizes = [16, 1, 64], strides = [1, 1, 1]} : vector<16x8x64xf32> to vector<16x1x64xf32>
    %30 = vector.extract_strided_slice %12 {offsets = [0, 1, 0], sizes = [16, 1, 64], strides = [1, 1, 1]} : vector<16x8x64xf32> to vector<16x1x64xf32>
    %31 = arith.maximumf %29, %30 : vector<16x1x64xf32>
    %32 = vector.extract_strided_slice %12 {offsets = [0, 2, 0], sizes = [16, 1, 64], strides = [1, 1, 1]} : vector<16x8x64xf32> to vector<16x1x64xf32>
    %33 = arith.maximumf %31, %32 : vector<16x1x64xf32>
    %34 = vector.extract_strided_slice %12 {offsets = [0, 3, 0], sizes = [16, 1, 64], strides = [1, 1, 1]} : vector<16x8x64xf32> to vector<16x1x64xf32>
    %35 = arith.maximumf %33, %34 : vector<16x1x64xf32>
    %36 = vector.extract_strided_slice %12 {offsets = [0, 4, 0], sizes = [16, 1, 64], strides = [1, 1, 1]} : vector<16x8x64xf32> to vector<16x1x64xf32>
    %37 = arith.maximumf %35, %36 : vector<16x1x64xf32>
    %38 = vector.extract_strided_slice %12 {offsets = [0, 5, 0], sizes = [16, 1, 64], strides = [1, 1, 1]} : vector<16x8x64xf32> to vector<16x1x64xf32>
    %39 = arith.maximumf %37, %38 : vector<16x1x64xf32>
    %40 = vector.extract_strided_slice %12 {offsets = [0, 6, 0], sizes = [16, 1, 64], strides = [1, 1, 1]} : vector<16x8x64xf32> to vector<16x1x64xf32>
    %41 = arith.maximumf %39, %40 : vector<16x1x64xf32>
    %42 = vector.extract_strided_slice %12 {offsets = [0, 7, 0], sizes = [16, 1, 64], strides = [1, 1, 1]} : vector<16x8x64xf32> to vector<16x1x64xf32>
    %43 = arith.maximumf %41, %42 : vector<16x1x64xf32>
    %44 = vector.shape_cast %43 : vector<16x1x64xf32> to vector<16x64xf32>
    %45 = vector.extract_strided_slice %28 {offsets = [0, 0], sizes = [16, 8], strides = [1, 1]} : vector<16x64xf32> to vector<16x8xf32>
    %46 = vector.extract_strided_slice %28 {offsets = [0, 8], sizes = [16, 8], strides = [1, 1]} : vector<16x64xf32> to vector<16x8xf32>
    %47 = arith.addf %45, %46 : vector<16x8xf32>
    %48 = vector.extract_strided_slice %28 {offsets = [0, 16], sizes = [16, 8], strides = [1, 1]} : vector<16x64xf32> to vector<16x8xf32>
    %49 = arith.addf %47, %48 : vector<16x8xf32>
    %50 = vector.extract_strided_slice %28 {offsets = [0, 24], sizes = [16, 8], strides = [1, 1]} : vector<16x64xf32> to vector<16x8xf32>
    %51 = arith.addf %49, %50 : vector<16x8xf32>
    %52 = vector.extract_strided_slice %28 {offsets = [0, 32], sizes = [16, 8], strides = [1, 1]} : vector<16x64xf32> to vector<16x8xf32>
    %53 = arith.addf %51, %52 : vector<16x8xf32>
    %54 = vector.extract_strided_slice %28 {offsets = [0, 40], sizes = [16, 8], strides = [1, 1]} : vector<16x64xf32> to vector<16x8xf32>
    %55 = arith.addf %53, %54 : vector<16x8xf32>
    %56 = vector.extract_strided_slice %28 {offsets = [0, 48], sizes = [16, 8], strides = [1, 1]} : vector<16x64xf32> to vector<16x8xf32>
    %57 = arith.addf %55, %56 : vector<16x8xf32>
    %58 = vector.extract_strided_slice %28 {offsets = [0, 56], sizes = [16, 8], strides = [1, 1]} : vector<16x64xf32> to vector<16x8xf32>
    %59 = arith.addf %57, %58 : vector<16x8xf32>
    %60 = vector.extract_strided_slice %44 {offsets = [0, 0], sizes = [16, 8], strides = [1, 1]} : vector<16x64xf32> to vector<16x8xf32>
    %61 = vector.extract_strided_slice %44 {offsets = [0, 8], sizes = [16, 8], strides = [1, 1]} : vector<16x64xf32> to vector<16x8xf32>
    %62 = arith.maximumf %60, %61 : vector<16x8xf32>
    %63 = vector.extract_strided_slice %44 {offsets = [0, 16], sizes = [16, 8], strides = [1, 1]} : vector<16x64xf32> to vector<16x8xf32>
    %64 = arith.maximumf %62, %63 : vector<16x8xf32>
    %65 = vector.extract_strided_slice %44 {offsets = [0, 24], sizes = [16, 8], strides = [1, 1]} : vector<16x64xf32> to vector<16x8xf32>
    %66 = arith.maximumf %64, %65 : vector<16x8xf32>
    %67 = vector.extract_strided_slice %44 {offsets = [0, 32], sizes = [16, 8], strides = [1, 1]} : vector<16x64xf32> to vector<16x8xf32>
    %68 = arith.maximumf %66, %67 : vector<16x8xf32>
    %69 = vector.extract_strided_slice %44 {offsets = [0, 40], sizes = [16, 8], strides = [1, 1]} : vector<16x64xf32> to vector<16x8xf32>
    %70 = arith.maximumf %68, %69 : vector<16x8xf32>
    %71 = vector.extract_strided_slice %44 {offsets = [0, 48], sizes = [16, 8], strides = [1, 1]} : vector<16x64xf32> to vector<16x8xf32>
    %72 = arith.maximumf %70, %71 : vector<16x8xf32>
    %73 = vector.extract_strided_slice %44 {offsets = [0, 56], sizes = [16, 8], strides = [1, 1]} : vector<16x64xf32> to vector<16x8xf32>
    %74 = arith.maximumf %72, %73 : vector<16x8xf32>
    %c0_8 = arith.constant 0 : index
    %c0_9 = arith.constant 0 : index
    %75 = vector.load %arg3[%c0_8, %c0_9] : memref<1x8xf32, #tpu.memory_space<vmem>>, vector<1x8xf32>
    %cst_10 = arith.constant 1.562500e-02 : f32
    %76 = vector.broadcast %cst_10 : f32 to vector<16x8xf32>
    %77 = arith.mulf %59, %76 : vector<16x8xf32>
    %78 = vector.broadcast %75 : vector<1x8xf32> to vector<16x8xf32>
    %79 = arith.addf %77, %78 : vector<16x8xf32>
    %80 = vector.broadcast %75 : vector<1x8xf32> to vector<16x8xf32>
    %81 = arith.addf %74, %80 : vector<16x8xf32>
    %82 = tpu.concatenate %79, %81 in 1 : vector<16x8xf32>, vector<16x8xf32> -> vector<16x16xf32>
    %c0_11 = arith.constant 0 : index
    %c0_12 = arith.constant 0 : index
    %83 = vector.load %arg4[%c0_11, %c0_12] : memref<16x16xf32, #tpu.memory_space<vmem>>, vector<16x16xf32>
    tpu.vector_store %arg4[%c0_11, %c0_12], %82 {strides = array<i32>} : memref<16x16xf32, #tpu.memory_space<vmem>>, vector<16x16xf32>,
    return
  }
  func.func @transform_0(%arg0: i32) -> (i32, i32, i32) {
    %c0_i32 = arith.constant 0 : i32
    %c0_i32_0 = arith.constant 0 : i32
    %c0_i32_1 = arith.constant 0 : i32
    return %arg0, %c0_i32, %c0_i32_0 : i32, i32, i32
  }
  func.func @transform_1(%arg0: i32) -> (i32, i32, i32) {
    %c0_i32 = arith.constant 0 : i32
    %c0_i32_0 = arith.constant 0 : i32
    %c0_i32_1 = arith.constant 0 : i32
    %c0_i32_2 = arith.constant 0 : i32
    return %c0_i32, %c0_i32_0, %c0_i32_1 : i32, i32, i32
  }
  func.func @transform_2(%arg0: i32) -> (i32, i32) {
    %c0_i32 = arith.constant 0 : i32
    %c0_i32_0 = arith.constant 0 : i32
    %c0_i32_1 = arith.constant 0 : i32
    return %c0_i32, %c0_i32_0 : i32, i32
  }
  func.func @transform_3(%arg0: i32) -> (i32, i32) {
    %c0_i32 = arith.constant 0 : i32
    %c0_i32_0 = arith.constant 0 : i32
    return %arg0, %c0_i32 : i32, i32
  }
}

module attributes {stable_mosaic.version = 11 : i64} {
  func.func @bigru_fc_kernel(%arg0: memref<16x16xf32, #tpu.memory_space<vmem>>, %arg1: memref<2x3x16x16xf32, #tpu.memory_space<vmem>>, %arg2: memref<2x3x16x16xf32, #tpu.memory_space<vmem>>, %arg3: memref<2x4x1x16xf32, #tpu.memory_space<vmem>>, %arg4: memref<16x4xf32, #tpu.memory_space<vmem>>, %arg5: memref<16x4xf32, #tpu.memory_space<vmem>>, %arg6: memref<1x4xf32, #tpu.memory_space<vmem>>, %arg7: memref<16x4xf32, #tpu.memory_space<vmem>>, %arg8: memref<2x3x16x16xf32, #tpu.memory_space<vmem>>, %arg9: memref<16x16xf32, #tpu.memory_space<vmem>>, %arg10: memref<16x16xf32, #tpu.memory_space<vmem>>) attributes {dimension_semantics = [], scalar_prefetch = 0 : i64, scratch_operands = 3 : i64, tpu.core_type = #tpu.core_type<tc>} {
    %c0 = arith.constant 0 : index
    %c0_0 = arith.constant 0 : index
    %0 = vector.load %arg0[%c0, %c0_0] : memref<16x16xf32, #tpu.memory_space<vmem>>, vector<16x16xf32>
    %c0_1 = arith.constant 0 : index
    %c0_2 = arith.constant 0 : index
    %c0_3 = arith.constant 0 : index
    %c0_4 = arith.constant 0 : index
    %1 = vector.load %arg1[%c0_1, %c0_2, %c0_3, %c0_4] : memref<2x3x16x16xf32, #tpu.memory_space<vmem>>, vector<1x1x16x16xf32>
    %2 = vector.shape_cast %1 : vector<1x1x16x16xf32> to vector<16x16xf32>
    %cst = arith.constant dense<0.000000e+00> : vector<16x16xf32>
    %3 = tpu.matmul %0, %2, %cst {dimension_numbers = #tpu.dot_dimension_numbers<[1], [0], [0], [1], [0, 0, 1, 1], [], []>} : vector<16x16xf32>, vector<16x16xf32>, vector<16x16xf32> -> vector<16x16xf32>
    %c0_5 = arith.constant 0 : index
    %c0_6 = arith.constant 0 : index
    %c0_7 = arith.constant 0 : index
    %c0_8 = arith.constant 0 : index
    %4 = vector.load %arg3[%c0_5, %c0_6, %c0_7, %c0_8] : memref<2x4x1x16xf32, #tpu.memory_space<vmem>>, vector<1x1x1x16xf32>
    %5 = vector.shape_cast %4 : vector<1x1x1x16xf32> to vector<1x16xf32>
    %6 = vector.broadcast %5 : vector<1x16xf32> to vector<16x16xf32>
    %7 = arith.addf %3, %6 : vector<16x16xf32>
    %c0_9 = arith.constant 0 : index
    %c0_10 = arith.constant 0 : index
    %c0_11 = arith.constant 0 : index
    %c0_12 = arith.constant 0 : index
    %8 = vector.load %arg8[%c0_9, %c0_10, %c0_11, %c0_12] : memref<2x3x16x16xf32, #tpu.memory_space<vmem>>, vector<1x1x16x16xf32>
    %9 = vector.shape_cast %8 : vector<1x1x16x16xf32> to vector<16x16xf32>
    %10 = vector.shape_cast %7 : vector<16x16xf32> to vector<1x1x16x16xf32>
    tpu.vector_store %arg8[%c0_9, %c0_10, %c0_11, %c0_12], %10 {strides = array<i32>} : memref<2x3x16x16xf32, #tpu.memory_space<vmem>>, vector<1x1x16x16xf32>,
    %c0_13 = arith.constant 0 : index
    %c1 = arith.constant 1 : index
    %c0_14 = arith.constant 0 : index
    %c0_15 = arith.constant 0 : index
    %11 = vector.load %arg1[%c0_13, %c1, %c0_14, %c0_15] : memref<2x3x16x16xf32, #tpu.memory_space<vmem>>, vector<1x1x16x16xf32>
    %12 = vector.shape_cast %11 : vector<1x1x16x16xf32> to vector<16x16xf32>
    %cst_16 = arith.constant dense<0.000000e+00> : vector<16x16xf32>
    %13 = tpu.matmul %0, %12, %cst_16 {dimension_numbers = #tpu.dot_dimension_numbers<[1], [0], [0], [1], [0, 0, 1, 1], [], []>} : vector<16x16xf32>, vector<16x16xf32>, vector<16x16xf32> -> vector<16x16xf32>
    %c0_17 = arith.constant 0 : index
    %c1_18 = arith.constant 1 : index
    %c0_19 = arith.constant 0 : index
    %c0_20 = arith.constant 0 : index
    %14 = vector.load %arg3[%c0_17, %c1_18, %c0_19, %c0_20] : memref<2x4x1x16xf32, #tpu.memory_space<vmem>>, vector<1x1x1x16xf32>
    %15 = vector.shape_cast %14 : vector<1x1x1x16xf32> to vector<1x16xf32>
    %16 = vector.broadcast %15 : vector<1x16xf32> to vector<16x16xf32>
    %17 = arith.addf %13, %16 : vector<16x16xf32>
    %c0_21 = arith.constant 0 : index
    %c1_22 = arith.constant 1 : index
    %c0_23 = arith.constant 0 : index
    %c0_24 = arith.constant 0 : index
    %18 = vector.load %arg8[%c0_21, %c1_22, %c0_23, %c0_24] : memref<2x3x16x16xf32, #tpu.memory_space<vmem>>, vector<1x1x16x16xf32>
    %19 = vector.shape_cast %18 : vector<1x1x16x16xf32> to vector<16x16xf32>
    %20 = vector.shape_cast %17 : vector<16x16xf32> to vector<1x1x16x16xf32>
    tpu.vector_store %arg8[%c0_21, %c1_22, %c0_23, %c0_24], %20 {strides = array<i32>} : memref<2x3x16x16xf32, #tpu.memory_space<vmem>>, vector<1x1x16x16xf32>,
    %c0_25 = arith.constant 0 : index
    %c2 = arith.constant 2 : index
    %c0_26 = arith.constant 0 : index
    %c0_27 = arith.constant 0 : index
    %21 = vector.load %arg1[%c0_25, %c2, %c0_26, %c0_27] : memref<2x3x16x16xf32, #tpu.memory_space<vmem>>, vector<1x1x16x16xf32>
    %22 = vector.shape_cast %21 : vector<1x1x16x16xf32> to vector<16x16xf32>
    %cst_28 = arith.constant dense<0.000000e+00> : vector<16x16xf32>
    %23 = tpu.matmul %0, %22, %cst_28 {dimension_numbers = #tpu.dot_dimension_numbers<[1], [0], [0], [1], [0, 0, 1, 1], [], []>} : vector<16x16xf32>, vector<16x16xf32>, vector<16x16xf32> -> vector<16x16xf32>
    %c0_29 = arith.constant 0 : index
    %c2_30 = arith.constant 2 : index
    %c0_31 = arith.constant 0 : index
    %c0_32 = arith.constant 0 : index
    %24 = vector.load %arg3[%c0_29, %c2_30, %c0_31, %c0_32] : memref<2x4x1x16xf32, #tpu.memory_space<vmem>>, vector<1x1x1x16xf32>
    %25 = vector.shape_cast %24 : vector<1x1x1x16xf32> to vector<1x16xf32>
    %26 = vector.broadcast %25 : vector<1x16xf32> to vector<16x16xf32>
    %27 = arith.addf %23, %26 : vector<16x16xf32>
    %c0_33 = arith.constant 0 : index
    %c2_34 = arith.constant 2 : index
    %c0_35 = arith.constant 0 : index
    %c0_36 = arith.constant 0 : index
    %28 = vector.load %arg8[%c0_33, %c2_34, %c0_35, %c0_36] : memref<2x3x16x16xf32, #tpu.memory_space<vmem>>, vector<1x1x16x16xf32>
    %29 = vector.shape_cast %28 : vector<1x1x16x16xf32> to vector<16x16xf32>
    %30 = vector.shape_cast %27 : vector<16x16xf32> to vector<1x1x16x16xf32>
    tpu.vector_store %arg8[%c0_33, %c2_34, %c0_35, %c0_36], %30 {strides = array<i32>} : memref<2x3x16x16xf32, #tpu.memory_space<vmem>>, vector<1x1x16x16xf32>,
    %c1_37 = arith.constant 1 : index
    %c0_38 = arith.constant 0 : index
    %c0_39 = arith.constant 0 : index
    %c0_40 = arith.constant 0 : index
    %31 = vector.load %arg1[%c1_37, %c0_38, %c0_39, %c0_40] : memref<2x3x16x16xf32, #tpu.memory_space<vmem>>, vector<1x1x16x16xf32>
    %32 = vector.shape_cast %31 : vector<1x1x16x16xf32> to vector<16x16xf32>
    %cst_41 = arith.constant dense<0.000000e+00> : vector<16x16xf32>
    %33 = tpu.matmul %0, %32, %cst_41 {dimension_numbers = #tpu.dot_dimension_numbers<[1], [0], [0], [1], [0, 0, 1, 1], [], []>} : vector<16x16xf32>, vector<16x16xf32>, vector<16x16xf32> -> vector<16x16xf32>
    %c1_42 = arith.constant 1 : index
    %c0_43 = arith.constant 0 : index
    %c0_44 = arith.constant 0 : index
    %c0_45 = arith.constant 0 : index
    %34 = vector.load %arg3[%c1_42, %c0_43, %c0_44, %c0_45] : memref<2x4x1x16xf32, #tpu.memory_space<vmem>>, vector<1x1x1x16xf32>
    %35 = vector.shape_cast %34 : vector<1x1x1x16xf32> to vector<1x16xf32>
    %36 = vector.broadcast %35 : vector<1x16xf32> to vector<16x16xf32>
    %37 = arith.addf %33, %36 : vector<16x16xf32>
    %c1_46 = arith.constant 1 : index
    %c0_47 = arith.constant 0 : index
    %c0_48 = arith.constant 0 : index
    %c0_49 = arith.constant 0 : index
    %38 = vector.load %arg8[%c1_46, %c0_47, %c0_48, %c0_49] : memref<2x3x16x16xf32, #tpu.memory_space<vmem>>, vector<1x1x16x16xf32>
    %39 = vector.shape_cast %38 : vector<1x1x16x16xf32> to vector<16x16xf32>
    %40 = vector.shape_cast %37 : vector<16x16xf32> to vector<1x1x16x16xf32>
    tpu.vector_store %arg8[%c1_46, %c0_47, %c0_48, %c0_49], %40 {strides = array<i32>} : memref<2x3x16x16xf32, #tpu.memory_space<vmem>>, vector<1x1x16x16xf32>,
    %c1_50 = arith.constant 1 : index
    %c1_51 = arith.constant 1 : index
    %c0_52 = arith.constant 0 : index
    %c0_53 = arith.constant 0 : index
    %41 = vector.load %arg1[%c1_50, %c1_51, %c0_52, %c0_53] : memref<2x3x16x16xf32, #tpu.memory_space<vmem>>, vector<1x1x16x16xf32>
    %42 = vector.shape_cast %41 : vector<1x1x16x16xf32> to vector<16x16xf32>
    %cst_54 = arith.constant dense<0.000000e+00> : vector<16x16xf32>
    %43 = tpu.matmul %0, %42, %cst_54 {dimension_numbers = #tpu.dot_dimension_numbers<[1], [0], [0], [1], [0, 0, 1, 1], [], []>} : vector<16x16xf32>, vector<16x16xf32>, vector<16x16xf32> -> vector<16x16xf32>
    %c1_55 = arith.constant 1 : index
    %c1_56 = arith.constant 1 : index
    %c0_57 = arith.constant 0 : index
    %c0_58 = arith.constant 0 : index
    %44 = vector.load %arg3[%c1_55, %c1_56, %c0_57, %c0_58] : memref<2x4x1x16xf32, #tpu.memory_space<vmem>>, vector<1x1x1x16xf32>
    %45 = vector.shape_cast %44 : vector<1x1x1x16xf32> to vector<1x16xf32>
    %46 = vector.broadcast %45 : vector<1x16xf32> to vector<16x16xf32>
    %47 = arith.addf %43, %46 : vector<16x16xf32>
    %c1_59 = arith.constant 1 : index
    %c1_60 = arith.constant 1 : index
    %c0_61 = arith.constant 0 : index
    %c0_62 = arith.constant 0 : index
    %48 = vector.load %arg8[%c1_59, %c1_60, %c0_61, %c0_62] : memref<2x3x16x16xf32, #tpu.memory_space<vmem>>, vector<1x1x16x16xf32>
    %49 = vector.shape_cast %48 : vector<1x1x16x16xf32> to vector<16x16xf32>
    %50 = vector.shape_cast %47 : vector<16x16xf32> to vector<1x1x16x16xf32>
    tpu.vector_store %arg8[%c1_59, %c1_60, %c0_61, %c0_62], %50 {strides = array<i32>} : memref<2x3x16x16xf32, #tpu.memory_space<vmem>>, vector<1x1x16x16xf32>,
    %c1_63 = arith.constant 1 : index
    %c2_64 = arith.constant 2 : index
    %c0_65 = arith.constant 0 : index
    %c0_66 = arith.constant 0 : index
    %51 = vector.load %arg1[%c1_63, %c2_64, %c0_65, %c0_66] : memref<2x3x16x16xf32, #tpu.memory_space<vmem>>, vector<1x1x16x16xf32>
    %52 = vector.shape_cast %51 : vector<1x1x16x16xf32> to vector<16x16xf32>
    %cst_67 = arith.constant dense<0.000000e+00> : vector<16x16xf32>
    %53 = tpu.matmul %0, %52, %cst_67 {dimension_numbers = #tpu.dot_dimension_numbers<[1], [0], [0], [1], [0, 0, 1, 1], [], []>} : vector<16x16xf32>, vector<16x16xf32>, vector<16x16xf32> -> vector<16x16xf32>
    %c1_68 = arith.constant 1 : index
    %c2_69 = arith.constant 2 : index
    %c0_70 = arith.constant 0 : index
    %c0_71 = arith.constant 0 : index
    %54 = vector.load %arg3[%c1_68, %c2_69, %c0_70, %c0_71] : memref<2x4x1x16xf32, #tpu.memory_space<vmem>>, vector<1x1x1x16xf32>
    %55 = vector.shape_cast %54 : vector<1x1x1x16xf32> to vector<1x16xf32>
    %56 = vector.broadcast %55 : vector<1x16xf32> to vector<16x16xf32>
    %57 = arith.addf %53, %56 : vector<16x16xf32>
    %c1_72 = arith.constant 1 : index
    %c2_73 = arith.constant 2 : index
    %c0_74 = arith.constant 0 : index
    %c0_75 = arith.constant 0 : index
    %58 = vector.load %arg8[%c1_72, %c2_73, %c0_74, %c0_75] : memref<2x3x16x16xf32, #tpu.memory_space<vmem>>, vector<1x1x16x16xf32>
    %59 = vector.shape_cast %58 : vector<1x1x16x16xf32> to vector<16x16xf32>
    %60 = vector.shape_cast %57 : vector<16x16xf32> to vector<1x1x16x16xf32>
    tpu.vector_store %arg8[%c1_72, %c2_73, %c0_74, %c0_75], %60 {strides = array<i32>} : memref<2x3x16x16xf32, #tpu.memory_space<vmem>>, vector<1x1x16x16xf32>,
    %c0_76 = arith.constant 0 : index
    %c0_77 = arith.constant 0 : index
    %c0_78 = arith.constant 0 : index
    %c0_79 = arith.constant 0 : index
    %61 = vector.load %arg2[%c0_76, %c0_77, %c0_78, %c0_79] : memref<2x3x16x16xf32, #tpu.memory_space<vmem>>, vector<1x1x16x16xf32>
    %62 = vector.shape_cast %61 : vector<1x1x16x16xf32> to vector<16x16xf32>
    %c0_80 = arith.constant 0 : index
    %c1_81 = arith.constant 1 : index
    %c0_82 = arith.constant 0 : index
    %c0_83 = arith.constant 0 : index
    %63 = vector.load %arg2[%c0_80, %c1_81, %c0_82, %c0_83] : memref<2x3x16x16xf32, #tpu.memory_space<vmem>>, vector<1x1x16x16xf32>
    %64 = vector.shape_cast %63 : vector<1x1x16x16xf32> to vector<16x16xf32>
    %c0_84 = arith.constant 0 : index
    %c2_85 = arith.constant 2 : index
    %c0_86 = arith.constant 0 : index
    %c0_87 = arith.constant 0 : index
    %65 = vector.load %arg2[%c0_84, %c2_85, %c0_86, %c0_87] : memref<2x3x16x16xf32, #tpu.memory_space<vmem>>, vector<1x1x16x16xf32>
    %66 = vector.shape_cast %65 : vector<1x1x16x16xf32> to vector<16x16xf32>
    %c1_88 = arith.constant 1 : index
    %c0_89 = arith.constant 0 : index
    %c0_90 = arith.constant 0 : index
    %c0_91 = arith.constant 0 : index
    %67 = vector.load %arg2[%c1_88, %c0_89, %c0_90, %c0_91] : memref<2x3x16x16xf32, #tpu.memory_space<vmem>>, vector<1x1x16x16xf32>
    %68 = vector.shape_cast %67 : vector<1x1x16x16xf32> to vector<16x16xf32>
    %c1_92 = arith.constant 1 : index
    %c1_93 = arith.constant 1 : index
    %c0_94 = arith.constant 0 : index
    %c0_95 = arith.constant 0 : index
    %69 = vector.load %arg2[%c1_92, %c1_93, %c0_94, %c0_95] : memref<2x3x16x16xf32, #tpu.memory_space<vmem>>, vector<1x1x16x16xf32>
    %70 = vector.shape_cast %69 : vector<1x1x16x16xf32> to vector<16x16xf32>
    %c1_96 = arith.constant 1 : index
    %c2_97 = arith.constant 2 : index
    %c0_98 = arith.constant 0 : index
    %c0_99 = arith.constant 0 : index
    %71 = vector.load %arg2[%c1_96, %c2_97, %c0_98, %c0_99] : memref<2x3x16x16xf32, #tpu.memory_space<vmem>>, vector<1x1x16x16xf32>
    %72 = vector.shape_cast %71 : vector<1x1x16x16xf32> to vector<16x16xf32>
    %c0_100 = arith.constant 0 : index
    %c3 = arith.constant 3 : index
    %c0_101 = arith.constant 0 : index
    %c0_102 = arith.constant 0 : index
    %73 = vector.load %arg3[%c0_100, %c3, %c0_101, %c0_102] : memref<2x4x1x16xf32, #tpu.memory_space<vmem>>, vector<1x1x1x16xf32>
    %74 = vector.shape_cast %73 : vector<1x1x1x16xf32> to vector<1x16xf32>
    %c1_103 = arith.constant 1 : index
    %c3_104 = arith.constant 3 : index
    %c0_105 = arith.constant 0 : index
    %c0_106 = arith.constant 0 : index
    %75 = vector.load %arg3[%c1_103, %c3_104, %c0_105, %c0_106] : memref<2x4x1x16xf32, #tpu.memory_space<vmem>>, vector<1x1x1x16xf32>
    %76 = vector.shape_cast %75 : vector<1x1x1x16xf32> to vector<1x16xf32>
    %cst_107 = arith.constant 0.000000e+00 : f32
    %77 = vector.broadcast %cst_107 : f32 to vector<2x16xf32>
    %c0_i32 = arith.constant 0 : i32
    %c2_i32 = arith.constant 2 : i32
    %78 = arith.muli %c0_i32, %c2_i32 : i32
    %c0_108 = arith.constant 0 : index
    %c0_109 = arith.constant 0 : index
    %79 = arith.index_cast %78 : i32 to index
    %c0_110 = arith.constant 0 : index
    %80 = vector.load %arg8[%c0_108, %c0_109, %79, %c0_110] : memref<2x3x16x16xf32, #tpu.memory_space<vmem>>, vector<1x1x2x16xf32>
    %81 = vector.shape_cast %80 : vector<1x1x2x16xf32> to vector<2x16xf32>
    %cst_111 = arith.constant dense<0.000000e+00> : vector<2x16xf32>
    %82 = tpu.matmul %77, %62, %cst_111 {dimension_numbers = #tpu.dot_dimension_numbers<[1], [0], [0], [1], [0, 0, 1, 1], [], []>} : vector<2x16xf32>, vector<16x16xf32>, vector<2x16xf32> -> vector<2x16xf32>
    %83 = arith.addf %81, %82 : vector<2x16xf32>
    %84 = arith.negf %83 : vector<2x16xf32>
    %85 = math.exp %84 : vector<2x16xf32>
    %cst_112 = arith.constant 1.000000e+00 : f32
    %86 = vector.broadcast %cst_112 : f32 to vector<2x16xf32>
    %87 = arith.addf %86, %85 : vector<2x16xf32>
    %88 = arith.divf %86, %87 : vector<2x16xf32>
    %c0_113 = arith.constant 0 : index
    %c1_114 = arith.constant 1 : index
    %89 = arith.index_cast %78 : i32 to index
    %c0_115 = arith.constant 0 : index
    %90 = vector.load %arg8[%c0_113, %c1_114, %89, %c0_115] : memref<2x3x16x16xf32, #tpu.memory_space<vmem>>, vector<1x1x2x16xf32>
    %91 = vector.shape_cast %90 : vector<1x1x2x16xf32> to vector<2x16xf32>
    %cst_116 = arith.constant dense<0.000000e+00> : vector<2x16xf32>
    %92 = tpu.matmul %77, %64, %cst_116 {dimension_numbers = #tpu.dot_dimension_numbers<[1], [0], [0], [1], [0, 0, 1, 1], [], []>} : vector<2x16xf32>, vector<16x16xf32>, vector<2x16xf32> -> vector<2x16xf32>
    %93 = arith.addf %91, %92 : vector<2x16xf32>
    %94 = arith.negf %93 : vector<2x16xf32>
    %95 = math.exp %94 : vector<2x16xf32>
    %cst_117 = arith.constant 1.000000e+00 : f32
    %96 = vector.broadcast %cst_117 : f32 to vector<2x16xf32>
    %97 = arith.addf %96, %95 : vector<2x16xf32>
    %98 = arith.divf %96, %97 : vector<2x16xf32>
    %c0_118 = arith.constant 0 : index
    %c2_119 = arith.constant 2 : index
    %99 = arith.index_cast %78 : i32 to index
    %c0_120 = arith.constant 0 : index
    %100 = vector.load %arg8[%c0_118, %c2_119, %99, %c0_120] : memref<2x3x16x16xf32, #tpu.memory_space<vmem>>, vector<1x1x2x16xf32>
    %101 = vector.shape_cast %100 : vector<1x1x2x16xf32> to vector<2x16xf32>
    %cst_121 = arith.constant dense<0.000000e+00> : vector<2x16xf32>
    %102 = tpu.matmul %77, %66, %cst_121 {dimension_numbers = #tpu.dot_dimension_numbers<[1], [0], [0], [1], [0, 0, 1, 1], [], []>} : vector<2x16xf32>, vector<16x16xf32>, vector<2x16xf32> -> vector<2x16xf32>
    %103 = vector.broadcast %74 : vector<1x16xf32> to vector<2x16xf32>
    %104 = arith.addf %102, %103 : vector<2x16xf32>
    %105 = arith.mulf %88, %104 : vector<2x16xf32>
    %106 = arith.addf %101, %105 : vector<2x16xf32>
    %107 = math.tanh %106 : vector<2x16xf32>
    %cst_122 = arith.constant 1.000000e+00 : f32
    %108 = vector.broadcast %cst_122 : f32 to vector<2x16xf32>
    %109 = arith.subf %108, %98 : vector<2x16xf32>
    %110 = arith.mulf %109, %107 : vector<2x16xf32>
    %111 = arith.mulf %98, %77 : vector<2x16xf32>
    %112 = arith.addf %110, %111 : vector<2x16xf32>
    %c2_i32_123 = arith.constant 2 : i32
    %113 = arith.muli %c0_i32, %c2_i32_123 : i32
    %114 = arith.index_cast %113 : i32 to index
    %c0_124 = arith.constant 0 : index
    %115 = vector.load %arg9[%114, %c0_124] : memref<16x16xf32, #tpu.memory_space<vmem>>, vector<2x16xf32>
    tpu.vector_store %arg9[%114, %c0_124], %112 {strides = array<i32>} : memref<16x16xf32, #tpu.memory_space<vmem>>, vector<2x16xf32>,
    %c7_i32 = arith.constant 7 : i32
    %116 = arith.subi %c7_i32, %c0_i32 : i32
    %c2_i32_125 = arith.constant 2 : i32
    %117 = arith.muli %116, %c2_i32_125 : i32
    %c1_126 = arith.constant 1 : index
    %c0_127 = arith.constant 0 : index
    %118 = arith.index_cast %117 : i32 to index
    %c0_128 = arith.constant 0 : index
    %119 = vector.load %arg8[%c1_126, %c0_127, %118, %c0_128] : memref<2x3x16x16xf32, #tpu.memory_space<vmem>>, vector<1x1x2x16xf32>
    %120 = vector.shape_cast %119 : vector<1x1x2x16xf32> to vector<2x16xf32>
    %cst_129 = arith.constant dense<0.000000e+00> : vector<2x16xf32>
    %121 = tpu.matmul %77, %68, %cst_129 {dimension_numbers = #tpu.dot_dimension_numbers<[1], [0], [0], [1], [0, 0, 1, 1], [], []>} : vector<2x16xf32>, vector<16x16xf32>, vector<2x16xf32> -> vector<2x16xf32>
    %122 = arith.addf %120, %121 : vector<2x16xf32>
    %123 = arith.negf %122 : vector<2x16xf32>
    %124 = math.exp %123 : vector<2x16xf32>
    %cst_130 = arith.constant 1.000000e+00 : f32
    %125 = vector.broadcast %cst_130 : f32 to vector<2x16xf32>
    %126 = arith.addf %125, %124 : vector<2x16xf32>
    %127 = arith.divf %125, %126 : vector<2x16xf32>
    %c1_131 = arith.constant 1 : index
    %c1_132 = arith.constant 1 : index
    %128 = arith.index_cast %117 : i32 to index
    %c0_133 = arith.constant 0 : index
    %129 = vector.load %arg8[%c1_131, %c1_132, %128, %c0_133] : memref<2x3x16x16xf32, #tpu.memory_space<vmem>>, vector<1x1x2x16xf32>
    %130 = vector.shape_cast %129 : vector<1x1x2x16xf32> to vector<2x16xf32>
    %cst_134 = arith.constant dense<0.000000e+00> : vector<2x16xf32>
    %131 = tpu.matmul %77, %70, %cst_134 {dimension_numbers = #tpu.dot_dimension_numbers<[1], [0], [0], [1], [0, 0, 1, 1], [], []>} : vector<2x16xf32>, vector<16x16xf32>, vector<2x16xf32> -> vector<2x16xf32>
    %132 = arith.addf %130, %131 : vector<2x16xf32>
    %133 = arith.negf %132 : vector<2x16xf32>
    %134 = math.exp %133 : vector<2x16xf32>
    %cst_135 = arith.constant 1.000000e+00 : f32
    %135 = vector.broadcast %cst_135 : f32 to vector<2x16xf32>
    %136 = arith.addf %135, %134 : vector<2x16xf32>
    %137 = arith.divf %135, %136 : vector<2x16xf32>
    %c1_136 = arith.constant 1 : index
    %c2_137 = arith.constant 2 : index
    %138 = arith.index_cast %117 : i32 to index
    %c0_138 = arith.constant 0 : index
    %139 = vector.load %arg8[%c1_136, %c2_137, %138, %c0_138] : memref<2x3x16x16xf32, #tpu.memory_space<vmem>>, vector<1x1x2x16xf32>
    %140 = vector.shape_cast %139 : vector<1x1x2x16xf32> to vector<2x16xf32>
    %cst_139 = arith.constant dense<0.000000e+00> : vector<2x16xf32>
    %141 = tpu.matmul %77, %72, %cst_139 {dimension_numbers = #tpu.dot_dimension_numbers<[1], [0], [0], [1], [0, 0, 1, 1], [], []>} : vector<2x16xf32>, vector<16x16xf32>, vector<2x16xf32> -> vector<2x16xf32>
    %142 = vector.broadcast %76 : vector<1x16xf32> to vector<2x16xf32>
    %143 = arith.addf %141, %142 : vector<2x16xf32>
    %144 = arith.mulf %127, %143 : vector<2x16xf32>
    %145 = arith.addf %140, %144 : vector<2x16xf32>
    %146 = math.tanh %145 : vector<2x16xf32>
    %cst_140 = arith.constant 1.000000e+00 : f32
    %147 = vector.broadcast %cst_140 : f32 to vector<2x16xf32>
    %148 = arith.subf %147, %137 : vector<2x16xf32>
    %149 = arith.mulf %148, %146 : vector<2x16xf32>
    %150 = arith.mulf %137, %77 : vector<2x16xf32>
    %151 = arith.addf %149, %150 : vector<2x16xf32>
    %c2_i32_141 = arith.constant 2 : i32
    %152 = arith.muli %116, %c2_i32_141 : i32
    %153 = arith.index_cast %152 : i32 to index
    %c0_142 = arith.constant 0 : index
    %154 = vector.load %arg10[%153, %c0_142] : memref<16x16xf32, #tpu.memory_space<vmem>>, vector<2x16xf32>
    tpu.vector_store %arg10[%153, %c0_142], %151 {strides = array<i32>} : memref<16x16xf32, #tpu.memory_space<vmem>>, vector<2x16xf32>,
    %c1_i32 = arith.constant 1 : i32
    %c2_i32_143 = arith.constant 2 : i32
    %155 = arith.muli %c1_i32, %c2_i32_143 : i32
    %c0_144 = arith.constant 0 : index
    %c0_145 = arith.constant 0 : index
    %156 = arith.index_cast %155 : i32 to index
    %c0_146 = arith.constant 0 : index
    %157 = vector.load %arg8[%c0_144, %c0_145, %156, %c0_146] : memref<2x3x16x16xf32, #tpu.memory_space<vmem>>, vector<1x1x2x16xf32>
    %158 = vector.shape_cast %157 : vector<1x1x2x16xf32> to vector<2x16xf32>
    %cst_147 = arith.constant dense<0.000000e+00> : vector<2x16xf32>
    %159 = tpu.matmul %112, %62, %cst_147 {dimension_numbers = #tpu.dot_dimension_numbers<[1], [0], [0], [1], [0, 0, 1, 1], [], []>} : vector<2x16xf32>, vector<16x16xf32>, vector<2x16xf32> -> vector<2x16xf32>
    %160 = arith.addf %158, %159 : vector<2x16xf32>
    %161 = arith.negf %160 : vector<2x16xf32>
    %162 = math.exp %161 : vector<2x16xf32>
    %cst_148 = arith.constant 1.000000e+00 : f32
    %163 = vector.broadcast %cst_148 : f32 to vector<2x16xf32>
    %164 = arith.addf %163, %162 : vector<2x16xf32>
    %165 = arith.divf %163, %164 : vector<2x16xf32>
    %c0_149 = arith.constant 0 : index
    %c1_150 = arith.constant 1 : index
    %166 = arith.index_cast %155 : i32 to index
    %c0_151 = arith.constant 0 : index
    %167 = vector.load %arg8[%c0_149, %c1_150, %166, %c0_151] : memref<2x3x16x16xf32, #tpu.memory_space<vmem>>, vector<1x1x2x16xf32>
    %168 = vector.shape_cast %167 : vector<1x1x2x16xf32> to vector<2x16xf32>
    %cst_152 = arith.constant dense<0.000000e+00> : vector<2x16xf32>
    %169 = tpu.matmul %112, %64, %cst_152 {dimension_numbers = #tpu.dot_dimension_numbers<[1], [0], [0], [1], [0, 0, 1, 1], [], []>} : vector<2x16xf32>, vector<16x16xf32>, vector<2x16xf32> -> vector<2x16xf32>
    %170 = arith.addf %168, %169 : vector<2x16xf32>
    %171 = arith.negf %170 : vector<2x16xf32>
    %172 = math.exp %171 : vector<2x16xf32>
    %cst_153 = arith.constant 1.000000e+00 : f32
    %173 = vector.broadcast %cst_153 : f32 to vector<2x16xf32>
    %174 = arith.addf %173, %172 : vector<2x16xf32>
    %175 = arith.divf %173, %174 : vector<2x16xf32>
    %c0_154 = arith.constant 0 : index
    %c2_155 = arith.constant 2 : index
    %176 = arith.index_cast %155 : i32 to index
    %c0_156 = arith.constant 0 : index
    %177 = vector.load %arg8[%c0_154, %c2_155, %176, %c0_156] : memref<2x3x16x16xf32, #tpu.memory_space<vmem>>, vector<1x1x2x16xf32>
    %178 = vector.shape_cast %177 : vector<1x1x2x16xf32> to vector<2x16xf32>
    %cst_157 = arith.constant dense<0.000000e+00> : vector<2x16xf32>
    %179 = tpu.matmul %112, %66, %cst_157 {dimension_numbers = #tpu.dot_dimension_numbers<[1], [0], [0], [1], [0, 0, 1, 1], [], []>} : vector<2x16xf32>, vector<16x16xf32>, vector<2x16xf32> -> vector<2x16xf32>
    %180 = vector.broadcast %74 : vector<1x16xf32> to vector<2x16xf32>
    %181 = arith.addf %179, %180 : vector<2x16xf32>
    %182 = arith.mulf %165, %181 : vector<2x16xf32>
    %183 = arith.addf %178, %182 : vector<2x16xf32>
    %184 = math.tanh %183 : vector<2x16xf32>
    %cst_158 = arith.constant 1.000000e+00 : f32
    %185 = vector.broadcast %cst_158 : f32 to vector<2x16xf32>
    %186 = arith.subf %185, %175 : vector<2x16xf32>
    %187 = arith.mulf %186, %184 : vector<2x16xf32>
    %188 = arith.mulf %175, %112 : vector<2x16xf32>
    %189 = arith.addf %187, %188 : vector<2x16xf32>
    %c2_i32_159 = arith.constant 2 : i32
    %190 = arith.muli %c1_i32, %c2_i32_159 : i32
    %191 = arith.index_cast %190 : i32 to index
    %c0_160 = arith.constant 0 : index
    %192 = vector.load %arg9[%191, %c0_160] : memref<16x16xf32, #tpu.memory_space<vmem>>, vector<2x16xf32>
    tpu.vector_store %arg9[%191, %c0_160], %189 {strides = array<i32>} : memref<16x16xf32, #tpu.memory_space<vmem>>, vector<2x16xf32>,
    %c7_i32_161 = arith.constant 7 : i32
    %193 = arith.subi %c7_i32_161, %c1_i32 : i32
    %c2_i32_162 = arith.constant 2 : i32
    %194 = arith.muli %193, %c2_i32_162 : i32
    %c1_163 = arith.constant 1 : index
    %c0_164 = arith.constant 0 : index
    %195 = arith.index_cast %194 : i32 to index
    %c0_165 = arith.constant 0 : index
    %196 = vector.load %arg8[%c1_163, %c0_164, %195, %c0_165] : memref<2x3x16x16xf32, #tpu.memory_space<vmem>>, vector<1x1x2x16xf32>
    %197 = vector.shape_cast %196 : vector<1x1x2x16xf32> to vector<2x16xf32>
    %cst_166 = arith.constant dense<0.000000e+00> : vector<2x16xf32>
    %198 = tpu.matmul %151, %68, %cst_166 {dimension_numbers = #tpu.dot_dimension_numbers<[1], [0], [0], [1], [0, 0, 1, 1], [], []>} : vector<2x16xf32>, vector<16x16xf32>, vector<2x16xf32> -> vector<2x16xf32>
    %199 = arith.addf %197, %198 : vector<2x16xf32>
    %200 = arith.negf %199 : vector<2x16xf32>
    %201 = math.exp %200 : vector<2x16xf32>
    %cst_167 = arith.constant 1.000000e+00 : f32
    %202 = vector.broadcast %cst_167 : f32 to vector<2x16xf32>
    %203 = arith.addf %202, %201 : vector<2x16xf32>
    %204 = arith.divf %202, %203 : vector<2x16xf32>
    %c1_168 = arith.constant 1 : index
    %c1_169 = arith.constant 1 : index
    %205 = arith.index_cast %194 : i32 to index
    %c0_170 = arith.constant 0 : index
    %206 = vector.load %arg8[%c1_168, %c1_169, %205, %c0_170] : memref<2x3x16x16xf32, #tpu.memory_space<vmem>>, vector<1x1x2x16xf32>
    %207 = vector.shape_cast %206 : vector<1x1x2x16xf32> to vector<2x16xf32>
    %cst_171 = arith.constant dense<0.000000e+00> : vector<2x16xf32>
    %208 = tpu.matmul %151, %70, %cst_171 {dimension_numbers = #tpu.dot_dimension_numbers<[1], [0], [0], [1], [0, 0, 1, 1], [], []>} : vector<2x16xf32>, vector<16x16xf32>, vector<2x16xf32> -> vector<2x16xf32>
    %209 = arith.addf %207, %208 : vector<2x16xf32>
    %210 = arith.negf %209 : vector<2x16xf32>
    %211 = math.exp %210 : vector<2x16xf32>
    %cst_172 = arith.constant 1.000000e+00 : f32
    %212 = vector.broadcast %cst_172 : f32 to vector<2x16xf32>
    %213 = arith.addf %212, %211 : vector<2x16xf32>
    %214 = arith.divf %212, %213 : vector<2x16xf32>
    %c1_173 = arith.constant 1 : index
    %c2_174 = arith.constant 2 : index
    %215 = arith.index_cast %194 : i32 to index
    %c0_175 = arith.constant 0 : index
    %216 = vector.load %arg8[%c1_173, %c2_174, %215, %c0_175] : memref<2x3x16x16xf32, #tpu.memory_space<vmem>>, vector<1x1x2x16xf32>
    %217 = vector.shape_cast %216 : vector<1x1x2x16xf32> to vector<2x16xf32>
    %cst_176 = arith.constant dense<0.000000e+00> : vector<2x16xf32>
    %218 = tpu.matmul %151, %72, %cst_176 {dimension_numbers = #tpu.dot_dimension_numbers<[1], [0], [0], [1], [0, 0, 1, 1], [], []>} : vector<2x16xf32>, vector<16x16xf32>, vector<2x16xf32> -> vector<2x16xf32>
    %219 = vector.broadcast %76 : vector<1x16xf32> to vector<2x16xf32>
    %220 = arith.addf %218, %219 : vector<2x16xf32>
    %221 = arith.mulf %204, %220 : vector<2x16xf32>
    %222 = arith.addf %217, %221 : vector<2x16xf32>
    %223 = math.tanh %222 : vector<2x16xf32>
    %cst_177 = arith.constant 1.000000e+00 : f32
    %224 = vector.broadcast %cst_177 : f32 to vector<2x16xf32>
    %225 = arith.subf %224, %214 : vector<2x16xf32>
    %226 = arith.mulf %225, %223 : vector<2x16xf32>
    %227 = arith.mulf %214, %151 : vector<2x16xf32>
    %228 = arith.addf %226, %227 : vector<2x16xf32>
    %c2_i32_178 = arith.constant 2 : i32
    %229 = arith.muli %193, %c2_i32_178 : i32
    %230 = arith.index_cast %229 : i32 to index
    %c0_179 = arith.constant 0 : index
    %231 = vector.load %arg10[%230, %c0_179] : memref<16x16xf32, #tpu.memory_space<vmem>>, vector<2x16xf32>
    tpu.vector_store %arg10[%230, %c0_179], %228 {strides = array<i32>} : memref<16x16xf32, #tpu.memory_space<vmem>>, vector<2x16xf32>,
    %c2_i32_180 = arith.constant 2 : i32
    %c2_i32_181 = arith.constant 2 : i32
    %232 = arith.muli %c2_i32_180, %c2_i32_181 : i32
    %c0_182 = arith.constant 0 : index
    %c0_183 = arith.constant 0 : index
    %233 = arith.index_cast %232 : i32 to index
    %c0_184 = arith.constant 0 : index
    %234 = vector.load %arg8[%c0_182, %c0_183, %233, %c0_184] : memref<2x3x16x16xf32, #tpu.memory_space<vmem>>, vector<1x1x2x16xf32>
    %235 = vector.shape_cast %234 : vector<1x1x2x16xf32> to vector<2x16xf32>
    %cst_185 = arith.constant dense<0.000000e+00> : vector<2x16xf32>
    %236 = tpu.matmul %189, %62, %cst_185 {dimension_numbers = #tpu.dot_dimension_numbers<[1], [0], [0], [1], [0, 0, 1, 1], [], []>} : vector<2x16xf32>, vector<16x16xf32>, vector<2x16xf32> -> vector<2x16xf32>
    %237 = arith.addf %235, %236 : vector<2x16xf32>
    %238 = arith.negf %237 : vector<2x16xf32>
    %239 = math.exp %238 : vector<2x16xf32>
    %cst_186 = arith.constant 1.000000e+00 : f32
    %240 = vector.broadcast %cst_186 : f32 to vector<2x16xf32>
    %241 = arith.addf %240, %239 : vector<2x16xf32>
    %242 = arith.divf %240, %241 : vector<2x16xf32>
    %c0_187 = arith.constant 0 : index
    %c1_188 = arith.constant 1 : index
    %243 = arith.index_cast %232 : i32 to index
    %c0_189 = arith.constant 0 : index
    %244 = vector.load %arg8[%c0_187, %c1_188, %243, %c0_189] : memref<2x3x16x16xf32, #tpu.memory_space<vmem>>, vector<1x1x2x16xf32>
    %245 = vector.shape_cast %244 : vector<1x1x2x16xf32> to vector<2x16xf32>
    %cst_190 = arith.constant dense<0.000000e+00> : vector<2x16xf32>
    %246 = tpu.matmul %189, %64, %cst_190 {dimension_numbers = #tpu.dot_dimension_numbers<[1], [0], [0], [1], [0, 0, 1, 1], [], []>} : vector<2x16xf32>, vector<16x16xf32>, vector<2x16xf32> -> vector<2x16xf32>
    %247 = arith.addf %245, %246 : vector<2x16xf32>
    %248 = arith.negf %247 : vector<2x16xf32>
    %249 = math.exp %248 : vector<2x16xf32>
    %cst_191 = arith.constant 1.000000e+00 : f32
    %250 = vector.broadcast %cst_191 : f32 to vector<2x16xf32>
    %251 = arith.addf %250, %249 : vector<2x16xf32>
    %252 = arith.divf %250, %251 : vector<2x16xf32>
    %c0_192 = arith.constant 0 : index
    %c2_193 = arith.constant 2 : index
    %253 = arith.index_cast %232 : i32 to index
    %c0_194 = arith.constant 0 : index
    %254 = vector.load %arg8[%c0_192, %c2_193, %253, %c0_194] : memref<2x3x16x16xf32, #tpu.memory_space<vmem>>, vector<1x1x2x16xf32>
    %255 = vector.shape_cast %254 : vector<1x1x2x16xf32> to vector<2x16xf32>
    %cst_195 = arith.constant dense<0.000000e+00> : vector<2x16xf32>
    %256 = tpu.matmul %189, %66, %cst_195 {dimension_numbers = #tpu.dot_dimension_numbers<[1], [0], [0], [1], [0, 0, 1, 1], [], []>} : vector<2x16xf32>, vector<16x16xf32>, vector<2x16xf32> -> vector<2x16xf32>
    %257 = vector.broadcast %74 : vector<1x16xf32> to vector<2x16xf32>
    %258 = arith.addf %256, %257 : vector<2x16xf32>
    %259 = arith.mulf %242, %258 : vector<2x16xf32>
    %260 = arith.addf %255, %259 : vector<2x16xf32>
    %261 = math.tanh %260 : vector<2x16xf32>
    %cst_196 = arith.constant 1.000000e+00 : f32
    %262 = vector.broadcast %cst_196 : f32 to vector<2x16xf32>
    %263 = arith.subf %262, %252 : vector<2x16xf32>
    %264 = arith.mulf %263, %261 : vector<2x16xf32>
    %265 = arith.mulf %252, %189 : vector<2x16xf32>
    %266 = arith.addf %264, %265 : vector<2x16xf32>
    %c2_i32_197 = arith.constant 2 : i32
    %267 = arith.muli %c2_i32_180, %c2_i32_197 : i32
    %268 = arith.index_cast %267 : i32 to index
    %c0_198 = arith.constant 0 : index
    %269 = vector.load %arg9[%268, %c0_198] : memref<16x16xf32, #tpu.memory_space<vmem>>, vector<2x16xf32>
    tpu.vector_store %arg9[%268, %c0_198], %266 {strides = array<i32>} : memref<16x16xf32, #tpu.memory_space<vmem>>, vector<2x16xf32>,
    %c7_i32_199 = arith.constant 7 : i32
    %270 = arith.subi %c7_i32_199, %c2_i32_180 : i32
    %c2_i32_200 = arith.constant 2 : i32
    %271 = arith.muli %270, %c2_i32_200 : i32
    %c1_201 = arith.constant 1 : index
    %c0_202 = arith.constant 0 : index
    %272 = arith.index_cast %271 : i32 to index
    %c0_203 = arith.constant 0 : index
    %273 = vector.load %arg8[%c1_201, %c0_202, %272, %c0_203] : memref<2x3x16x16xf32, #tpu.memory_space<vmem>>, vector<1x1x2x16xf32>
    %274 = vector.shape_cast %273 : vector<1x1x2x16xf32> to vector<2x16xf32>
    %cst_204 = arith.constant dense<0.000000e+00> : vector<2x16xf32>
    %275 = tpu.matmul %228, %68, %cst_204 {dimension_numbers = #tpu.dot_dimension_numbers<[1], [0], [0], [1], [0, 0, 1, 1], [], []>} : vector<2x16xf32>, vector<16x16xf32>, vector<2x16xf32> -> vector<2x16xf32>
    %276 = arith.addf %274, %275 : vector<2x16xf32>
    %277 = arith.negf %276 : vector<2x16xf32>
    %278 = math.exp %277 : vector<2x16xf32>
    %cst_205 = arith.constant 1.000000e+00 : f32
    %279 = vector.broadcast %cst_205 : f32 to vector<2x16xf32>
    %280 = arith.addf %279, %278 : vector<2x16xf32>
    %281 = arith.divf %279, %280 : vector<2x16xf32>
    %c1_206 = arith.constant 1 : index
    %c1_207 = arith.constant 1 : index
    %282 = arith.index_cast %271 : i32 to index
    %c0_208 = arith.constant 0 : index
    %283 = vector.load %arg8[%c1_206, %c1_207, %282, %c0_208] : memref<2x3x16x16xf32, #tpu.memory_space<vmem>>, vector<1x1x2x16xf32>
    %284 = vector.shape_cast %283 : vector<1x1x2x16xf32> to vector<2x16xf32>
    %cst_209 = arith.constant dense<0.000000e+00> : vector<2x16xf32>
    %285 = tpu.matmul %228, %70, %cst_209 {dimension_numbers = #tpu.dot_dimension_numbers<[1], [0], [0], [1], [0, 0, 1, 1], [], []>} : vector<2x16xf32>, vector<16x16xf32>, vector<2x16xf32> -> vector<2x16xf32>
    %286 = arith.addf %284, %285 : vector<2x16xf32>
    %287 = arith.negf %286 : vector<2x16xf32>
    %288 = math.exp %287 : vector<2x16xf32>
    %cst_210 = arith.constant 1.000000e+00 : f32
    %289 = vector.broadcast %cst_210 : f32 to vector<2x16xf32>
    %290 = arith.addf %289, %288 : vector<2x16xf32>
    %291 = arith.divf %289, %290 : vector<2x16xf32>
    %c1_211 = arith.constant 1 : index
    %c2_212 = arith.constant 2 : index
    %292 = arith.index_cast %271 : i32 to index
    %c0_213 = arith.constant 0 : index
    %293 = vector.load %arg8[%c1_211, %c2_212, %292, %c0_213] : memref<2x3x16x16xf32, #tpu.memory_space<vmem>>, vector<1x1x2x16xf32>
    %294 = vector.shape_cast %293 : vector<1x1x2x16xf32> to vector<2x16xf32>
    %cst_214 = arith.constant dense<0.000000e+00> : vector<2x16xf32>
    %295 = tpu.matmul %228, %72, %cst_214 {dimension_numbers = #tpu.dot_dimension_numbers<[1], [0], [0], [1], [0, 0, 1, 1], [], []>} : vector<2x16xf32>, vector<16x16xf32>, vector<2x16xf32> -> vector<2x16xf32>
    %296 = vector.broadcast %76 : vector<1x16xf32> to vector<2x16xf32>
    %297 = arith.addf %295, %296 : vector<2x16xf32>
    %298 = arith.mulf %281, %297 : vector<2x16xf32>
    %299 = arith.addf %294, %298 : vector<2x16xf32>
    %300 = math.tanh %299 : vector<2x16xf32>
    %cst_215 = arith.constant 1.000000e+00 : f32
    %301 = vector.broadcast %cst_215 : f32 to vector<2x16xf32>
    %302 = arith.subf %301, %291 : vector<2x16xf32>
    %303 = arith.mulf %302, %300 : vector<2x16xf32>
    %304 = arith.mulf %291, %228 : vector<2x16xf32>
    %305 = arith.addf %303, %304 : vector<2x16xf32>
    %c2_i32_216 = arith.constant 2 : i32
    %306 = arith.muli %270, %c2_i32_216 : i32
    %307 = arith.index_cast %306 : i32 to index
    %c0_217 = arith.constant 0 : index
    %308 = vector.load %arg10[%307, %c0_217] : memref<16x16xf32, #tpu.memory_space<vmem>>, vector<2x16xf32>
    tpu.vector_store %arg10[%307, %c0_217], %305 {strides = array<i32>} : memref<16x16xf32, #tpu.memory_space<vmem>>, vector<2x16xf32>,
    %c3_i32 = arith.constant 3 : i32
    %c2_i32_218 = arith.constant 2 : i32
    %309 = arith.muli %c3_i32, %c2_i32_218 : i32
    %c0_219 = arith.constant 0 : index
    %c0_220 = arith.constant 0 : index
    %310 = arith.index_cast %309 : i32 to index
    %c0_221 = arith.constant 0 : index
    %311 = vector.load %arg8[%c0_219, %c0_220, %310, %c0_221] : memref<2x3x16x16xf32, #tpu.memory_space<vmem>>, vector<1x1x2x16xf32>
    %312 = vector.shape_cast %311 : vector<1x1x2x16xf32> to vector<2x16xf32>
    %cst_222 = arith.constant dense<0.000000e+00> : vector<2x16xf32>
    %313 = tpu.matmul %266, %62, %cst_222 {dimension_numbers = #tpu.dot_dimension_numbers<[1], [0], [0], [1], [0, 0, 1, 1], [], []>} : vector<2x16xf32>, vector<16x16xf32>, vector<2x16xf32> -> vector<2x16xf32>
    %314 = arith.addf %312, %313 : vector<2x16xf32>
    %315 = arith.negf %314 : vector<2x16xf32>
    %316 = math.exp %315 : vector<2x16xf32>
    %cst_223 = arith.constant 1.000000e+00 : f32
    %317 = vector.broadcast %cst_223 : f32 to vector<2x16xf32>
    %318 = arith.addf %317, %316 : vector<2x16xf32>
    %319 = arith.divf %317, %318 : vector<2x16xf32>
    %c0_224 = arith.constant 0 : index
    %c1_225 = arith.constant 1 : index
    %320 = arith.index_cast %309 : i32 to index
    %c0_226 = arith.constant 0 : index
    %321 = vector.load %arg8[%c0_224, %c1_225, %320, %c0_226] : memref<2x3x16x16xf32, #tpu.memory_space<vmem>>, vector<1x1x2x16xf32>
    %322 = vector.shape_cast %321 : vector<1x1x2x16xf32> to vector<2x16xf32>
    %cst_227 = arith.constant dense<0.000000e+00> : vector<2x16xf32>
    %323 = tpu.matmul %266, %64, %cst_227 {dimension_numbers = #tpu.dot_dimension_numbers<[1], [0], [0], [1], [0, 0, 1, 1], [], []>} : vector<2x16xf32>, vector<16x16xf32>, vector<2x16xf32> -> vector<2x16xf32>
    %324 = arith.addf %322, %323 : vector<2x16xf32>
    %325 = arith.negf %324 : vector<2x16xf32>
    %326 = math.exp %325 : vector<2x16xf32>
    %cst_228 = arith.constant 1.000000e+00 : f32
    %327 = vector.broadcast %cst_228 : f32 to vector<2x16xf32>
    %328 = arith.addf %327, %326 : vector<2x16xf32>
    %329 = arith.divf %327, %328 : vector<2x16xf32>
    %c0_229 = arith.constant 0 : index
    %c2_230 = arith.constant 2 : index
    %330 = arith.index_cast %309 : i32 to index
    %c0_231 = arith.constant 0 : index
    %331 = vector.load %arg8[%c0_229, %c2_230, %330, %c0_231] : memref<2x3x16x16xf32, #tpu.memory_space<vmem>>, vector<1x1x2x16xf32>
    %332 = vector.shape_cast %331 : vector<1x1x2x16xf32> to vector<2x16xf32>
    %cst_232 = arith.constant dense<0.000000e+00> : vector<2x16xf32>
    %333 = tpu.matmul %266, %66, %cst_232 {dimension_numbers = #tpu.dot_dimension_numbers<[1], [0], [0], [1], [0, 0, 1, 1], [], []>} : vector<2x16xf32>, vector<16x16xf32>, vector<2x16xf32> -> vector<2x16xf32>
    %334 = vector.broadcast %74 : vector<1x16xf32> to vector<2x16xf32>
    %335 = arith.addf %333, %334 : vector<2x16xf32>
    %336 = arith.mulf %319, %335 : vector<2x16xf32>
    %337 = arith.addf %332, %336 : vector<2x16xf32>
    %338 = math.tanh %337 : vector<2x16xf32>
    %cst_233 = arith.constant 1.000000e+00 : f32
    %339 = vector.broadcast %cst_233 : f32 to vector<2x16xf32>
    %340 = arith.subf %339, %329 : vector<2x16xf32>
    %341 = arith.mulf %340, %338 : vector<2x16xf32>
    %342 = arith.mulf %329, %266 : vector<2x16xf32>
    %343 = arith.addf %341, %342 : vector<2x16xf32>
    %c2_i32_234 = arith.constant 2 : i32
    %344 = arith.muli %c3_i32, %c2_i32_234 : i32
    %345 = arith.index_cast %344 : i32 to index
    %c0_235 = arith.constant 0 : index
    %346 = vector.load %arg9[%345, %c0_235] : memref<16x16xf32, #tpu.memory_space<vmem>>, vector<2x16xf32>
    tpu.vector_store %arg9[%345, %c0_235], %343 {strides = array<i32>} : memref<16x16xf32, #tpu.memory_space<vmem>>, vector<2x16xf32>,
    %c7_i32_236 = arith.constant 7 : i32
    %347 = arith.subi %c7_i32_236, %c3_i32 : i32
    %c2_i32_237 = arith.constant 2 : i32
    %348 = arith.muli %347, %c2_i32_237 : i32
    %c1_238 = arith.constant 1 : index
    %c0_239 = arith.constant 0 : index
    %349 = arith.index_cast %348 : i32 to index
    %c0_240 = arith.constant 0 : index
    %350 = vector.load %arg8[%c1_238, %c0_239, %349, %c0_240] : memref<2x3x16x16xf32, #tpu.memory_space<vmem>>, vector<1x1x2x16xf32>
    %351 = vector.shape_cast %350 : vector<1x1x2x16xf32> to vector<2x16xf32>
    %cst_241 = arith.constant dense<0.000000e+00> : vector<2x16xf32>
    %352 = tpu.matmul %305, %68, %cst_241 {dimension_numbers = #tpu.dot_dimension_numbers<[1], [0], [0], [1], [0, 0, 1, 1], [], []>} : vector<2x16xf32>, vector<16x16xf32>, vector<2x16xf32> -> vector<2x16xf32>
    %353 = arith.addf %351, %352 : vector<2x16xf32>
    %354 = arith.negf %353 : vector<2x16xf32>
    %355 = math.exp %354 : vector<2x16xf32>
    %cst_242 = arith.constant 1.000000e+00 : f32
    %356 = vector.broadcast %cst_242 : f32 to vector<2x16xf32>
    %357 = arith.addf %356, %355 : vector<2x16xf32>
    %358 = arith.divf %356, %357 : vector<2x16xf32>
    %c1_243 = arith.constant 1 : index
    %c1_244 = arith.constant 1 : index
    %359 = arith.index_cast %348 : i32 to index
    %c0_245 = arith.constant 0 : index
    %360 = vector.load %arg8[%c1_243, %c1_244, %359, %c0_245] : memref<2x3x16x16xf32, #tpu.memory_space<vmem>>, vector<1x1x2x16xf32>
    %361 = vector.shape_cast %360 : vector<1x1x2x16xf32> to vector<2x16xf32>
    %cst_246 = arith.constant dense<0.000000e+00> : vector<2x16xf32>
    %362 = tpu.matmul %305, %70, %cst_246 {dimension_numbers = #tpu.dot_dimension_numbers<[1], [0], [0], [1], [0, 0, 1, 1], [], []>} : vector<2x16xf32>, vector<16x16xf32>, vector<2x16xf32> -> vector<2x16xf32>
    %363 = arith.addf %361, %362 : vector<2x16xf32>
    %364 = arith.negf %363 : vector<2x16xf32>
    %365 = math.exp %364 : vector<2x16xf32>
    %cst_247 = arith.constant 1.000000e+00 : f32
    %366 = vector.broadcast %cst_247 : f32 to vector<2x16xf32>
    %367 = arith.addf %366, %365 : vector<2x16xf32>
    %368 = arith.divf %366, %367 : vector<2x16xf32>
    %c1_248 = arith.constant 1 : index
    %c2_249 = arith.constant 2 : index
    %369 = arith.index_cast %348 : i32 to index
    %c0_250 = arith.constant 0 : index
    %370 = vector.load %arg8[%c1_248, %c2_249, %369, %c0_250] : memref<2x3x16x16xf32, #tpu.memory_space<vmem>>, vector<1x1x2x16xf32>
    %371 = vector.shape_cast %370 : vector<1x1x2x16xf32> to vector<2x16xf32>
    %cst_251 = arith.constant dense<0.000000e+00> : vector<2x16xf32>
    %372 = tpu.matmul %305, %72, %cst_251 {dimension_numbers = #tpu.dot_dimension_numbers<[1], [0], [0], [1], [0, 0, 1, 1], [], []>} : vector<2x16xf32>, vector<16x16xf32>, vector<2x16xf32> -> vector<2x16xf32>
    %373 = vector.broadcast %76 : vector<1x16xf32> to vector<2x16xf32>
    %374 = arith.addf %372, %373 : vector<2x16xf32>
    %375 = arith.mulf %358, %374 : vector<2x16xf32>
    %376 = arith.addf %371, %375 : vector<2x16xf32>
    %377 = math.tanh %376 : vector<2x16xf32>
    %cst_252 = arith.constant 1.000000e+00 : f32
    %378 = vector.broadcast %cst_252 : f32 to vector<2x16xf32>
    %379 = arith.subf %378, %368 : vector<2x16xf32>
    %380 = arith.mulf %379, %377 : vector<2x16xf32>
    %381 = arith.mulf %368, %305 : vector<2x16xf32>
    %382 = arith.addf %380, %381 : vector<2x16xf32>
    %c2_i32_253 = arith.constant 2 : i32
    %383 = arith.muli %347, %c2_i32_253 : i32
    %384 = arith.index_cast %383 : i32 to index
    %c0_254 = arith.constant 0 : index
    %385 = vector.load %arg10[%384, %c0_254] : memref<16x16xf32, #tpu.memory_space<vmem>>, vector<2x16xf32>
    tpu.vector_store %arg10[%384, %c0_254], %382 {strides = array<i32>} : memref<16x16xf32, #tpu.memory_space<vmem>>, vector<2x16xf32>,
    %c4_i32 = arith.constant 4 : i32
    %c2_i32_255 = arith.constant 2 : i32
    %386 = arith.muli %c4_i32, %c2_i32_255 : i32
    %c0_256 = arith.constant 0 : index
    %c0_257 = arith.constant 0 : index
    %387 = arith.index_cast %386 : i32 to index
    %c0_258 = arith.constant 0 : index
    %388 = vector.load %arg8[%c0_256, %c0_257, %387, %c0_258] : memref<2x3x16x16xf32, #tpu.memory_space<vmem>>, vector<1x1x2x16xf32>
    %389 = vector.shape_cast %388 : vector<1x1x2x16xf32> to vector<2x16xf32>
    %cst_259 = arith.constant dense<0.000000e+00> : vector<2x16xf32>
    %390 = tpu.matmul %343, %62, %cst_259 {dimension_numbers = #tpu.dot_dimension_numbers<[1], [0], [0], [1], [0, 0, 1, 1], [], []>} : vector<2x16xf32>, vector<16x16xf32>, vector<2x16xf32> -> vector<2x16xf32>
    %391 = arith.addf %389, %390 : vector<2x16xf32>
    %392 = arith.negf %391 : vector<2x16xf32>
    %393 = math.exp %392 : vector<2x16xf32>
    %cst_260 = arith.constant 1.000000e+00 : f32
    %394 = vector.broadcast %cst_260 : f32 to vector<2x16xf32>
    %395 = arith.addf %394, %393 : vector<2x16xf32>
    %396 = arith.divf %394, %395 : vector<2x16xf32>
    %c0_261 = arith.constant 0 : index
    %c1_262 = arith.constant 1 : index
    %397 = arith.index_cast %386 : i32 to index
    %c0_263 = arith.constant 0 : index
    %398 = vector.load %arg8[%c0_261, %c1_262, %397, %c0_263] : memref<2x3x16x16xf32, #tpu.memory_space<vmem>>, vector<1x1x2x16xf32>
    %399 = vector.shape_cast %398 : vector<1x1x2x16xf32> to vector<2x16xf32>
    %cst_264 = arith.constant dense<0.000000e+00> : vector<2x16xf32>
    %400 = tpu.matmul %343, %64, %cst_264 {dimension_numbers = #tpu.dot_dimension_numbers<[1], [0], [0], [1], [0, 0, 1, 1], [], []>} : vector<2x16xf32>, vector<16x16xf32>, vector<2x16xf32> -> vector<2x16xf32>
    %401 = arith.addf %399, %400 : vector<2x16xf32>
    %402 = arith.negf %401 : vector<2x16xf32>
    %403 = math.exp %402 : vector<2x16xf32>
    %cst_265 = arith.constant 1.000000e+00 : f32
    %404 = vector.broadcast %cst_265 : f32 to vector<2x16xf32>
    %405 = arith.addf %404, %403 : vector<2x16xf32>
    %406 = arith.divf %404, %405 : vector<2x16xf32>
    %c0_266 = arith.constant 0 : index
    %c2_267 = arith.constant 2 : index
    %407 = arith.index_cast %386 : i32 to index
    %c0_268 = arith.constant 0 : index
    %408 = vector.load %arg8[%c0_266, %c2_267, %407, %c0_268] : memref<2x3x16x16xf32, #tpu.memory_space<vmem>>, vector<1x1x2x16xf32>
    %409 = vector.shape_cast %408 : vector<1x1x2x16xf32> to vector<2x16xf32>
    %cst_269 = arith.constant dense<0.000000e+00> : vector<2x16xf32>
    %410 = tpu.matmul %343, %66, %cst_269 {dimension_numbers = #tpu.dot_dimension_numbers<[1], [0], [0], [1], [0, 0, 1, 1], [], []>} : vector<2x16xf32>, vector<16x16xf32>, vector<2x16xf32> -> vector<2x16xf32>
    %411 = vector.broadcast %74 : vector<1x16xf32> to vector<2x16xf32>
    %412 = arith.addf %410, %411 : vector<2x16xf32>
    %413 = arith.mulf %396, %412 : vector<2x16xf32>
    %414 = arith.addf %409, %413 : vector<2x16xf32>
    %415 = math.tanh %414 : vector<2x16xf32>
    %cst_270 = arith.constant 1.000000e+00 : f32
    %416 = vector.broadcast %cst_270 : f32 to vector<2x16xf32>
    %417 = arith.subf %416, %406 : vector<2x16xf32>
    %418 = arith.mulf %417, %415 : vector<2x16xf32>
    %419 = arith.mulf %406, %343 : vector<2x16xf32>
    %420 = arith.addf %418, %419 : vector<2x16xf32>
    %c2_i32_271 = arith.constant 2 : i32
    %421 = arith.muli %c4_i32, %c2_i32_271 : i32
    %422 = arith.index_cast %421 : i32 to index
    %c0_272 = arith.constant 0 : index
    %423 = vector.load %arg9[%422, %c0_272] : memref<16x16xf32, #tpu.memory_space<vmem>>, vector<2x16xf32>
    tpu.vector_store %arg9[%422, %c0_272], %420 {strides = array<i32>} : memref<16x16xf32, #tpu.memory_space<vmem>>, vector<2x16xf32>,
    %c7_i32_273 = arith.constant 7 : i32
    %424 = arith.subi %c7_i32_273, %c4_i32 : i32
    %c2_i32_274 = arith.constant 2 : i32
    %425 = arith.muli %424, %c2_i32_274 : i32
    %c1_275 = arith.constant 1 : index
    %c0_276 = arith.constant 0 : index
    %426 = arith.index_cast %425 : i32 to index
    %c0_277 = arith.constant 0 : index
    %427 = vector.load %arg8[%c1_275, %c0_276, %426, %c0_277] : memref<2x3x16x16xf32, #tpu.memory_space<vmem>>, vector<1x1x2x16xf32>
    %428 = vector.shape_cast %427 : vector<1x1x2x16xf32> to vector<2x16xf32>
    %cst_278 = arith.constant dense<0.000000e+00> : vector<2x16xf32>
    %429 = tpu.matmul %382, %68, %cst_278 {dimension_numbers = #tpu.dot_dimension_numbers<[1], [0], [0], [1], [0, 0, 1, 1], [], []>} : vector<2x16xf32>, vector<16x16xf32>, vector<2x16xf32> -> vector<2x16xf32>
    %430 = arith.addf %428, %429 : vector<2x16xf32>
    %431 = arith.negf %430 : vector<2x16xf32>
    %432 = math.exp %431 : vector<2x16xf32>
    %cst_279 = arith.constant 1.000000e+00 : f32
    %433 = vector.broadcast %cst_279 : f32 to vector<2x16xf32>
    %434 = arith.addf %433, %432 : vector<2x16xf32>
    %435 = arith.divf %433, %434 : vector<2x16xf32>
    %c1_280 = arith.constant 1 : index
    %c1_281 = arith.constant 1 : index
    %436 = arith.index_cast %425 : i32 to index
    %c0_282 = arith.constant 0 : index
    %437 = vector.load %arg8[%c1_280, %c1_281, %436, %c0_282] : memref<2x3x16x16xf32, #tpu.memory_space<vmem>>, vector<1x1x2x16xf32>
    %438 = vector.shape_cast %437 : vector<1x1x2x16xf32> to vector<2x16xf32>
    %cst_283 = arith.constant dense<0.000000e+00> : vector<2x16xf32>
    %439 = tpu.matmul %382, %70, %cst_283 {dimension_numbers = #tpu.dot_dimension_numbers<[1], [0], [0], [1], [0, 0, 1, 1], [], []>} : vector<2x16xf32>, vector<16x16xf32>, vector<2x16xf32> -> vector<2x16xf32>
    %440 = arith.addf %438, %439 : vector<2x16xf32>
    %441 = arith.negf %440 : vector<2x16xf32>
    %442 = math.exp %441 : vector<2x16xf32>
    %cst_284 = arith.constant 1.000000e+00 : f32
    %443 = vector.broadcast %cst_284 : f32 to vector<2x16xf32>
    %444 = arith.addf %443, %442 : vector<2x16xf32>
    %445 = arith.divf %443, %444 : vector<2x16xf32>
    %c1_285 = arith.constant 1 : index
    %c2_286 = arith.constant 2 : index
    %446 = arith.index_cast %425 : i32 to index
    %c0_287 = arith.constant 0 : index
    %447 = vector.load %arg8[%c1_285, %c2_286, %446, %c0_287] : memref<2x3x16x16xf32, #tpu.memory_space<vmem>>, vector<1x1x2x16xf32>
    %448 = vector.shape_cast %447 : vector<1x1x2x16xf32> to vector<2x16xf32>
    %cst_288 = arith.constant dense<0.000000e+00> : vector<2x16xf32>
    %449 = tpu.matmul %382, %72, %cst_288 {dimension_numbers = #tpu.dot_dimension_numbers<[1], [0], [0], [1], [0, 0, 1, 1], [], []>} : vector<2x16xf32>, vector<16x16xf32>, vector<2x16xf32> -> vector<2x16xf32>
    %450 = vector.broadcast %76 : vector<1x16xf32> to vector<2x16xf32>
    %451 = arith.addf %449, %450 : vector<2x16xf32>
    %452 = arith.mulf %435, %451 : vector<2x16xf32>
    %453 = arith.addf %448, %452 : vector<2x16xf32>
    %454 = math.tanh %453 : vector<2x16xf32>
    %cst_289 = arith.constant 1.000000e+00 : f32
    %455 = vector.broadcast %cst_289 : f32 to vector<2x16xf32>
    %456 = arith.subf %455, %445 : vector<2x16xf32>
    %457 = arith.mulf %456, %454 : vector<2x16xf32>
    %458 = arith.mulf %445, %382 : vector<2x16xf32>
    %459 = arith.addf %457, %458 : vector<2x16xf32>
    %c2_i32_290 = arith.constant 2 : i32
    %460 = arith.muli %424, %c2_i32_290 : i32
    %461 = arith.index_cast %460 : i32 to index
    %c0_291 = arith.constant 0 : index
    %462 = vector.load %arg10[%461, %c0_291] : memref<16x16xf32, #tpu.memory_space<vmem>>, vector<2x16xf32>
    tpu.vector_store %arg10[%461, %c0_291], %459 {strides = array<i32>} : memref<16x16xf32, #tpu.memory_space<vmem>>, vector<2x16xf32>,
    %c5_i32 = arith.constant 5 : i32
    %c2_i32_292 = arith.constant 2 : i32
    %463 = arith.muli %c5_i32, %c2_i32_292 : i32
    %c0_293 = arith.constant 0 : index
    %c0_294 = arith.constant 0 : index
    %464 = arith.index_cast %463 : i32 to index
    %c0_295 = arith.constant 0 : index
    %465 = vector.load %arg8[%c0_293, %c0_294, %464, %c0_295] : memref<2x3x16x16xf32, #tpu.memory_space<vmem>>, vector<1x1x2x16xf32>
    %466 = vector.shape_cast %465 : vector<1x1x2x16xf32> to vector<2x16xf32>
    %cst_296 = arith.constant dense<0.000000e+00> : vector<2x16xf32>
    %467 = tpu.matmul %420, %62, %cst_296 {dimension_numbers = #tpu.dot_dimension_numbers<[1], [0], [0], [1], [0, 0, 1, 1], [], []>} : vector<2x16xf32>, vector<16x16xf32>, vector<2x16xf32> -> vector<2x16xf32>
    %468 = arith.addf %466, %467 : vector<2x16xf32>
    %469 = arith.negf %468 : vector<2x16xf32>
    %470 = math.exp %469 : vector<2x16xf32>
    %cst_297 = arith.constant 1.000000e+00 : f32
    %471 = vector.broadcast %cst_297 : f32 to vector<2x16xf32>
    %472 = arith.addf %471, %470 : vector<2x16xf32>
    %473 = arith.divf %471, %472 : vector<2x16xf32>
    %c0_298 = arith.constant 0 : index
    %c1_299 = arith.constant 1 : index
    %474 = arith.index_cast %463 : i32 to index
    %c0_300 = arith.constant 0 : index
    %475 = vector.load %arg8[%c0_298, %c1_299, %474, %c0_300] : memref<2x3x16x16xf32, #tpu.memory_space<vmem>>, vector<1x1x2x16xf32>
    %476 = vector.shape_cast %475 : vector<1x1x2x16xf32> to vector<2x16xf32>
    %cst_301 = arith.constant dense<0.000000e+00> : vector<2x16xf32>
    %477 = tpu.matmul %420, %64, %cst_301 {dimension_numbers = #tpu.dot_dimension_numbers<[1], [0], [0], [1], [0, 0, 1, 1], [], []>} : vector<2x16xf32>, vector<16x16xf32>, vector<2x16xf32> -> vector<2x16xf32>
    %478 = arith.addf %476, %477 : vector<2x16xf32>
    %479 = arith.negf %478 : vector<2x16xf32>
    %480 = math.exp %479 : vector<2x16xf32>
    %cst_302 = arith.constant 1.000000e+00 : f32
    %481 = vector.broadcast %cst_302 : f32 to vector<2x16xf32>
    %482 = arith.addf %481, %480 : vector<2x16xf32>
    %483 = arith.divf %481, %482 : vector<2x16xf32>
    %c0_303 = arith.constant 0 : index
    %c2_304 = arith.constant 2 : index
    %484 = arith.index_cast %463 : i32 to index
    %c0_305 = arith.constant 0 : index
    %485 = vector.load %arg8[%c0_303, %c2_304, %484, %c0_305] : memref<2x3x16x16xf32, #tpu.memory_space<vmem>>, vector<1x1x2x16xf32>
    %486 = vector.shape_cast %485 : vector<1x1x2x16xf32> to vector<2x16xf32>
    %cst_306 = arith.constant dense<0.000000e+00> : vector<2x16xf32>
    %487 = tpu.matmul %420, %66, %cst_306 {dimension_numbers = #tpu.dot_dimension_numbers<[1], [0], [0], [1], [0, 0, 1, 1], [], []>} : vector<2x16xf32>, vector<16x16xf32>, vector<2x16xf32> -> vector<2x16xf32>
    %488 = vector.broadcast %74 : vector<1x16xf32> to vector<2x16xf32>
    %489 = arith.addf %487, %488 : vector<2x16xf32>
    %490 = arith.mulf %473, %489 : vector<2x16xf32>
    %491 = arith.addf %486, %490 : vector<2x16xf32>
    %492 = math.tanh %491 : vector<2x16xf32>
    %cst_307 = arith.constant 1.000000e+00 : f32
    %493 = vector.broadcast %cst_307 : f32 to vector<2x16xf32>
    %494 = arith.subf %493, %483 : vector<2x16xf32>
    %495 = arith.mulf %494, %492 : vector<2x16xf32>
    %496 = arith.mulf %483, %420 : vector<2x16xf32>
    %497 = arith.addf %495, %496 : vector<2x16xf32>
    %c2_i32_308 = arith.constant 2 : i32
    %498 = arith.muli %c5_i32, %c2_i32_308 : i32
    %499 = arith.index_cast %498 : i32 to index
    %c0_309 = arith.constant 0 : index
    %500 = vector.load %arg9[%499, %c0_309] : memref<16x16xf32, #tpu.memory_space<vmem>>, vector<2x16xf32>
    tpu.vector_store %arg9[%499, %c0_309], %497 {strides = array<i32>} : memref<16x16xf32, #tpu.memory_space<vmem>>, vector<2x16xf32>,
    %c7_i32_310 = arith.constant 7 : i32
    %501 = arith.subi %c7_i32_310, %c5_i32 : i32
    %c2_i32_311 = arith.constant 2 : i32
    %502 = arith.muli %501, %c2_i32_311 : i32
    %c1_312 = arith.constant 1 : index
    %c0_313 = arith.constant 0 : index
    %503 = arith.index_cast %502 : i32 to index
    %c0_314 = arith.constant 0 : index
    %504 = vector.load %arg8[%c1_312, %c0_313, %503, %c0_314] : memref<2x3x16x16xf32, #tpu.memory_space<vmem>>, vector<1x1x2x16xf32>
    %505 = vector.shape_cast %504 : vector<1x1x2x16xf32> to vector<2x16xf32>
    %cst_315 = arith.constant dense<0.000000e+00> : vector<2x16xf32>
    %506 = tpu.matmul %459, %68, %cst_315 {dimension_numbers = #tpu.dot_dimension_numbers<[1], [0], [0], [1], [0, 0, 1, 1], [], []>} : vector<2x16xf32>, vector<16x16xf32>, vector<2x16xf32> -> vector<2x16xf32>
    %507 = arith.addf %505, %506 : vector<2x16xf32>
    %508 = arith.negf %507 : vector<2x16xf32>
    %509 = math.exp %508 : vector<2x16xf32>
    %cst_316 = arith.constant 1.000000e+00 : f32
    %510 = vector.broadcast %cst_316 : f32 to vector<2x16xf32>
    %511 = arith.addf %510, %509 : vector<2x16xf32>
    %512 = arith.divf %510, %511 : vector<2x16xf32>
    %c1_317 = arith.constant 1 : index
    %c1_318 = arith.constant 1 : index
    %513 = arith.index_cast %502 : i32 to index
    %c0_319 = arith.constant 0 : index
    %514 = vector.load %arg8[%c1_317, %c1_318, %513, %c0_319] : memref<2x3x16x16xf32, #tpu.memory_space<vmem>>, vector<1x1x2x16xf32>
    %515 = vector.shape_cast %514 : vector<1x1x2x16xf32> to vector<2x16xf32>
    %cst_320 = arith.constant dense<0.000000e+00> : vector<2x16xf32>
    %516 = tpu.matmul %459, %70, %cst_320 {dimension_numbers = #tpu.dot_dimension_numbers<[1], [0], [0], [1], [0, 0, 1, 1], [], []>} : vector<2x16xf32>, vector<16x16xf32>, vector<2x16xf32> -> vector<2x16xf32>
    %517 = arith.addf %515, %516 : vector<2x16xf32>
    %518 = arith.negf %517 : vector<2x16xf32>
    %519 = math.exp %518 : vector<2x16xf32>
    %cst_321 = arith.constant 1.000000e+00 : f32
    %520 = vector.broadcast %cst_321 : f32 to vector<2x16xf32>
    %521 = arith.addf %520, %519 : vector<2x16xf32>
    %522 = arith.divf %520, %521 : vector<2x16xf32>
    %c1_322 = arith.constant 1 : index
    %c2_323 = arith.constant 2 : index
    %523 = arith.index_cast %502 : i32 to index
    %c0_324 = arith.constant 0 : index
    %524 = vector.load %arg8[%c1_322, %c2_323, %523, %c0_324] : memref<2x3x16x16xf32, #tpu.memory_space<vmem>>, vector<1x1x2x16xf32>
    %525 = vector.shape_cast %524 : vector<1x1x2x16xf32> to vector<2x16xf32>
    %cst_325 = arith.constant dense<0.000000e+00> : vector<2x16xf32>
    %526 = tpu.matmul %459, %72, %cst_325 {dimension_numbers = #tpu.dot_dimension_numbers<[1], [0], [0], [1], [0, 0, 1, 1], [], []>} : vector<2x16xf32>, vector<16x16xf32>, vector<2x16xf32> -> vector<2x16xf32>
    %527 = vector.broadcast %76 : vector<1x16xf32> to vector<2x16xf32>
    %528 = arith.addf %526, %527 : vector<2x16xf32>
    %529 = arith.mulf %512, %528 : vector<2x16xf32>
    %530 = arith.addf %525, %529 : vector<2x16xf32>
    %531 = math.tanh %530 : vector<2x16xf32>
    %cst_326 = arith.constant 1.000000e+00 : f32
    %532 = vector.broadcast %cst_326 : f32 to vector<2x16xf32>
    %533 = arith.subf %532, %522 : vector<2x16xf32>
    %534 = arith.mulf %533, %531 : vector<2x16xf32>
    %535 = arith.mulf %522, %459 : vector<2x16xf32>
    %536 = arith.addf %534, %535 : vector<2x16xf32>
    %c2_i32_327 = arith.constant 2 : i32
    %537 = arith.muli %501, %c2_i32_327 : i32
    %538 = arith.index_cast %537 : i32 to index
    %c0_328 = arith.constant 0 : index
    %539 = vector.load %arg10[%538, %c0_328] : memref<16x16xf32, #tpu.memory_space<vmem>>, vector<2x16xf32>
    tpu.vector_store %arg10[%538, %c0_328], %536 {strides = array<i32>} : memref<16x16xf32, #tpu.memory_space<vmem>>, vector<2x16xf32>,
    %c6_i32 = arith.constant 6 : i32
    %c2_i32_329 = arith.constant 2 : i32
    %540 = arith.muli %c6_i32, %c2_i32_329 : i32
    %c0_330 = arith.constant 0 : index
    %c0_331 = arith.constant 0 : index
    %541 = arith.index_cast %540 : i32 to index
    %c0_332 = arith.constant 0 : index
    %542 = vector.load %arg8[%c0_330, %c0_331, %541, %c0_332] : memref<2x3x16x16xf32, #tpu.memory_space<vmem>>, vector<1x1x2x16xf32>
    %543 = vector.shape_cast %542 : vector<1x1x2x16xf32> to vector<2x16xf32>
    %cst_333 = arith.constant dense<0.000000e+00> : vector<2x16xf32>
    %544 = tpu.matmul %497, %62, %cst_333 {dimension_numbers = #tpu.dot_dimension_numbers<[1], [0], [0], [1], [0, 0, 1, 1], [], []>} : vector<2x16xf32>, vector<16x16xf32>, vector<2x16xf32> -> vector<2x16xf32>
    %545 = arith.addf %543, %544 : vector<2x16xf32>
    %546 = arith.negf %545 : vector<2x16xf32>
    %547 = math.exp %546 : vector<2x16xf32>
    %cst_334 = arith.constant 1.000000e+00 : f32
    %548 = vector.broadcast %cst_334 : f32 to vector<2x16xf32>
    %549 = arith.addf %548, %547 : vector<2x16xf32>
    %550 = arith.divf %548, %549 : vector<2x16xf32>
    %c0_335 = arith.constant 0 : index
    %c1_336 = arith.constant 1 : index
    %551 = arith.index_cast %540 : i32 to index
    %c0_337 = arith.constant 0 : index
    %552 = vector.load %arg8[%c0_335, %c1_336, %551, %c0_337] : memref<2x3x16x16xf32, #tpu.memory_space<vmem>>, vector<1x1x2x16xf32>
    %553 = vector.shape_cast %552 : vector<1x1x2x16xf32> to vector<2x16xf32>
    %cst_338 = arith.constant dense<0.000000e+00> : vector<2x16xf32>
    %554 = tpu.matmul %497, %64, %cst_338 {dimension_numbers = #tpu.dot_dimension_numbers<[1], [0], [0], [1], [0, 0, 1, 1], [], []>} : vector<2x16xf32>, vector<16x16xf32>, vector<2x16xf32> -> vector<2x16xf32>
    %555 = arith.addf %553, %554 : vector<2x16xf32>
    %556 = arith.negf %555 : vector<2x16xf32>
    %557 = math.exp %556 : vector<2x16xf32>
    %cst_339 = arith.constant 1.000000e+00 : f32
    %558 = vector.broadcast %cst_339 : f32 to vector<2x16xf32>
    %559 = arith.addf %558, %557 : vector<2x16xf32>
    %560 = arith.divf %558, %559 : vector<2x16xf32>
    %c0_340 = arith.constant 0 : index
    %c2_341 = arith.constant 2 : index
    %561 = arith.index_cast %540 : i32 to index
    %c0_342 = arith.constant 0 : index
    %562 = vector.load %arg8[%c0_340, %c2_341, %561, %c0_342] : memref<2x3x16x16xf32, #tpu.memory_space<vmem>>, vector<1x1x2x16xf32>
    %563 = vector.shape_cast %562 : vector<1x1x2x16xf32> to vector<2x16xf32>
    %cst_343 = arith.constant dense<0.000000e+00> : vector<2x16xf32>
    %564 = tpu.matmul %497, %66, %cst_343 {dimension_numbers = #tpu.dot_dimension_numbers<[1], [0], [0], [1], [0, 0, 1, 1], [], []>} : vector<2x16xf32>, vector<16x16xf32>, vector<2x16xf32> -> vector<2x16xf32>
    %565 = vector.broadcast %74 : vector<1x16xf32> to vector<2x16xf32>
    %566 = arith.addf %564, %565 : vector<2x16xf32>
    %567 = arith.mulf %550, %566 : vector<2x16xf32>
    %568 = arith.addf %563, %567 : vector<2x16xf32>
    %569 = math.tanh %568 : vector<2x16xf32>
    %cst_344 = arith.constant 1.000000e+00 : f32
    %570 = vector.broadcast %cst_344 : f32 to vector<2x16xf32>
    %571 = arith.subf %570, %560 : vector<2x16xf32>
    %572 = arith.mulf %571, %569 : vector<2x16xf32>
    %573 = arith.mulf %560, %497 : vector<2x16xf32>
    %574 = arith.addf %572, %573 : vector<2x16xf32>
    %c2_i32_345 = arith.constant 2 : i32
    %575 = arith.muli %c6_i32, %c2_i32_345 : i32
    %576 = arith.index_cast %575 : i32 to index
    %c0_346 = arith.constant 0 : index
    %577 = vector.load %arg9[%576, %c0_346] : memref<16x16xf32, #tpu.memory_space<vmem>>, vector<2x16xf32>
    tpu.vector_store %arg9[%576, %c0_346], %574 {strides = array<i32>} : memref<16x16xf32, #tpu.memory_space<vmem>>, vector<2x16xf32>,
    %c7_i32_347 = arith.constant 7 : i32
    %578 = arith.subi %c7_i32_347, %c6_i32 : i32
    %c2_i32_348 = arith.constant 2 : i32
    %579 = arith.muli %578, %c2_i32_348 : i32
    %c1_349 = arith.constant 1 : index
    %c0_350 = arith.constant 0 : index
    %580 = arith.index_cast %579 : i32 to index
    %c0_351 = arith.constant 0 : index
    %581 = vector.load %arg8[%c1_349, %c0_350, %580, %c0_351] : memref<2x3x16x16xf32, #tpu.memory_space<vmem>>, vector<1x1x2x16xf32>
    %582 = vector.shape_cast %581 : vector<1x1x2x16xf32> to vector<2x16xf32>
    %cst_352 = arith.constant dense<0.000000e+00> : vector<2x16xf32>
    %583 = tpu.matmul %536, %68, %cst_352 {dimension_numbers = #tpu.dot_dimension_numbers<[1], [0], [0], [1], [0, 0, 1, 1], [], []>} : vector<2x16xf32>, vector<16x16xf32>, vector<2x16xf32> -> vector<2x16xf32>
    %584 = arith.addf %582, %583 : vector<2x16xf32>
    %585 = arith.negf %584 : vector<2x16xf32>
    %586 = math.exp %585 : vector<2x16xf32>
    %cst_353 = arith.constant 1.000000e+00 : f32
    %587 = vector.broadcast %cst_353 : f32 to vector<2x16xf32>
    %588 = arith.addf %587, %586 : vector<2x16xf32>
    %589 = arith.divf %587, %588 : vector<2x16xf32>
    %c1_354 = arith.constant 1 : index
    %c1_355 = arith.constant 1 : index
    %590 = arith.index_cast %579 : i32 to index
    %c0_356 = arith.constant 0 : index
    %591 = vector.load %arg8[%c1_354, %c1_355, %590, %c0_356] : memref<2x3x16x16xf32, #tpu.memory_space<vmem>>, vector<1x1x2x16xf32>
    %592 = vector.shape_cast %591 : vector<1x1x2x16xf32> to vector<2x16xf32>
    %cst_357 = arith.constant dense<0.000000e+00> : vector<2x16xf32>
    %593 = tpu.matmul %536, %70, %cst_357 {dimension_numbers = #tpu.dot_dimension_numbers<[1], [0], [0], [1], [0, 0, 1, 1], [], []>} : vector<2x16xf32>, vector<16x16xf32>, vector<2x16xf32> -> vector<2x16xf32>
    %594 = arith.addf %592, %593 : vector<2x16xf32>
    %595 = arith.negf %594 : vector<2x16xf32>
    %596 = math.exp %595 : vector<2x16xf32>
    %cst_358 = arith.constant 1.000000e+00 : f32
    %597 = vector.broadcast %cst_358 : f32 to vector<2x16xf32>
    %598 = arith.addf %597, %596 : vector<2x16xf32>
    %599 = arith.divf %597, %598 : vector<2x16xf32>
    %c1_359 = arith.constant 1 : index
    %c2_360 = arith.constant 2 : index
    %600 = arith.index_cast %579 : i32 to index
    %c0_361 = arith.constant 0 : index
    %601 = vector.load %arg8[%c1_359, %c2_360, %600, %c0_361] : memref<2x3x16x16xf32, #tpu.memory_space<vmem>>, vector<1x1x2x16xf32>
    %602 = vector.shape_cast %601 : vector<1x1x2x16xf32> to vector<2x16xf32>
    %cst_362 = arith.constant dense<0.000000e+00> : vector<2x16xf32>
    %603 = tpu.matmul %536, %72, %cst_362 {dimension_numbers = #tpu.dot_dimension_numbers<[1], [0], [0], [1], [0, 0, 1, 1], [], []>} : vector<2x16xf32>, vector<16x16xf32>, vector<2x16xf32> -> vector<2x16xf32>
    %604 = vector.broadcast %76 : vector<1x16xf32> to vector<2x16xf32>
    %605 = arith.addf %603, %604 : vector<2x16xf32>
    %606 = arith.mulf %589, %605 : vector<2x16xf32>
    %607 = arith.addf %602, %606 : vector<2x16xf32>
    %608 = math.tanh %607 : vector<2x16xf32>
    %cst_363 = arith.constant 1.000000e+00 : f32
    %609 = vector.broadcast %cst_363 : f32 to vector<2x16xf32>
    %610 = arith.subf %609, %599 : vector<2x16xf32>
    %611 = arith.mulf %610, %608 : vector<2x16xf32>
    %612 = arith.mulf %599, %536 : vector<2x16xf32>
    %613 = arith.addf %611, %612 : vector<2x16xf32>
    %c2_i32_364 = arith.constant 2 : i32
    %614 = arith.muli %578, %c2_i32_364 : i32
    %615 = arith.index_cast %614 : i32 to index
    %c0_365 = arith.constant 0 : index
    %616 = vector.load %arg10[%615, %c0_365] : memref<16x16xf32, #tpu.memory_space<vmem>>, vector<2x16xf32>
    tpu.vector_store %arg10[%615, %c0_365], %613 {strides = array<i32>} : memref<16x16xf32, #tpu.memory_space<vmem>>, vector<2x16xf32>,
    %c7_i32_366 = arith.constant 7 : i32
    %c2_i32_367 = arith.constant 2 : i32
    %617 = arith.muli %c7_i32_366, %c2_i32_367 : i32
    %c0_368 = arith.constant 0 : index
    %c0_369 = arith.constant 0 : index
    %618 = arith.index_cast %617 : i32 to index
    %c0_370 = arith.constant 0 : index
    %619 = vector.load %arg8[%c0_368, %c0_369, %618, %c0_370] : memref<2x3x16x16xf32, #tpu.memory_space<vmem>>, vector<1x1x2x16xf32>
    %620 = vector.shape_cast %619 : vector<1x1x2x16xf32> to vector<2x16xf32>
    %cst_371 = arith.constant dense<0.000000e+00> : vector<2x16xf32>
    %621 = tpu.matmul %574, %62, %cst_371 {dimension_numbers = #tpu.dot_dimension_numbers<[1], [0], [0], [1], [0, 0, 1, 1], [], []>} : vector<2x16xf32>, vector<16x16xf32>, vector<2x16xf32> -> vector<2x16xf32>
    %622 = arith.addf %620, %621 : vector<2x16xf32>
    %623 = arith.negf %622 : vector<2x16xf32>
    %624 = math.exp %623 : vector<2x16xf32>
    %cst_372 = arith.constant 1.000000e+00 : f32
    %625 = vector.broadcast %cst_372 : f32 to vector<2x16xf32>
    %626 = arith.addf %625, %624 : vector<2x16xf32>
    %627 = arith.divf %625, %626 : vector<2x16xf32>
    %c0_373 = arith.constant 0 : index
    %c1_374 = arith.constant 1 : index
    %628 = arith.index_cast %617 : i32 to index
    %c0_375 = arith.constant 0 : index
    %629 = vector.load %arg8[%c0_373, %c1_374, %628, %c0_375] : memref<2x3x16x16xf32, #tpu.memory_space<vmem>>, vector<1x1x2x16xf32>
    %630 = vector.shape_cast %629 : vector<1x1x2x16xf32> to vector<2x16xf32>
    %cst_376 = arith.constant dense<0.000000e+00> : vector<2x16xf32>
    %631 = tpu.matmul %574, %64, %cst_376 {dimension_numbers = #tpu.dot_dimension_numbers<[1], [0], [0], [1], [0, 0, 1, 1], [], []>} : vector<2x16xf32>, vector<16x16xf32>, vector<2x16xf32> -> vector<2x16xf32>
    %632 = arith.addf %630, %631 : vector<2x16xf32>
    %633 = arith.negf %632 : vector<2x16xf32>
    %634 = math.exp %633 : vector<2x16xf32>
    %cst_377 = arith.constant 1.000000e+00 : f32
    %635 = vector.broadcast %cst_377 : f32 to vector<2x16xf32>
    %636 = arith.addf %635, %634 : vector<2x16xf32>
    %637 = arith.divf %635, %636 : vector<2x16xf32>
    %c0_378 = arith.constant 0 : index
    %c2_379 = arith.constant 2 : index
    %638 = arith.index_cast %617 : i32 to index
    %c0_380 = arith.constant 0 : index
    %639 = vector.load %arg8[%c0_378, %c2_379, %638, %c0_380] : memref<2x3x16x16xf32, #tpu.memory_space<vmem>>, vector<1x1x2x16xf32>
    %640 = vector.shape_cast %639 : vector<1x1x2x16xf32> to vector<2x16xf32>
    %cst_381 = arith.constant dense<0.000000e+00> : vector<2x16xf32>
    %641 = tpu.matmul %574, %66, %cst_381 {dimension_numbers = #tpu.dot_dimension_numbers<[1], [0], [0], [1], [0, 0, 1, 1], [], []>} : vector<2x16xf32>, vector<16x16xf32>, vector<2x16xf32> -> vector<2x16xf32>
    %642 = vector.broadcast %74 : vector<1x16xf32> to vector<2x16xf32>
    %643 = arith.addf %641, %642 : vector<2x16xf32>
    %644 = arith.mulf %627, %643 : vector<2x16xf32>
    %645 = arith.addf %640, %644 : vector<2x16xf32>
    %646 = math.tanh %645 : vector<2x16xf32>
    %cst_382 = arith.constant 1.000000e+00 : f32
    %647 = vector.broadcast %cst_382 : f32 to vector<2x16xf32>
    %648 = arith.subf %647, %637 : vector<2x16xf32>
    %649 = arith.mulf %648, %646 : vector<2x16xf32>
    %650 = arith.mulf %637, %574 : vector<2x16xf32>
    %651 = arith.addf %649, %650 : vector<2x16xf32>
    %c2_i32_383 = arith.constant 2 : i32
    %652 = arith.muli %c7_i32_366, %c2_i32_383 : i32
    %653 = arith.index_cast %652 : i32 to index
    %c0_384 = arith.constant 0 : index
    %654 = vector.load %arg9[%653, %c0_384] : memref<16x16xf32, #tpu.memory_space<vmem>>, vector<2x16xf32>
    tpu.vector_store %arg9[%653, %c0_384], %651 {strides = array<i32>} : memref<16x16xf32, #tpu.memory_space<vmem>>, vector<2x16xf32>,
    %c7_i32_385 = arith.constant 7 : i32
    %655 = arith.subi %c7_i32_385, %c7_i32_366 : i32
    %c2_i32_386 = arith.constant 2 : i32
    %656 = arith.muli %655, %c2_i32_386 : i32
    %c1_387 = arith.constant 1 : index
    %c0_388 = arith.constant 0 : index
    %657 = arith.index_cast %656 : i32 to index
    %c0_389 = arith.constant 0 : index
    %658 = vector.load %arg8[%c1_387, %c0_388, %657, %c0_389] : memref<2x3x16x16xf32, #tpu.memory_space<vmem>>, vector<1x1x2x16xf32>
    %659 = vector.shape_cast %658 : vector<1x1x2x16xf32> to vector<2x16xf32>
    %cst_390 = arith.constant dense<0.000000e+00> : vector<2x16xf32>
    %660 = tpu.matmul %613, %68, %cst_390 {dimension_numbers = #tpu.dot_dimension_numbers<[1], [0], [0], [1], [0, 0, 1, 1], [], []>} : vector<2x16xf32>, vector<16x16xf32>, vector<2x16xf32> -> vector<2x16xf32>
    %661 = arith.addf %659, %660 : vector<2x16xf32>
    %662 = arith.negf %661 : vector<2x16xf32>
    %663 = math.exp %662 : vector<2x16xf32>
    %cst_391 = arith.constant 1.000000e+00 : f32
    %664 = vector.broadcast %cst_391 : f32 to vector<2x16xf32>
    %665 = arith.addf %664, %663 : vector<2x16xf32>
    %666 = arith.divf %664, %665 : vector<2x16xf32>
    %c1_392 = arith.constant 1 : index
    %c1_393 = arith.constant 1 : index
    %667 = arith.index_cast %656 : i32 to index
    %c0_394 = arith.constant 0 : index
    %668 = vector.load %arg8[%c1_392, %c1_393, %667, %c0_394] : memref<2x3x16x16xf32, #tpu.memory_space<vmem>>, vector<1x1x2x16xf32>
    %669 = vector.shape_cast %668 : vector<1x1x2x16xf32> to vector<2x16xf32>
    %cst_395 = arith.constant dense<0.000000e+00> : vector<2x16xf32>
    %670 = tpu.matmul %613, %70, %cst_395 {dimension_numbers = #tpu.dot_dimension_numbers<[1], [0], [0], [1], [0, 0, 1, 1], [], []>} : vector<2x16xf32>, vector<16x16xf32>, vector<2x16xf32> -> vector<2x16xf32>
    %671 = arith.addf %669, %670 : vector<2x16xf32>
    %672 = arith.negf %671 : vector<2x16xf32>
    %673 = math.exp %672 : vector<2x16xf32>
    %cst_396 = arith.constant 1.000000e+00 : f32
    %674 = vector.broadcast %cst_396 : f32 to vector<2x16xf32>
    %675 = arith.addf %674, %673 : vector<2x16xf32>
    %676 = arith.divf %674, %675 : vector<2x16xf32>
    %c1_397 = arith.constant 1 : index
    %c2_398 = arith.constant 2 : index
    %677 = arith.index_cast %656 : i32 to index
    %c0_399 = arith.constant 0 : index
    %678 = vector.load %arg8[%c1_397, %c2_398, %677, %c0_399] : memref<2x3x16x16xf32, #tpu.memory_space<vmem>>, vector<1x1x2x16xf32>
    %679 = vector.shape_cast %678 : vector<1x1x2x16xf32> to vector<2x16xf32>
    %cst_400 = arith.constant dense<0.000000e+00> : vector<2x16xf32>
    %680 = tpu.matmul %613, %72, %cst_400 {dimension_numbers = #tpu.dot_dimension_numbers<[1], [0], [0], [1], [0, 0, 1, 1], [], []>} : vector<2x16xf32>, vector<16x16xf32>, vector<2x16xf32> -> vector<2x16xf32>
    %681 = vector.broadcast %76 : vector<1x16xf32> to vector<2x16xf32>
    %682 = arith.addf %680, %681 : vector<2x16xf32>
    %683 = arith.mulf %666, %682 : vector<2x16xf32>
    %684 = arith.addf %679, %683 : vector<2x16xf32>
    %685 = math.tanh %684 : vector<2x16xf32>
    %cst_401 = arith.constant 1.000000e+00 : f32
    %686 = vector.broadcast %cst_401 : f32 to vector<2x16xf32>
    %687 = arith.subf %686, %676 : vector<2x16xf32>
    %688 = arith.mulf %687, %685 : vector<2x16xf32>
    %689 = arith.mulf %676, %613 : vector<2x16xf32>
    %690 = arith.addf %688, %689 : vector<2x16xf32>
    %c2_i32_402 = arith.constant 2 : i32
    %691 = arith.muli %655, %c2_i32_402 : i32
    %692 = arith.index_cast %691 : i32 to index
    %c0_403 = arith.constant 0 : index
    %693 = vector.load %arg10[%692, %c0_403] : memref<16x16xf32, #tpu.memory_space<vmem>>, vector<2x16xf32>
    tpu.vector_store %arg10[%692, %c0_403], %690 {strides = array<i32>} : memref<16x16xf32, #tpu.memory_space<vmem>>, vector<2x16xf32>,
    %c8_i32 = arith.constant 8 : i32
    %c0_404 = arith.constant 0 : index
    %c0_405 = arith.constant 0 : index
    %694 = vector.load %arg9[%c0_404, %c0_405] : memref<16x16xf32, #tpu.memory_space<vmem>>, vector<16x16xf32>
    %c0_406 = arith.constant 0 : index
    %c0_407 = arith.constant 0 : index
    %695 = vector.load %arg4[%c0_406, %c0_407] : memref<16x4xf32, #tpu.memory_space<vmem>>, vector<16x4xf32>
    %cst_408 = arith.constant dense<0.000000e+00> : vector<16x4xf32>
    %696 = tpu.matmul %694, %695, %cst_408 {dimension_numbers = #tpu.dot_dimension_numbers<[1], [0], [0], [1], [0, 0, 1, 1], [], []>} : vector<16x16xf32>, vector<16x4xf32>, vector<16x4xf32> -> vector<16x4xf32>
    %c0_409 = arith.constant 0 : index
    %c0_410 = arith.constant 0 : index
    %697 = vector.load %arg10[%c0_409, %c0_410] : memref<16x16xf32, #tpu.memory_space<vmem>>, vector<16x16xf32>
    %c0_411 = arith.constant 0 : index
    %c0_412 = arith.constant 0 : index
    %698 = vector.load %arg5[%c0_411, %c0_412] : memref<16x4xf32, #tpu.memory_space<vmem>>, vector<16x4xf32>
    %cst_413 = arith.constant dense<0.000000e+00> : vector<16x4xf32>
    %699 = tpu.matmul %697, %698, %cst_413 {dimension_numbers = #tpu.dot_dimension_numbers<[1], [0], [0], [1], [0, 0, 1, 1], [], []>} : vector<16x16xf32>, vector<16x4xf32>, vector<16x4xf32> -> vector<16x4xf32>
    %700 = arith.addf %696, %699 : vector<16x4xf32>
    %c0_414 = arith.constant 0 : index
    %c0_415 = arith.constant 0 : index
    %701 = vector.load %arg6[%c0_414, %c0_415] : memref<1x4xf32, #tpu.memory_space<vmem>>, vector<1x4xf32>
    %702 = vector.broadcast %701 : vector<1x4xf32> to vector<16x4xf32>
    %703 = arith.addf %700, %702 : vector<16x4xf32>
    %704 = arith.negf %703 : vector<16x4xf32>
    %705 = math.exp %704 : vector<16x4xf32>
    %cst_416 = arith.constant 1.000000e+00 : f32
    %706 = vector.broadcast %cst_416 : f32 to vector<16x4xf32>
    %707 = arith.addf %706, %705 : vector<16x4xf32>
    %708 = arith.divf %706, %707 : vector<16x4xf32>
    %c0_417 = arith.constant 0 : index
    %c0_418 = arith.constant 0 : index
    %709 = vector.load %arg7[%c0_417, %c0_418] : memref<16x4xf32, #tpu.memory_space<vmem>>, vector<16x4xf32>
    tpu.vector_store %arg7[%c0_417, %c0_418], %708 {strides = array<i32>} : memref<16x4xf32, #tpu.memory_space<vmem>>, vector<16x4xf32>,
    return
  }
}

module attributes {stable_mosaic.version = 11 : i64} {
  func.func @gate_kernel(%arg0: i32, %arg1: memref<1x4x8x1xf32, #tpu.memory_space<vmem>>, %arg2: memref<1x4x8x256xf32, #tpu.memory_space<vmem>>, %arg3: memref<1x4x8x256xf32, #tpu.memory_space<vmem>>) attributes {dimension_semantics = [#tpu.dimension_semantics<parallel>], iteration_bounds = array<i64: 2>, scalar_prefetch = 0 : i64, scratch_operands = 0 : i64, tpu.core_type = #tpu.core_type<tc>, window_params = [{transform_indices = @transform_0, window_bounds = array<i64: 1, 4, 8, 1>}, {transform_indices = @transform_1, window_bounds = array<i64: 1, 4, 8, 256>}, {transform_indices = @transform_2, window_bounds = array<i64: 1, 4, 8, 256>}]} {
    %c0 = arith.constant 0 : index
    %c0_0 = arith.constant 0 : index
    %c0_1 = arith.constant 0 : index
    %c0_2 = arith.constant 0 : index
    %0 = vector.load %arg2[%c0, %c0_0, %c0_1, %c0_2] : memref<1x4x8x256xf32, #tpu.memory_space<vmem>>, vector<1x4x8x256xf32>
    %c0_3 = arith.constant 0 : index
    %c0_4 = arith.constant 0 : index
    %c0_5 = arith.constant 0 : index
    %c0_6 = arith.constant 0 : index
    %1 = vector.load %arg1[%c0_3, %c0_4, %c0_5, %c0_6] : memref<1x4x8x1xf32, #tpu.memory_space<vmem>>, vector<1x4x8x1xf32>
    %2 = vector.broadcast %1 : vector<1x4x8x1xf32> to vector<1x4x8x256xf32>
    %3 = arith.mulf %0, %2 : vector<1x4x8x256xf32>
    %c0_7 = arith.constant 0 : index
    %c0_8 = arith.constant 0 : index
    %c0_9 = arith.constant 0 : index
    %c0_10 = arith.constant 0 : index
    %4 = vector.load %arg3[%c0_7, %c0_8, %c0_9, %c0_10] : memref<1x4x8x256xf32, #tpu.memory_space<vmem>>, vector<1x4x8x256xf32>
    tpu.vector_store %arg3[%c0_7, %c0_8, %c0_9, %c0_10], %3 {strides = array<i32>} : memref<1x4x8x256xf32, #tpu.memory_space<vmem>>, vector<1x4x8x256xf32>,
    return
  }
  func.func @transform_0(%arg0: i32) -> (i32, i32, i32, i32) {
    %c0_i32 = arith.constant 0 : i32
    %c0_i32_0 = arith.constant 0 : i32
    %c0_i32_1 = arith.constant 0 : i32
    %c0_i32_2 = arith.constant 0 : i32
    return %arg0, %c0_i32, %c0_i32_0, %c0_i32_1 : i32, i32, i32, i32
  }
  func.func @transform_1(%arg0: i32) -> (i32, i32, i32, i32) {
    %c0_i32 = arith.constant 0 : i32
    %c0_i32_0 = arith.constant 0 : i32
    %c0_i32_1 = arith.constant 0 : i32
    %c0_i32_2 = arith.constant 0 : i32
    return %arg0, %c0_i32, %c0_i32_0, %c0_i32_1 : i32, i32, i32, i32
  }
  func.func @transform_2(%arg0: i32) -> (i32, i32, i32, i32) {
    %c0_i32 = arith.constant 0 : i32
    %c0_i32_0 = arith.constant 0 : i32
    %c0_i32_1 = arith.constant 0 : i32
    %c0_i32_2 = arith.constant 0 : i32
    return %arg0, %c0_i32, %c0_i32_0, %c0_i32_1 : i32, i32, i32, i32
  }
}

</mosaic_0001>

<llo_original>
// kernel: rnn_attention_pallas.5
$region0: #{rnn_attention_pallas.5}
  #allocation0 [shape = 'u32[]', space=smem, size = 0x4, offset = 0x4, fixed_abs, tag = 'smem constant byte address 0x4 - core index']
  #allocation1 [shape = 'u32[72,128]{1,0:T(1,128)}', space=vmem, size = 0x9000, scoped, tag = 'internal scratch']
  %s0 = inlined_call_operand.vmem [shape: f32[2,4,8,1], index: 0, kind: input, shape index: {}]
  %s1 = inlined_call_operand.vmem [shape: f32[2,4,8,256], index: 1, kind: input, shape index: {}]
  %s2 = inlined_call_operand.vmem [shape: f32[2,4,8,256], index: 2, kind: output, shape index: {}]
  %s3 = sld [smem:[#allocation0]]
  $region41: #{rnn_attention_pallas.5} parent=0
    _
  %s5 = ssub.s32 1, %s3
  %s6 = scalar_select 0, %s5, %s3
  loop: start=0, step=1, limit=4
  $region2: #{rnn_attention_pallas.5} parent=0 // loop_pre_header
    _
  $region3: #{rnn_attention_pallas.5} parent=0 // loop_header
    %s8 = sphi 0, %s12
    %p9 = scmp.ge.s32.totalorder %s8, 4
    %s18 = sphi 0, %s20
    %s21 = sphi 0, %s18
    %s22 = sphi 0, %s21
    %s38 = sphi 0, %s22
    %s44 = sphi 0, %s46
    %s47 = sphi 0, %s44
    %s48 = sphi 0, %s47
    %s64 = sphi 0, %s48
    %s70 = sphi 0, %s72
    %s73 = sphi 0, %s70
    %s74 = sphi 0, %s73
    %s90 = sphi 0, %s74
  $region4: #{rnn_attention_pallas.5} parent=0 // loop_header_branch
    %11 = sbr.rel (%p9) target = $region8
  $region5: #{rnn_attention_pallas.5} parent=0 // loop_body
    %s13 = ssub.s32 %s8, 1
    %s14 = ssub.s32 %s8, 2
    %s15 = sadd.s32 %s8, 1
    %s16 = ssub.s32 %s8, %s15
    %p17 = scmp.eq.s32.totalorder %s16, 0
    %s19 = sadd.s32 %s18, 1
    %s20 = scalar_select %p17, %s18, %s19
    %p23 = pneg %p17
    %p24 = scmp.eq.s32.totalorder %s8, 1
    %p25 = por %p23, %p24
    %p26 = scmp.ne.s32.totalorder %s18, %s21
    %p27 = scmp.eq.s32.totalorder %s8, 0
    %p28 = por %p26, %p27
    %p29 = scmp.ne.s32.totalorder %s18, %s21
    %p30 = scmp.eq.s32.totalorder %s13, 1
    %p31 = por %p29, %p30
    %p32 = scmp.ne.s32.totalorder %s21, %s22
    %p33 = scmp.eq.s32.totalorder %s13, 0
    %p34 = por %p32, %p33
    %p35 = scmp.ne.s32.totalorder %s21, %s22
    %p36 = scmp.eq.s32.totalorder %s14, 1
    %p37 = por %p35, %p36
    %p39 = scmp.ne.s32.totalorder %s22, %s38
    %p40 = scmp.eq.s32.totalorder %s14, 0
    %p41 = por %p39, %p40
    %s42 = ssub.s32 %s8, %s15
    %p43 = scmp.eq.s32.totalorder %s42, 0
    %s45 = sadd.s32 %s44, 1
    %s46 = scalar_select %p43, %s44, %s45
    %p49 = pneg %p43
    %p50 = scmp.eq.s32.totalorder %s8, 1
    %p51 = por %p49, %p50
    %p52 = scmp.ne.s32.totalorder %s44, %s47
    %p53 = scmp.eq.s32.totalorder %s8, 0
    %p54 = por %p52, %p53
    %p55 = scmp.ne.s32.totalorder %s44, %s47
    %p56 = scmp.eq.s32.totalorder %s13, 1
    %p57 = por %p55, %p56
    %p58 = scmp.ne.s32.totalorder %s47, %s48
    %p59 = scmp.eq.s32.totalorder %s13, 0
    %p60 = por %p58, %p59
    %p61 = scmp.ne.s32.totalorder %s47, %s48
    %p62 = scmp.eq.s32.totalorder %s14, 1
    %p63 = por %p61, %p62
    %p65 = scmp.ne.s32.totalorder %s48, %s64
    %p66 = scmp.eq.s32.totalorder %s14, 0
    %p67 = por %p65, %p66
    %s68 = ssub.s32 %s8, %s15
    %p69 = scmp.eq.s32.totalorder %s68, 0
    %s71 = sadd.s32 %s70, 1
    %s72 = scalar_select %p69, %s70, %s71
    %p75 = pneg %p69
    %p76 = scmp.eq.s32.totalorder %s8, 1
    %p77 = por %p75, %p76
    %p78 = scmp.ne.s32.totalorder %s70, %s73
    %p79 = scmp.eq.s32.totalorder %s8, 0
    %p80 = por %p78, %p79
    %p81 = scmp.ne.s32.totalorder %s70, %s73
    %p82 = scmp.eq.s32.totalorder %s13, 1
    %p83 = por %p81, %p82
    %p84 = scmp.ne.s32.totalorder %s73, %s74
    %p85 = scmp.eq.s32.totalorder %s13, 0
    %p86 = por %p84, %p85
    %p87 = scmp.ne.s32.totalorder %s73, %s74
    %p88 = scmp.eq.s32.totalorder %s14, 1
    %p89 = por %p87, %p88
    %p91 = scmp.ne.s32.totalorder %s74, %s90
    %p92 = scmp.eq.s32.totalorder %s14, 0
    %p93 = por %p91, %p92
    %p94 = scmp.le.s32.totalorder 1, %s8
    %p95 = scmp.lt.s32.totalorder %s8, 3
    %p96 = pnand %p94, %p95
    %p97 = pneg %p96
    // Predicated region
    $region9: #{rnn_attention_pallas.5} parent=5 // pred_check
      _
    $region10: #{rnn_attention_pallas.5} parent=5 // pred_check_branch
      %99 = sbr.rel (%p96) target = $region12
    $region11: #{rnn_attention_pallas.5} parent=5 // pred_region
      %s100 = ssub.s32 %s8, 1
    $region12: #{rnn_attention_pallas.5} parent=5 // pred_fallthru
      _
    %p101 = scmp.lt.s32.totalorder %s8, 2
    // Predicated region
    $region13: #{rnn_attention_pallas.5} parent=5 // pred_check
      %p102 = pneg %p101
    $region14: #{rnn_attention_pallas.5} parent=5 // pred_check_branch
      %104 = sbr.rel (%p102) target = $region16
    $region15: #{rnn_attention_pallas.5} parent=5 // pred_region
      // Predicated region
      $region17: #{rnn_attention_pallas.5} parent=15 // pred_check
        %p105 = pneg %p28
      $region18: #{rnn_attention_pallas.5} parent=15 // pred_check_branch
        %107 = sbr.rel (%p105) target = $region20
      $region19: #{rnn_attention_pallas.5} parent=15 // pred_region
        %p108 = scmp.lt.s32.totalorder %s8, 1
        %s109 = scalar_select %p108, %s8, 1
        %s110 = smul.addr %s109, 4
        %s111 = smul.addr %s110, 8
        %s112 = scalar_lea.vmem %s0, %s111
      $region20: #{rnn_attention_pallas.5} parent=15 // pred_fallthru
        _
      // Predicated region
      $region21: #{rnn_attention_pallas.5} parent=15 // pred_check
        %p113 = pneg %p54
      $region22: #{rnn_attention_pallas.5} parent=15 // pred_check_branch
        %115 = sbr.rel (%p113) target = $region24
      $region23: #{rnn_attention_pallas.5} parent=15 // pred_region
        %p116 = scmp.lt.s32.totalorder %s8, 1
        %s117 = scalar_select %p116, %s8, 1
        %s118 = smul.addr %s117, 8
        %s119 = smul.addr %s118, 8
        %s120 = scalar_lea.vmem %s1, %s119
      $region24: #{rnn_attention_pallas.5} parent=15 // pred_fallthru
        _
    $region16: #{rnn_attention_pallas.5} parent=5 // pred_fallthru
      _
    %p121 = scmp.le.s32.totalorder 1, %s8
    %p122 = scmp.lt.s32.totalorder %s8, 3
    %p123 = pnand %p121, %p122
    %p124 = pneg %p123
    // Predicated region
    $region25: #{rnn_attention_pallas.5} parent=5 // pred_check
      _
    $region26: #{rnn_attention_pallas.5} parent=5 // pred_check_branch
      %126 = sbr.rel (%p123) target = $region28
    $region27: #{rnn_attention_pallas.5} parent=5 // pred_region
      %s127 = ssub.s32 %s8, 1
      %p128 = scmp.lt.s32.totalorder %s13, 1
      %s129 = scalar_select %p128, %s13, 1
      %s130 = smul.addr %s129, 4
      %s131 = smul.addr %s130, 8
      %s132 = scalar_lea.vmem %s0, %s131
      %p133 = pneg %p34
      %p134 = pneg %p31
      %p135 = scmp.lt.s32.totalorder %s13, 1
      %s136 = scalar_select %p135, %s13, 1
      %s137 = smul.addr %s136, 8
      %s138 = smul.addr %s137, 8
      %s139 = scalar_lea.vmem %s1, %s138
      %p140 = pneg %p60
      %p141 = pneg %p57
      %p142 = pneg %p86
      %p143 = pneg %p83
      %p144 = scmp.lt.s32.totalorder %s13, 1
      %s145 = scalar_select %p144, %s13, 1
      %s146 = smul.addr %s145, 8
      %s147 = smul.addr %s146, 8
      %s148 = scalar_lea.vmem %s2, %s147
      %p149 = scmp.lt.s32.totalorder %s13, 1
      %s150 = scalar_select %p149, %s13, 1
      %s151 = smul.addr %s150, 4
      %s152 = smul.addr %s151, 8
      %s153 = scalar_lea.vmem %s0, %s152
      %p154 = scmp.lt.s32.totalorder %s13, 1
      %s155 = scalar_select %p154, %s13, 1
      %s156 = smul.addr %s155, 8
      %s157 = smul.addr %s156, 8
      %s158 = scalar_lea.vmem %s1, %s157
      %p159 = scmp.lt.s32.totalorder %s13, 1
      %s160 = scalar_select %p159, %s13, 1
      %s161 = smul.addr %s160, 8
      %s162 = smul.addr %s161, 8
      %s163 = scalar_lea.vmem %s2, %s162
      %v164 = vld [vmem:[%s158] sm:$0xff]
      %v165 = vld [vmem:[%s158 + $0x8] sm:$0xff]
      %v166 = vld [vmem:[%s158 + $0x10] sm:$0xff]
      %v167 = vld [vmem:[%s158 + $0x18] sm:$0xff]
      %v168 = vld [vmem:[%s158 + $0x20] sm:$0xff]
      %v169 = vld [vmem:[%s158 + $0x28] sm:$0xff]
      %v170 = vld [vmem:[%s158 + $0x30] sm:$0xff]
      %v171 = vld [vmem:[%s158 + $0x38] sm:$0xff]
      %v172 = vld [vmem:[%s153] sm:$0xff]
      %v173 = vld [vmem:[%s153 + $0x8] sm:$0xff]
      %v174 = vld [vmem:[%s153 + $0x10] sm:$0xff]
      %v175 = vld [vmem:[%s153 + $0x18] sm:$0xff]
      %177 = vset.pattern.permute.xlu0 0
      %178 = vperm.xlu0 %177, %v172
      %v179 = vpop.permute.xlu0 %178
      %182 = vset.pattern.permute.xlu0 0
      %183 = vperm.xlu0 %182, %v173
      %v184 = vpop.permute.xlu0 %183
      %187 = vset.pattern.permute.xlu0 0
      %188 = vperm.xlu0 %187, %v174
      %v189 = vpop.permute.xlu0 %188
      %192 = vset.pattern.permute.xlu0 0
      %193 = vperm.xlu0 %192, %v175
      %v194 = vpop.permute.xlu0 %193
      %v196 = vmul.f32 %v164, %v179
      %v197 = vmul.f32 %v165, %v179
      %v198 = vmul.f32 %v166, %v184
      %v199 = vmul.f32 %v167, %v184
      %v200 = vmul.f32 %v168, %v189
      %v201 = vmul.f32 %v169, %v189
      %v202 = vmul.f32 %v170, %v194
      %v203 = vmul.f32 %v171, %v194
      %204 = vst [vmem:[%s163] sm:$0xff] %v196
      %205 = vst [vmem:[%s163 + $0x8] sm:$0xff] %v197
      %206 = vst [vmem:[%s163 + $0x10] sm:$0xff] %v198
      %207 = vst [vmem:[%s163 + $0x18] sm:$0xff] %v199
      %208 = vst [vmem:[%s163 + $0x20] sm:$0xff] %v200
      %209 = vst [vmem:[%s163 + $0x28] sm:$0xff] %v201
      %210 = vst [vmem:[%s163 + $0x30] sm:$0xff] %v202
      %211 = vst [vmem:[%s163 + $0x38] sm:$0xff] %v203
      %p212 = scmp.lt.s32.totalorder %s13, 1
      %s213 = scalar_select %p212, %s13, 1
      %s214 = smul.addr %s213, 8
      %s215 = smul.addr %s214, 8
      %s216 = scalar_lea.vmem %s2, %s215
      // Predicated region
      $region29: #{rnn_attention_pallas.5} parent=27 // pred_check
        %p217 = pneg %p83
      $region30: #{rnn_attention_pallas.5} parent=27 // pred_check_branch
        %219 = sbr.rel (%p217) target = $region32
      $region31: #{rnn_attention_pallas.5} parent=27 // pred_region
        _
      $region32: #{rnn_attention_pallas.5} parent=27 // pred_fallthru
        _
    $region28: #{rnn_attention_pallas.5} parent=5 // pred_fallthru
      _
    %p220 = scmp.le.s32.totalorder 2, %s8
    // Predicated region
    $region33: #{rnn_attention_pallas.5} parent=5 // pred_check
      %p221 = pneg %p220
    $region34: #{rnn_attention_pallas.5} parent=5 // pred_check_branch
      %223 = sbr.rel (%p221) target = $region36
    $region35: #{rnn_attention_pallas.5} parent=5 // pred_region
      %s224 = ssub.s32 %s8, 2
      // Predicated region
      $region37: #{rnn_attention_pallas.5} parent=35 // pred_check
        %p225 = pneg %p89
      $region38: #{rnn_attention_pallas.5} parent=35 // pred_check_branch
        %227 = sbr.rel (%p225) target = $region40
      $region39: #{rnn_attention_pallas.5} parent=35 // pred_region
        %p228 = scmp.lt.s32.totalorder %s14, 1
        %s229 = scalar_select %p228, %s14, 1
        %s230 = smul.addr %s229, 8
        %s231 = smul.addr %s230, 8
        %s232 = scalar_lea.vmem %s2, %s231
      $region40: #{rnn_attention_pallas.5} parent=35 // pred_fallthru
        _
    $region36: #{rnn_attention_pallas.5} parent=5 // pred_fallthru
      _
  $region6: #{rnn_attention_pallas.5} parent=0 // loop_footer
    %s12 = sadd.s32 1, %s8
  $region7: #{rnn_attention_pallas.5} parent=0 // loop_footer_branch
    %7 = sbr.rel target = $region3
  $region8: #{rnn_attention_pallas.5} parent=0 // loop_exit
    _

// kernel: rnn_attention_pallas.3
$region0: #{rnn_attention_pallas.3}
  #allocation0 [shape = 'u32[]', space=smem, size = 0x4, offset = 0x4, fixed_abs, tag = 'smem constant byte address 0x4 - core index']
  #allocation1 [shape = 'u32[72,128]{1,0:T(1,128)}', space=vmem, size = 0x9000, scoped, tag = 'internal scratch']
  %s0 = inlined_call_operand.vmem [shape: f32[16,9,144], index: 0, kind: input, shape index: {}]
  %s1 = inlined_call_operand.vmem [shape: f32[2,144,64], index: 1, kind: input, shape index: {}]
  %s2 = inlined_call_operand.vmem [shape: f32[1,8], index: 2, kind: input, shape index: {}]
  %s3 = inlined_call_operand.vmem [shape: f32[16,16], index: 3, kind: output, shape index: {}]
  %s4 = sld [smem:[#allocation0]]
  $region22: #{rnn_attention_pallas.3} parent=0
    _
  %s6 = ssub.s32 1, %s4
  %s7 = scalar_select 0, %s6, %s4
  // Predicated region
  $region2: #{rnn_attention_pallas.3} parent=0 // pred_check
    _
  $region3: #{rnn_attention_pallas.3} parent=0 // pred_check_branch
    %9 = sbr.rel (0) target = $region5
  $region4: #{rnn_attention_pallas.3} parent=0 // pred_region
    _
  $region5: #{rnn_attention_pallas.3} parent=0 // pred_fallthru
    _
  // Predicated region
  $region6: #{rnn_attention_pallas.3} parent=0 // pred_check
    _
  $region7: #{rnn_attention_pallas.3} parent=0 // pred_check_branch
    %11 = sbr.rel (0) target = $region9
  $region8: #{rnn_attention_pallas.3} parent=0 // pred_region
    _
  $region9: #{rnn_attention_pallas.3} parent=0 // pred_fallthru
    _
  // Predicated region
  $region10: #{rnn_attention_pallas.3} parent=0 // pred_check
    _
  $region11: #{rnn_attention_pallas.3} parent=0 // pred_check_branch
    %13 = sbr.rel (0) target = $region13
  $region12: #{rnn_attention_pallas.3} parent=0 // pred_region
    _
  $region13: #{rnn_attention_pallas.3} parent=0 // pred_fallthru
    _
  %v14 = vld [vmem:[%s0] sm:$0xff]
  %v15 = vld [vmem:[%s0 + $0x8] sm:$0xff]
  %v16 = vld [vmem:[%s0 + $0x10] sm:$0x1]
  %v17 = vld [vmem:[%s0 + $0x18] sm:$0x1]
  %v18 = vld [vmem:[%s0 + $0x20] sm:$0xff]
  %v19 = vld [vmem:[%s0 + $0x28] sm:$0xff]
  %v20 = vld [vmem:[%s0 + $0x30] sm:$0x1]
  %v21 = vld [vmem:[%s0 + $0x38] sm:$0x1]
  %v22 = vld [vmem:[%s0 + $0x40] sm:$0xff]
  %v23 = vld [vmem:[%s0 + $0x48] sm:$0xff]
  %v24 = vld [vmem:[%s0 + $0x50] sm:$0x1]
  %v25 = vld [vmem:[%s0 + $0x58] sm:$0x1]
  %v26 = vld [vmem:[%s0 + $0x60] sm:$0xff]
  %v27 = vld [vmem:[%s0 + $0x68] sm:$0xff]
  %v28 = vld [vmem:[%s0 + $0x70] sm:$0x1]
  %v29 = vld [vmem:[%s0 + $0x78] sm:$0x1]
  %v30 = vld [vmem:[%s0 + $0x80] sm:$0xff]
  %v31 = vld [vmem:[%s0 + $0x88] sm:$0xff]
  %v32 = vld [vmem:[%s0 + $0x90] sm:$0x1]
  %v33 = vld [vmem:[%s0 + $0x98] sm:$0x1]
  %v34 = vld [vmem:[%s0 + $0xa0] sm:$0xff]
  %v35 = vld [vmem:[%s0 + $0xa8] sm:$0xff]
  %v36 = vld [vmem:[%s0 + $0xb0] sm:$0x1]
  %v37 = vld [vmem:[%s0 + $0xb8] sm:$0x1]
  %v38 = vld [vmem:[%s0 + $0xc0] sm:$0xff]
  %v39 = vld [vmem:[%s0 + $0xc8] sm:$0xff]
  %v40 = vld [vmem:[%s0 + $0xd0] sm:$0x1]
  %v41 = vld [vmem:[%s0 + $0xd8] sm:$0x1]
  %v42 = vld [vmem:[%s0 + $0xe0] sm:$0xff]
  %v43 = vld [vmem:[%s0 + $0xe8] sm:$0xff]
  %v44 = vld [vmem:[%s0 + $0xf0] sm:$0x1]
  %v45 = vld [vmem:[%s0 + $0xf8] sm:$0x1]
  %v46 = vld [vmem:[%s0 + $0x100] sm:$0xff]
  %v47 = vld [vmem:[%s0 + $0x108] sm:$0xff]
  %v48 = vld [vmem:[%s0 + $0x110] sm:$0x1]
  %v49 = vld [vmem:[%s0 + $0x118] sm:$0x1]
  %v50 = vld [vmem:[%s0 + $0x120] sm:$0xff]
  %v51 = vld [vmem:[%s0 + $0x128] sm:$0xff]
  %v52 = vld [vmem:[%s0 + $0x130] sm:$0x1]
  %v53 = vld [vmem:[%s0 + $0x138] sm:$0x1]
  %v54 = vld [vmem:[%s0 + $0x140] sm:$0xff]
  %v55 = vld [vmem:[%s0 + $0x148] sm:$0xff]
  %v56 = vld [vmem:[%s0 + $0x150] sm:$0x1]
  %v57 = vld [vmem:[%s0 + $0x158] sm:$0x1]
  %v58 = vld [vmem:[%s0 + $0x160] sm:$0xff]
  %v59 = vld [vmem:[%s0 + $0x168] sm:$0xff]
  %v60 = vld [vmem:[%s0 + $0x170] sm:$0x1]
  %v61 = vld [vmem:[%s0 + $0x178] sm:$0x1]
  %v62 = vld [vmem:[%s0 + $0x180] sm:$0xff]
  %v63 = vld [vmem:[%s0 + $0x188] sm:$0xff]
  %v64 = vld [vmem:[%s0 + $0x190] sm:$0x1]
  %v65 = vld [vmem:[%s0 + $0x198] sm:$0x1]
  %v66 = vld [vmem:[%s0 + $0x1a0] sm:$0xff]
  %v67 = vld [vmem:[%s0 + $0x1a8] sm:$0xff]
  %v68 = vld [vmem:[%s0 + $0x1b0] sm:$0x1]
  %v69 = vld [vmem:[%s0 + $0x1b8] sm:$0x1]
  %v70 = vld [vmem:[%s0 + $0x1c0] sm:$0xff]
  %v71 = vld [vmem:[%s0 + $0x1c8] sm:$0xff]
  %v72 = vld [vmem:[%s0 + $0x1d0] sm:$0x1]
  %v73 = vld [vmem:[%s0 + $0x1d8] sm:$0x1]
  %v74 = vld [vmem:[%s0 + $0x1e0] sm:$0xff]
  %v75 = vld [vmem:[%s0 + $0x1e8] sm:$0xff]
  %v76 = vld [vmem:[%s0 + $0x1f0] sm:$0x1]
  %v77 = vld [vmem:[%s0 + $0x1f8] sm:$0x1]
  %vm142 = vcmask 1046528
  %v143 = vrot.slane %v14, 1
  %v144 = vrot.slane %v16, 1
  %v145 = vsel %vm142, %v143, %v144
  %v146 = vrot.slane %v15, 1
  %v147 = vrot.slane %v17, 1
  %v148 = vsel %vm142, %v146, %v147
  %v149 = vrot.slane %v18, 1
  %v150 = vrot.slane %v20, 1
  %v151 = vsel %vm142, %v149, %v150
  %v152 = vrot.slane %v19, 1
  %v153 = vrot.slane %v21, 1
  %v154 = vsel %vm142, %v152, %v153
  %v155 = vrot.slane %v22, 1
  %v156 = vrot.slane %v24, 1
  %v157 = vsel %vm142, %v155, %v156
  %v158 = vrot.slane %v23, 1
  %v159 = vrot.slane %v25, 1
  %v160 = vsel %vm142, %v158, %v159
  %v161 = vrot.slane %v26, 1
  %v162 = vrot.slane %v28, 1
  %v163 = vsel %vm142, %v161, %v162
  %v164 = vrot.slane %v27, 1
  %v165 = vrot.slane %v29, 1
  %v166 = vsel %vm142, %v164, %v165
  %v167 = vrot.slane %v30, 1
  %v168 = vrot.slane %v32, 1
  %v169 = vsel %vm142, %v167, %v168
  %v170 = vrot.slane %v31, 1
  %v171 = vrot.slane %v33, 1
  %v172 = vsel %vm142, %v170, %v171
  %v173 = vrot.slane %v34, 1
  %v174 = vrot.slane %v36, 1
  %v175 = vsel %vm142, %v173, %v174
  %v176 = vrot.slane %v35, 1
  %v177 = vrot.slane %v37, 1
  %v178 = vsel %vm142, %v176, %v177
  %v179 = vrot.slane %v38, 1
  %v180 = vrot.slane %v40, 1
  %v181 = vsel %vm142, %v179, %v180
  %v182 = vrot.slane %v39, 1
  %v183 = vrot.slane %v41, 1
  %v184 = vsel %vm142, %v182, %v183
  %v185 = vrot.slane %v42, 1
  %v186 = vrot.slane %v44, 1
  %v187 = vsel %vm142, %v185, %v186
  %v188 = vrot.slane %v43, 1
  %v189 = vrot.slane %v45, 1
  %v190 = vsel %vm142, %v188, %v189
  %v191 = vrot.slane %v46, 1
  %v192 = vrot.slane %v48, 1
  %v193 = vsel %vm142, %v191, %v192
  %v194 = vrot.slane %v47, 1
  %v195 = vrot.slane %v49, 1
  %v196 = vsel %vm142, %v194, %v195
  %v197 = vrot.slane %v50, 1
  %v198 = vrot.slane %v52, 1
  %v199 = vsel %vm142, %v197, %v198
  %v200 = vrot.slane %v51, 1
  %v201 = vrot.slane %v53, 1
  %v202 = vsel %vm142, %v200, %v201
  %v203 = vrot.slane %v54, 1
  %v204 = vrot.slane %v56, 1
  %v205 = vsel %vm142, %v203, %v204
  %v206 = vrot.slane %v55, 1
  %v207 = vrot.slane %v57, 1
  %v208 = vsel %vm142, %v206, %v207
  %v209 = vrot.slane %v58, 1
  %v210 = vrot.slane %v60, 1
  %v211 = vsel %vm142, %v209, %v210
  %v212 = vrot.slane %v59, 1
  %v213 = vrot.slane %v61, 1
  %v214 = vsel %vm142, %v212, %v213
  %v215 = vrot.slane %v62, 1
  %v216 = vrot.slane %v64, 1
  %v217 = vsel %vm142, %v215, %v216
  %v218 = vrot.slane %v63, 1
  %v219 = vrot.slane %v65, 1
  %v220 = vsel %vm142, %v218, %v219
  %v221 = vrot.slane %v66, 1
  %v222 = vrot.slane %v68, 1
  %v223 = vsel %vm142, %v221, %v222
  %v224 = vrot.slane %v67, 1
  %v225 = vrot.slane %v69, 1
  %v226 = vsel %vm142, %v224, %v225
  %v227 = vrot.slane %v70, 1
  %v228 = vrot.slane %v72, 1
  %v229 = vsel %vm142, %v227, %v228
  %v230 = vrot.slane %v71, 1
  %v231 = vrot.slane %v73, 1
  %v232 = vsel %vm142, %v230, %v231
  %v233 = vrot.slane %v74, 1
  %v234 = vrot.slane %v76, 1
  %v235 = vsel %vm142, %v233, %v234
  %v236 = vrot.slane %v75, 1
  %v237 = vrot.slane %v77, 1
  %v238 = vsel %vm142, %v236, %v237
  %v255 = vld [vmem:[%s1] sm:$0xff]
  %v256 = vld [vmem:[%s1 + $0x8] sm:$0xff]
  %v257 = vld [vmem:[%s1 + $0x10] sm:$0xff]
  %v258 = vld [vmem:[%s1 + $0x18] sm:$0xff]
  %v259 = vld [vmem:[%s1 + $0x20] sm:$0xff]
  %v260 = vld [vmem:[%s1 + $0x28] sm:$0xff]
  %v261 = vld [vmem:[%s1 + $0x30] sm:$0xff]
  %v262 = vld [vmem:[%s1 + $0x38] sm:$0xff]
  %v263 = vld [vmem:[%s1 + $0x40] sm:$0xff]
  %v264 = vld [vmem:[%s1 + $0x48] sm:$0xff]
  %v265 = vld [vmem:[%s1 + $0x50] sm:$0xff]
  %v266 = vld [vmem:[%s1 + $0x58] sm:$0xff]
  %v267 = vld [vmem:[%s1 + $0x60] sm:$0xff]
  %v268 = vld [vmem:[%s1 + $0x68] sm:$0xff]
  %v269 = vld [vmem:[%s1 + $0x70] sm:$0xff]
  %v270 = vld [vmem:[%s1 + $0x78] sm:$0xff]
  %v271 = vld [vmem:[%s1 + $0x80] sm:$0xff]
  %v272 = vld [vmem:[%s1 + $0x88] sm:$0xff]
  %s273 = scalar_lea.vmem %s1, 144
  %v274 = vld [vmem:[%s273] sm:$0xff]
  %v275 = vld [vmem:[%s273 + $0x8] sm:$0xff]
  %v276 = vld [vmem:[%s273 + $0x10] sm:$0xff]
  %v277 = vld [vmem:[%s273 + $0x18] sm:$0xff]
  %v278 = vld [vmem:[%s273 + $0x20] sm:$0xff]
  %v279 = vld [vmem:[%s273 + $0x28] sm:$0xff]
  %v280 = vld [vmem:[%s273 + $0x30] sm:$0xff]
  %v281 = vld [vmem:[%s273 + $0x38] sm:$0xff]
  %v282 = vld [vmem:[%s273 + $0x40] sm:$0xff]
  %v283 = vld [vmem:[%s273 + $0x48] sm:$0xff]
  %v284 = vld [vmem:[%s273 + $0x50] sm:$0xff]
  %v285 = vld [vmem:[%s273 + $0x58] sm:$0xff]
  %v286 = vld [vmem:[%s273 + $0x60] sm:$0xff]
  %v287 = vld [vmem:[%s273 + $0x68] sm:$0xff]
  %v288 = vld [vmem:[%s273 + $0x70] sm:$0xff]
  %v289 = vld [vmem:[%s273 + $0x78] sm:$0xff]
  %v290 = vld [vmem:[%s273 + $0x80] sm:$0xff]
  %v291 = vld [vmem:[%s273 + $0x88] sm:$0xff]
  %vm292 = vcmask 130048
  %v293 = vsel %vm292, %v148, 0
  %v295 = vsel %vm292, %v154, 0
  %v297 = vsel %vm292, %v160, 0
  %v299 = vsel %vm292, %v166, 0
  %v301 = vsel %vm292, %v172, 0
  %v303 = vsel %vm292, %v178, 0
  %v305 = vsel %vm292, %v184, 0
  %v307 = vsel %vm292, %v190, 0
  %v309 = vsel %vm292, %v196, 0
  %v311 = vsel %vm292, %v202, 0
  %v313 = vsel %vm292, %v208, 0
  %v315 = vsel %vm292, %v214, 0
  %v317 = vsel %vm292, %v220, 0
  %v319 = vsel %vm292, %v226, 0
  %v321 = vsel %vm292, %v232, 0
  %v323 = vsel %vm292, %v238, 0
  %325 = vmatpush.msra.mxu0 %v289
  %326 = vmatpush.msra.mxu0 %v288
  %327 = vmatpush.msra.mxu0 %v287
  %328 = vmatpush.msra.mxu0 %v286
  %329 = vmatpush.msra.mxu0 %v285
  %330 = vmatpush.msra.mxu0 %v284
  %331 = vmatpush.msra.mxu0 %v283
  %332 = vmatpush.msra.mxu0 %v282
  %333 = vmatpush.msra.mxu0 %v281
  %334 = vmatpush.msra.mxu0 %v280
  %335 = vmatpush.msra.mxu0 %v279
  %336 = vmatpush.msra.mxu0 %v278
  %337 = vmatpush.msra.mxu0 %v277
  %338 = vmatpush.msra.mxu0 %v276
  %339 = vmatpush.msra.mxu0 %v275
  %340 = vmatpush.msra.mxu0 %v274
  %341 = vmatmul.f32.gmra.mxu0 %v145
  %v342 = vpop.f32.mrf.mxu0
  %v343 = vadd.f32 0.0, %v342
  %344 = vmatmul.f32.gmra.mxu0 %v151
  %v345 = vpop.f32.mrf.mxu0
  %v346 = vadd.f32 0.0, %v345
  %347 = vmatmul.f32.gmra.mxu0 %v157
  %v348 = vpop.f32.mrf.mxu0
  %v349 = vadd.f32 0.0, %v348
  %350 = vmatmul.f32.gmra.mxu0 %v163
  %v351 = vpop.f32.mrf.mxu0
  %v352 = vadd.f32 0.0, %v351
  %353 = vmatmul.f32.gmra.mxu0 %v169
  %v354 = vpop.f32.mrf.mxu0
  %v355 = vadd.f32 0.0, %v354
  %356 = vmatmul.f32.gmra.mxu0 %v175
  %v357 = vpop.f32.mrf.mxu0
  %v358 = vadd.f32 0.0, %v357
  %359 = vmatmul.f32.gmra.mxu0 %v181
  %v360 = vpop.f32.mrf.mxu0
  %v361 = vadd.f32 0.0, %v360
  %362 = vmatmul.f32.gmra.mxu0 %v187
  %v363 = vpop.f32.mrf.mxu0
  %v364 = vadd.f32 0.0, %v363
  %365 = vmatmul.f32.gmra.mxu0 %v193
  %v366 = vpop.f32.mrf.mxu0
  %v367 = vadd.f32 0.0, %v366
  %368 = vmatmul.f32.gmra.mxu0 %v199
  %v369 = vpop.f32.mrf.mxu0
  %v370 = vadd.f32 0.0, %v369
  %371 = vmatmul.f32.gmra.mxu0 %v205
  %v372 = vpop.f32.mrf.mxu0
  %v373 = vadd.f32 0.0, %v372
  %374 = vmatmul.f32.gmra.mxu0 %v211
  %v375 = vpop.f32.mrf.mxu0
  %v376 = vadd.f32 0.0, %v375
  %377 = vmatmul.f32.gmra.mxu0 %v217
  %v378 = vpop.f32.mrf.mxu0
  %v379 = vadd.f32 0.0, %v378
  %380 = vmatmul.f32.gmra.mxu0 %v223
  %v381 = vpop.f32.mrf.mxu0
  %v382 = vadd.f32 0.0, %v381
  %383 = vmatmul.f32.gmra.mxu0 %v229
  %v384 = vpop.f32.mrf.mxu0
  %v385 = vadd.f32 0.0, %v384
  %386 = vmatmul.f32.gmra.mxu0 %v235
  %v387 = vpop.f32.mrf.mxu0
  %v388 = vadd.f32 0.0, %v387
  %389 = vdwg.mxu0
  %390 = vmatpush.msra.mxu0 0.0
  %391 = vmatpush.msra.mxu0 0.0
  %392 = vmatpush.msra.mxu0 0.0
  %393 = vmatpush.msra.mxu0 0.0
  %394 = vmatpush.msra.mxu0 0.0
  %395 = vmatpush.msra.mxu0 0.0
  %396 = vmatpush.msra.mxu0 0.0
  %397 = vmatpush.msra.mxu0 0.0
  %398 = vmatpush.msra.mxu0 0.0
  %399 = vmatpush.msra.mxu0 0.0
  %400 = vmatpush.msra.mxu0 0.0
  %401 = vmatpush.msra.mxu0 0.0
  %402 = vmatpush.msra.mxu0 0.0
  %403 = vmatpush.msra.mxu0 0.0
  %404 = vmatpush.msra.mxu0 %v291
  %405 = vmatpush.msra.mxu0 %v290
  %406 = vmatmul.f32.gmra.mxu0 %v293
  %v407 = vpop.f32.mrf.mxu0
  %v408 = vadd.f32 %v343, %v407
  %409 = vmatmul.f32.gmra.mxu0 %v295
  %v410 = vpop.f32.mrf.mxu0
  %v411 = vadd.f32 %v346, %v410
  %412 = vmatmul.f32.gmra.mxu0 %v297
  %v413 = vpop.f32.mrf.mxu0
  %v414 = vadd.f32 %v349, %v413
  %415 = vmatmul.f32.gmra.mxu0 %v299
  %v416 = vpop.f32.mrf.mxu0
  %v417 = vadd.f32 %v352, %v416
  %418 = vmatmul.f32.gmra.mxu0 %v301
  %v419 = vpop.f32.mrf.mxu0
  %v420 = vadd.f32 %v355, %v419
  %421 = vmatmul.f32.gmra.mxu0 %v303
  %v422 = vpop.f32.mrf.mxu0
  %v423 = vadd.f32 %v358, %v422
  %424 = vmatmul.f32.gmra.mxu0 %v305
  %v425 = vpop.f32.mrf.mxu0
  %v426 = vadd.f32 %v361, %v425
  %427 = vmatmul.f32.gmra.mxu0 %v307
  %v428 = vpop.f32.mrf.mxu0
  %v429 = vadd.f32 %v364, %v428
  %430 = vmatmul.f32.gmra.mxu0 %v309
  %v431 = vpop.f32.mrf.mxu0
  %v432 = vadd.f32 %v367, %v431
  %433 = vmatmul.f32.gmra.mxu0 %v311
  %v434 = vpop.f32.mrf.mxu0
  %v435 = vadd.f32 %v370, %v434
  %436 = vmatmul.f32.gmra.mxu0 %v313
  %v437 = vpop.f32.mrf.mxu0
  %v438 = vadd.f32 %v373, %v437
  %439 = vmatmul.f32.gmra.mxu0 %v315
  %v440 = vpop.f32.mrf.mxu0
  %v441 = vadd.f32 %v376, %v440
  %442 = vmatmul.f32.gmra.mxu0 %v317
  %v443 = vpop.f32.mrf.mxu0
  %v444 = vadd.f32 %v379, %v443
  %445 = vmatmul.f32.gmra.mxu0 %v319
  %v446 = vpop.f32.mrf.mxu0
  %v447 = vadd.f32 %v382, %v446
  %448 = vmatmul.f32.gmra.mxu0 %v321
  %v449 = vpop.f32.mrf.mxu0
  %v450 = vadd.f32 %v385, %v449
  %451 = vmatmul.f32.gmra.mxu0 %v323
  %v452 = vpop.f32.mrf.mxu0
  %v453 = vadd.f32 %v388, %v452
  %454 = vdwg.mxu0
  %v455 = vsel %vm292, %v15, 0
  %v457 = vsel %vm292, %v19, 0
  %v459 = vsel %vm292, %v23, 0
  %v461 = vsel %vm292, %v27, 0
  %v463 = vsel %vm292, %v31, 0
  %v465 = vsel %vm292, %v35, 0
  %v467 = vsel %vm292, %v39, 0
  %v469 = vsel %vm292, %v43, 0
  %v471 = vsel %vm292, %v47, 0
  %v473 = vsel %vm292, %v51, 0
  %v475 = vsel %vm292, %v55, 0
  %v477 = vsel %vm292, %v59, 0
  %v479 = vsel %vm292, %v63, 0
  %v481 = vsel %vm292, %v67, 0
  %v483 = vsel %vm292, %v71, 0
  %v485 = vsel %vm292, %v75, 0
  %487 = vmatpush.msra.mxu0 %v270
  %488 = vmatpush.msra.mxu0 %v269
  %489 = vmatpush.msra.mxu0 %v268
  %490 = vmatpush.msra.mxu0 %v267
  %491 = vmatpush.msra.mxu0 %v266
  %492 = vmatpush.msra.mxu0 %v265
  %493 = vmatpush.msra.mxu0 %v264
  %494 = vmatpush.msra.mxu0 %v263
  %495 = vmatpush.msra.mxu0 %v262
  %496 = vmatpush.msra.mxu0 %v261
  %497 = vmatpush.msra.mxu0 %v260
  %498 = vmatpush.msra.mxu0 %v259
  %499 = vmatpush.msra.mxu0 %v258
  %500 = vmatpush.msra.mxu0 %v257
  %501 = vmatpush.msra.mxu0 %v256
  %502 = vmatpush.msra.mxu0 %v255
  %503 = vmatmul.f32.gmra.mxu0 %v14
  %v504 = vpop.f32.mrf.mxu0
  %v505 = vadd.f32 %v408, %v504
  %506 = vmatmul.f32.gmra.mxu0 %v18
  %v507 = vpop.f32.mrf.mxu0
  %v508 = vadd.f32 %v411, %v507
  %509 = vmatmul.f32.gmra.mxu0 %v22
  %v510 = vpop.f32.mrf.mxu0
  %v511 = vadd.f32 %v414, %v510
  %512 = vmatmul.f32.gmra.mxu0 %v26
  %v513 = vpop.f32.mrf.mxu0
  %v514 = vadd.f32 %v417, %v513
  %515 = vmatmul.f32.gmra.mxu0 %v30
  %v516 = vpop.f32.mrf.mxu0
  %v517 = vadd.f32 %v420, %v516
  %518 = vmatmul.f32.gmra.mxu0 %v34
  %v519 = vpop.f32.mrf.mxu0
  %v520 = vadd.f32 %v423, %v519
  %521 = vmatmul.f32.gmra.mxu0 %v38
  %v522 = vpop.f32.mrf.mxu0
  %v523 = vadd.f32 %v426, %v522
  %524 = vmatmul.f32.gmra.mxu0 %v42
  %v525 = vpop.f32.mrf.mxu0
  %v526 = vadd.f32 %v429, %v525
  %527 = vmatmul.f32.gmra.mxu0 %v46
  %v528 = vpop.f32.mrf.mxu0
  %v529 = vadd.f32 %v432, %v528
  %530 = vmatmul.f32.gmra.mxu0 %v50
  %v531 = vpop.f32.mrf.mxu0
  %v532 = vadd.f32 %v435, %v531
  %533 = vmatmul.f32.gmra.mxu0 %v54
  %v534 = vpop.f32.mrf.mxu0
  %v535 = vadd.f32 %v438, %v534
  %536 = vmatmul.f32.gmra.mxu0 %v58
  %v537 = vpop.f32.mrf.mxu0
  %v538 = vadd.f32 %v441, %v537
  %539 = vmatmul.f32.gmra.mxu0 %v62
  %v540 = vpop.f32.mrf.mxu0
  %v541 = vadd.f32 %v444, %v540
  %542 = vmatmul.f32.gmra.mxu0 %v66
  %v543 = vpop.f32.mrf.mxu0
  %v544 = vadd.f32 %v447, %v543
  %545 = vmatmul.f32.gmra.mxu0 %v70
  %v546 = vpop.f32.mrf.mxu0
  %v547 = vadd.f32 %v450, %v546
  %548 = vmatmul.f32.gmra.mxu0 %v74
  %v549 = vpop.f32.mrf.mxu0
  %v550 = vadd.f32 %v453, %v549
  %551 = vdwg.mxu0
  %552 = vmatpush.msra.mxu0 0.0
  %553 = vmatpush.msra.mxu0 0.0
  %554 = vmatpush.msra.mxu0 0.0
  %555 = vmatpush.msra.mxu0 0.0
  %556 = vmatpush.msra.mxu0 0.0
  %557 = vmatpush.msra.mxu0 0.0
  %558 = vmatpush.msra.mxu0 0.0
  %559 = vmatpush.msra.mxu0 0.0
  %560 = vmatpush.msra.mxu0 0.0
  %561 = vmatpush.msra.mxu0 0.0
  %562 = vmatpush.msra.mxu0 0.0
  %563 = vmatpush.msra.mxu0 0.0
  %564 = vmatpush.msra.mxu0 0.0
  %565 = vmatpush.msra.mxu0 0.0
  %566 = vmatpush.msra.mxu0 %v272
  %567 = vmatpush.msra.mxu0 %v271
  %568 = vmatmul.f32.gmra.mxu0 %v455
  %v569 = vpop.f32.mrf.mxu0
  %v570 = vadd.f32 %v505, %v569
  %571 = vmatmul.f32.gmra.mxu0 %v457
  %v572 = vpop.f32.mrf.mxu0
  %v573 = vadd.f32 %v508, %v572
  %574 = vmatmul.f32.gmra.mxu0 %v459
  %v575 = vpop.f32.mrf.mxu0
  %v576 = vadd.f32 %v511, %v575
  %577 = vmatmul.f32.gmra.mxu0 %v461
  %v578 = vpop.f32.mrf.mxu0
  %v579 = vadd.f32 %v514, %v578
  %580 = vmatmul.f32.gmra.mxu0 %v463
  %v581 = vpop.f32.mrf.mxu0
  %v582 = vadd.f32 %v517, %v581
  %583 = vmatmul.f32.gmra.mxu0 %v465
  %v584 = vpop.f32.mrf.mxu0
  %v585 = vadd.f32 %v520, %v584
  %586 = vmatmul.f32.gmra.mxu0 %v467
  %v587 = vpop.f32.mrf.mxu0
  %v588 = vadd.f32 %v523, %v587
  %589 = vmatmul.f32.gmra.mxu0 %v469
  %v590 = vpop.f32.mrf.mxu0
  %v591 = vadd.f32 %v526, %v590
  %592 = vmatmul.f32.gmra.mxu0 %v471
  %v593 = vpop.f32.mrf.mxu0
  %v594 = vadd.f32 %v529, %v593
  %595 = vmatmul.f32.gmra.mxu0 %v473
  %v596 = vpop.f32.mrf.mxu0
  %v597 = vadd.f32 %v532, %v596
  %598 = vmatmul.f32.gmra.mxu0 %v475
  %v599 = vpop.f32.mrf.mxu0
  %v600 = vadd.f32 %v535, %v599
  %601 = vmatmul.f32.gmra.mxu0 %v477
  %v602 = vpop.f32.mrf.mxu0
  %v603 = vadd.f32 %v538, %v602
  %604 = vmatmul.f32.gmra.mxu0 %v479
  %v605 = vpop.f32.mrf.mxu0
  %v606 = vadd.f32 %v541, %v605
  %607 = vmatmul.f32.gmra.mxu0 %v481
  %v608 = vpop.f32.mrf.mxu0
  %v609 = vadd.f32 %v544, %v608
  %610 = vmatmul.f32.gmra.mxu0 %v483
  %v611 = vpop.f32.mrf.mxu0
  %v612 = vadd.f32 %v547, %v611
  %613 = vmatmul.f32.gmra.mxu0 %v485
  %v614 = vpop.f32.mrf.mxu0
  %v615 = vadd.f32 %v550, %v614
  %616 = vdwg.mxu0
  %v633 = vrot.slane %v570, 1
  %v634 = vrot.slane %v573, 1
  %v635 = vrot.slane %v576, 1
  %v636 = vrot.slane %v579, 1
  %v637 = vrot.slane %v582, 1
  %v638 = vrot.slane %v585, 1
  %v639 = vrot.slane %v588, 1
  %v640 = vrot.slane %v591, 1
  %v641 = vrot.slane %v594, 1
  %v642 = vrot.slane %v597, 1
  %v643 = vrot.slane %v600, 1
  %v644 = vrot.slane %v603, 1
  %v645 = vrot.slane %v606, 1
  %v646 = vrot.slane %v609, 1
  %v647 = vrot.slane %v612, 1
  %v648 = vrot.slane %v615, 1
  %v665 = vadd.f32 %v570, %v633
  %v666 = vadd.f32 %v573, %v634
  %v667 = vadd.f32 %v576, %v635
  %v668 = vadd.f32 %v579, %v636
  %v669 = vadd.f32 %v582, %v637
  %v670 = vadd.f32 %v585, %v638
  %v671 = vadd.f32 %v588, %v639
  %v672 = vadd.f32 %v591, %v640
  %v673 = vadd.f32 %v594, %v641
  %v674 = vadd.f32 %v597, %v642
  %v675 = vadd.f32 %v600, %v643
  %v676 = vadd.f32 %v603, %v644
  %v677 = vadd.f32 %v606, %v645
  %v678 = vadd.f32 %v609, %v646
  %v679 = vadd.f32 %v612, %v647
  %v680 = vadd.f32 %v615, %v648
  %v681 = vrot.slane %v570, 2
  %v682 = vrot.slane %v573, 2
  %v683 = vrot.slane %v576, 2
  %v684 = vrot.slane %v579, 2
  %v685 = vrot.slane %v582, 2
  %v686 = vrot.slane %v585, 2
  %v687 = vrot.slane %v588, 2
  %v688 = vrot.slane %v591, 2
  %v689 = vrot.slane %v594, 2
  %v690 = vrot.slane %v597, 2
  %v691 = vrot.slane %v600, 2
  %v692 = vrot.slane %v603, 2
  %v693 = vrot.slane %v606, 2
  %v694 = vrot.slane %v609, 2
  %v695 = vrot.slane %v612, 2
  %v696 = vrot.slane %v615, 2
  %v713 = vadd.f32 %v665, %v681
  %v714 = vadd.f32 %v666, %v682
  %v715 = vadd.f32 %v667, %v683
  %v716 = vadd.f32 %v668, %v684
  %v717 = vadd.f32 %v669, %v685
  %v718 = vadd.f32 %v670, %v686
  %v719 = vadd.f32 %v671, %v687
  %v720 = vadd.f32 %v672, %v688
  %v721 = vadd.f32 %v673, %v689
  %v722 = vadd.f32 %v674, %v690
  %v723 = vadd.f32 %v675, %v691
  %v724 = vadd.f32 %v676, %v692
  %v725 = vadd.f32 %v677, %v693
  %v726 = vadd.f32 %v678, %v694
  %v727 = vadd.f32 %v679, %v695
  %v728 = vadd.f32 %v680, %v696
  %v729 = vrot.slane %v570, 3
  %v730 = vrot.slane %v573, 3
  %v731 = vrot.slane %v576, 3
  %v732 = vrot.slane %v579, 3
  %v733 = vrot.slane %v582, 3
  %v734 = vrot.slane %v585, 3
  %v735 = vrot.slane %v588, 3
  %v736 = vrot.slane %v591, 3
  %v737 = vrot.slane %v594, 3
  %v738 = vrot.slane %v597, 3
  %v739 = vrot.slane %v600, 3
  %v740 = vrot.slane %v603, 3
  %v741 = vrot.slane %v606, 3
  %v742 = vrot.slane %v609, 3
  %v743 = vrot.slane %v612, 3
  %v744 = vrot.slane %v615, 3
  %v761 = vadd.f32 %v713, %v729
  %v762 = vadd.f32 %v714, %v730
  %v763 = vadd.f32 %v715, %v731
  %v764 = vadd.f32 %v716, %v732
  %v765 = vadd.f32 %v717, %v733
  %v766 = vadd.f32 %v718, %v734
  %v767 = vadd.f32 %v719, %v735
  %v768 = vadd.f32 %v720, %v736
  %v769 = vadd.f32 %v721, %v737
  %v770 = vadd.f32 %v722, %v738
  %v771 = vadd.f32 %v723, %v739
  %v772 = vadd.f32 %v724, %v740
  %v773 = vadd.f32 %v725, %v741
  %v774 = vadd.f32 %v726, %v742
  %v775 = vadd.f32 %v727, %v743
  %v776 = vadd.f32 %v728, %v744
  %v777 = vrot.slane %v570, 4
  %v778 = vrot.slane %v573, 4
  %v779 = vrot.slane %v576, 4
  %v780 = vrot.slane %v579, 4
  %v781 = vrot.slane %v582, 4
  %v782 = vrot.slane %v585, 4
  %v783 = vrot.slane %v588, 4
  %v784 = vrot.slane %v591, 4
  %v785 = vrot.slane %v594, 4
  %v786 = vrot.slane %v597, 4
  %v787 = vrot.slane %v600, 4
  %v788 = vrot.slane %v603, 4
  %v789 = vrot.slane %v606, 4
  %v790 = vrot.slane %v609, 4
  %v791 = vrot.slane %v612, 4
  %v792 = vrot.slane %v615, 4
  %v809 = vadd.f32 %v761, %v777
  %v810 = vadd.f32 %v762, %v778
  %v811 = vadd.f32 %v763, %v779
  %v812 = vadd.f32 %v764, %v780
  %v813 = vadd.f32 %v765, %v781
  %v814 = vadd.f32 %v766, %v782
  %v815 = vadd.f32 %v767, %v783
  %v816 = vadd.f32 %v768, %v784
  %v817 = vadd.f32 %v769, %v785
  %v818 = vadd.f32 %v770, %v786
  %v819 = vadd.f32 %v771, %v787
  %v820 = vadd.f32 %v772, %v788
  %v821 = vadd.f32 %v773, %v789
  %v822 = vadd.f32 %v774, %v790
  %v823 = vadd.f32 %v775, %v791
  %v824 = vadd.f32 %v776, %v792
  %v825 = vrot.slane %v570, 5
  %v826 = vrot.slane %v573, 5
  %v827 = vrot.slane %v576, 5
  %v828 = vrot.slane %v579, 5
  %v829 = vrot.slane %v582, 5
  %v830 = vrot.slane %v585, 5
  %v831 = vrot.slane %v588, 5
  %v832 = vrot.slane %v591, 5
  %v833 = vrot.slane %v594, 5
  %v834 = vrot.slane %v597, 5
  %v835 = vrot.slane %v600, 5
  %v836 = vrot.slane %v603, 5
  %v837 = vrot.slane %v606, 5
  %v838 = vrot.slane %v609, 5
  %v839 = vrot.slane %v612, 5
  %v840 = vrot.slane %v615, 5
  %v857 = vadd.f32 %v809, %v825
  %v858 = vadd.f32 %v810, %v826
  %v859 = vadd.f32 %v811, %v827
  %v860 = vadd.f32 %v812, %v828
  %v861 = vadd.f32 %v813, %v829
  %v862 = vadd.f32 %v814, %v830
  %v863 = vadd.f32 %v815, %v831
  %v864 = vadd.f32 %v816, %v832
  %v865 = vadd.f32 %v817, %v833
  %v866 = vadd.f32 %v818, %v834
  %v867 = vadd.f32 %v819, %v835
  %v868 = vadd.f32 %v820, %v836
  %v869 = vadd.f32 %v821, %v837
  %v870 = vadd.f32 %v822, %v838
  %v871 = vadd.f32 %v823, %v839
  %v872 = vadd.f32 %v824, %v840
  %v873 = vrot.slane %v570, 6
  %v874 = vrot.slane %v573, 6
  %v875 = vrot.slane %v576, 6
  %v876 = vrot.slane %v579, 6
  %v877 = vrot.slane %v582, 6
  %v878 = vrot.slane %v585, 6
  %v879 = vrot.slane %v588, 6
  %v880 = vrot.slane %v591, 6
  %v881 = vrot.slane %v594, 6
  %v882 = vrot.slane %v597, 6
  %v883 = vrot.slane %v600, 6
  %v884 = vrot.slane %v603, 6
  %v885 = vrot.slane %v606, 6
  %v886 = vrot.slane %v609, 6
  %v887 = vrot.slane %v612, 6
  %v888 = vrot.slane %v615, 6
  %v905 = vadd.f32 %v857, %v873
  %v906 = vadd.f32 %v858, %v874
  %v907 = vadd.f32 %v859, %v875
  %v908 = vadd.f32 %v860, %v876
  %v909 = vadd.f32 %v861, %v877
  %v910 = vadd.f32 %v862, %v878
  %v911 = vadd.f32 %v863, %v879
  %v912 = vadd.f32 %v864, %v880
  %v913 = vadd.f32 %v865, %v881
  %v914 = vadd.f32 %v866, %v882
  %v915 = vadd.f32 %v867, %v883
  %v916 = vadd.f32 %v868, %v884
  %v917 = vadd.f32 %v869, %v885
  %v918 = vadd.f32 %v870, %v886
  %v919 = vadd.f32 %v871, %v887
  %v920 = vadd.f32 %v872, %v888
  %v921 = vrot.slane %v570, 7
  %v922 = vrot.slane %v573, 7
  %v923 = vrot.slane %v576, 7
  %v924 = vrot.slane %v579, 7
  %v925 = vrot.slane %v582, 7
  %v926 = vrot.slane %v585, 7
  %v927 = vrot.slane %v588, 7
  %v928 = vrot.slane %v591, 7
  %v929 = vrot.slane %v594, 7
  %v930 = vrot.slane %v597, 7
  %v931 = vrot.slane %v600, 7
  %v932 = vrot.slane %v603, 7
  %v933 = vrot.slane %v606, 7
  %v934 = vrot.slane %v609, 7
  %v935 = vrot.slane %v612, 7
  %v936 = vrot.slane %v615, 7
  %v953 = vadd.f32 %v905, %v921
  %v954 = vadd.f32 %v906, %v922
  %v955 = vadd.f32 %v907, %v923
  %v956 = vadd.f32 %v908, %v924
  %v957 = vadd.f32 %v909, %v925
  %v958 = vadd.f32 %v910, %v926
  %v959 = vadd.f32 %v911, %v927
  %v960 = vadd.f32 %v912, %v928
  %v961 = vadd.f32 %v913, %v929
  %v962 = vadd.f32 %v914, %v930
  %v963 = vadd.f32 %v915, %v931
  %v964 = vadd.f32 %v916, %v932
  %v965 = vadd.f32 %v917, %v933
  %v966 = vadd.f32 %v918, %v934
  %v967 = vadd.f32 %v919, %v935
  %v968 = vadd.f32 %v920, %v936
  %v969 = vmax.f32 %v570, %v633
  %v970 = vmax.f32 %v573, %v634
  %v971 = vmax.f32 %v576, %v635
  %v972 = vmax.f32 %v579, %v636
  %v973 = vmax.f32 %v582, %v637
  %v974 = vmax.f32 %v585, %v638
  %v975 = vmax.f32 %v588, %v639
  %v976 = vmax.f32 %v591, %v640
  %v977 = vmax.f32 %v594, %v641
  %v978 = vmax.f32 %v597, %v642
  %v979 = vmax.f32 %v600, %v643
  %v980 = vmax.f32 %v603, %v644
  %v981 = vmax.f32 %v606, %v645
  %v982 = vmax.f32 %v609, %v646
  %v983 = vmax.f32 %v612, %v647
  %v984 = vmax.f32 %v615, %v648
  %v985 = vmax.f32 %v969, %v681
  %v986 = vmax.f32 %v970, %v682
  %v987 = vmax.f32 %v971, %v683
  %v988 = vmax.f32 %v972, %v684
  %v989 = vmax.f32 %v973, %v685
  %v990 = vmax.f32 %v974, %v686
  %v991 = vmax.f32 %v975, %v687
  %v992 = vmax.f32 %v976, %v688
  %v993 = vmax.f32 %v977, %v689
  %v994 = vmax.f32 %v978, %v690
  %v995 = vmax.f32 %v979, %v691
  %v996 = vmax.f32 %v980, %v692
  %v997 = vmax.f32 %v981, %v693
  %v998 = vmax.f32 %v982, %v694
  %v999 = vmax.f32 %v983, %v695
  %v1000 = vmax.f32 %v984, %v696
  %v1001 = vmax.f32 %v985, %v729
  %v1002 = vmax.f32 %v986, %v730
  %v1003 = vmax.f32 %v987, %v731
  %v1004 = vmax.f32 %v988, %v732
  %v1005 = vmax.f32 %v989, %v733
  %v1006 = vmax.f32 %v990, %v734
  %v1007 = vmax.f32 %v991, %v735
  %v1008 = vmax.f32 %v992, %v736
  %v1009 = vmax.f32 %v993, %v737
  %v1010 = vmax.f32 %v994, %v738
  %v1011 = vmax.f32 %v995, %v739
  %v1012 = vmax.f32 %v996, %v740
  %v1013 = vmax.f32 %v997, %v741
  %v1014 = vmax.f32 %v998, %v742
  %v1015 = vmax.f32 %v999, %v743
  %v1016 = vmax.f32 %v1000, %v744
  %v1017 = vmax.f32 %v1001, %v777
  %v1018 = vmax.f32 %v1002, %v778
  %v1019 = vmax.f32 %v1003, %v779
  %v1020 = vmax.f32 %v1004, %v780
  %v1021 = vmax.f32 %v1005, %v781
  %v1022 = vmax.f32 %v1006, %v782
  %v1023 = vmax.f32 %v1007, %v783
  %v1024 = vmax.f32 %v1008, %v784
  %v1025 = vmax.f32 %v1009, %v785
  %v1026 = vmax.f32 %v1010, %v786
  %v1027 = vmax.f32 %v1011, %v787
  %v1028 = vmax.f32 %v1012, %v788
  %v1029 = vmax.f32 %v1013, %v789
  %v1030 = vmax.f32 %v1014, %v790
  %v1031 = vmax.f32 %v1015, %v791
  %v1032 = vmax.f32 %v1016, %v792
  %v1033 = vmax.f32 %v1017, %v825
  %v1034 = vmax.f32 %v1018, %v826
  %v1035 = vmax.f32 %v1019, %v827
  %v1036 = vmax.f32 %v1020, %v828
  %v1037 = vmax.f32 %v1021, %v829
  %v1038 = vmax.f32 %v1022, %v830
  %v1039 = vmax.f32 %v1023, %v831
  %v1040 = vmax.f32 %v1024, %v832
  %v1041 = vmax.f32 %v1025, %v833
  %v1042 = vmax.f32 %v1026, %v834
  %v1043 = vmax.f32 %v1027, %v835
  %v1044 = vmax.f32 %v1028, %v836
  %v1045 = vmax.f32 %v1029, %v837
  %v1046 = vmax.f32 %v1030, %v838
  %v1047 = vmax.f32 %v1031, %v839
  %v1048 = vmax.f32 %v1032, %v840
  %v1049 = vmax.f32 %v1033, %v873
  %v1050 = vmax.f32 %v1034, %v874
  %v1051 = vmax.f32 %v1035, %v875
  %v1052 = vmax.f32 %v1036, %v876
  %v1053 = vmax.f32 %v1037, %v877
  %v1054 = vmax.f32 %v1038, %v878
  %v1055 = vmax.f32 %v1039, %v879
  %v1056 = vmax.f32 %v1040, %v880
  %v1057 = vmax.f32 %v1041, %v881
  %v1058 = vmax.f32 %v1042, %v882
  %v1059 = vmax.f32 %v1043, %v883
  %v1060 = vmax.f32 %v1044, %v884
  %v1061 = vmax.f32 %v1045, %v885
  %v1062 = vmax.f32 %v1046, %v886
  %v1063 = vmax.f32 %v1047, %v887
  %v1064 = vmax.f32 %v1048, %v888
  %v1065 = vmax.f32 %v1049, %v921
  %v1066 = vmax.f32 %v1050, %v922
  %v1067 = vmax.f32 %v1051, %v923
  %v1068 = vmax.f32 %v1052, %v924
  %v1069 = vmax.f32 %v1053, %v925
  %v1070 = vmax.f32 %v1054, %v926
  %v1071 = vmax.f32 %v1055, %v927
  %v1072 = vmax.f32 %v1056, %v928
  %v1073 = vmax.f32 %v1057, %v929
  %v1074 = vmax.f32 %v1058, %v930
  %v1075 = vmax.f32 %v1059, %v931
  %v1076 = vmax.f32 %v1060, %v932
  %v1077 = vmax.f32 %v1061, %v933
  %v1078 = vmax.f32 %v1062, %v934
  %v1079 = vmax.f32 %v1063, %v935
  %v1080 = vmax.f32 %v1064, %v936
  %1097 = vrot.lane.b32.xlu0 %v953, 120
  %v1098 = vpop.permute.xlu0 %1097
  %1099 = vrot.lane.b32.xlu0 %v954, 120
  %v1100 = vpop.permute.xlu0 %1099
  %1101 = vrot.lane.b32.xlu0 %v955, 120
  %v1102 = vpop.permute.xlu0 %1101
  %1103 = vrot.lane.b32.xlu0 %v956, 120
  %v1104 = vpop.permute.xlu0 %1103
  %1105 = vrot.lane.b32.xlu0 %v957, 120
  %v1106 = vpop.permute.xlu0 %1105
  %1107 = vrot.lane.b32.xlu0 %v958, 120
  %v1108 = vpop.permute.xlu0 %1107
  %1109 = vrot.lane.b32.xlu0 %v959, 120
  %v1110 = vpop.permute.xlu0 %1109
  %1111 = vrot.lane.b32.xlu0 %v960, 120
  %v1112 = vpop.permute.xlu0 %1111
  %1113 = vrot.lane.b32.xlu0 %v961, 120
  %v1114 = vpop.permute.xlu0 %1113
  %1115 = vrot.lane.b32.xlu0 %v962, 120
  %v1116 = vpop.permute.xlu0 %1115
  %1117 = vrot.lane.b32.xlu0 %v963, 120
  %v1118 = vpop.permute.xlu0 %1117
  %1119 = vrot.lane.b32.xlu0 %v964, 120
  %v1120 = vpop.permute.xlu0 %1119
  %1121 = vrot.lane.b32.xlu0 %v965, 120
  %v1122 = vpop.permute.xlu0 %1121
  %1123 = vrot.lane.b32.xlu0 %v966, 120
  %v1124 = vpop.permute.xlu0 %1123
  %1125 = vrot.lane.b32.xlu0 %v967, 120
  %v1126 = vpop.permute.xlu0 %1125
  %1127 = vrot.lane.b32.xlu0 %v968, 120
  %v1128 = vpop.permute.xlu0 %1127
  %v1145 = vadd.f32 %v953, %v1098
  %v1146 = vadd.f32 %v954, %v1100
  %v1147 = vadd.f32 %v955, %v1102
  %v1148 = vadd.f32 %v956, %v1104
  %v1149 = vadd.f32 %v957, %v1106
  %v1150 = vadd.f32 %v958, %v1108
  %v1151 = vadd.f32 %v959, %v1110
  %v1152 = vadd.f32 %v960, %v1112
  %v1153 = vadd.f32 %v961, %v1114
  %v1154 = vadd.f32 %v962, %v1116
  %v1155 = vadd.f32 %v963, %v1118
  %v1156 = vadd.f32 %v964, %v1120
  %v1157 = vadd.f32 %v965, %v1122
  %v1158 = vadd.f32 %v966, %v1124
  %v1159 = vadd.f32 %v967, %v1126
  %v1160 = vadd.f32 %v968, %v1128
  %1161 = vrot.lane.b32.xlu0 %v953, 112
  %v1162 = vpop.permute.xlu0 %1161
  %1163 = vrot.lane.b32.xlu0 %v954, 112
  %v1164 = vpop.permute.xlu0 %1163
  %1165 = vrot.lane.b32.xlu0 %v955, 112
  %v1166 = vpop.permute.xlu0 %1165
  %1167 = vrot.lane.b32.xlu0 %v956, 112
  %v1168 = vpop.permute.xlu0 %1167
  %1169 = vrot.lane.b32.xlu0 %v957, 112
  %v1170 = vpop.permute.xlu0 %1169
  %1171 = vrot.lane.b32.xlu0 %v958, 112
  %v1172 = vpop.permute.xlu0 %1171
  %1173 = vrot.lane.b32.xlu0 %v959, 112
  %v1174 = vpop.permute.xlu0 %1173
  %1175 = vrot.lane.b32.xlu0 %v960, 112
  %v1176 = vpop.permute.xlu0 %1175
  %1177 = vrot.lane.b32.xlu0 %v961, 112
  %v1178 = vpop.permute.xlu0 %1177
  %1179 = vrot.lane.b32.xlu0 %v962, 112
  %v1180 = vpop.permute.xlu0 %1179
  %1181 = vrot.lane.b32.xlu0 %v963, 112
  %v1182 = vpop.permute.xlu0 %1181
  %1183 = vrot.lane.b32.xlu0 %v964, 112
  %v1184 = vpop.permute.xlu0 %1183
  %1185 = vrot.lane.b32.xlu0 %v965, 112
  %v1186 = vpop.permute.xlu0 %1185
  %1187 = vrot.lane.b32.xlu0 %v966, 112
  %v1188 = vpop.permute.xlu0 %1187
  %1189 = vrot.lane.b32.xlu0 %v967, 112
  %v1190 = vpop.permute.xlu0 %1189
  %1191 = vrot.lane.b32.xlu0 %v968, 112
  %v1192 = vpop.permute.xlu0 %1191
  %v1209 = vadd.f32 %v1145, %v1162
  %v1210 = vadd.f32 %v1146, %v1164
  %v1211 = vadd.f32 %v1147, %v1166
  %v1212 = vadd.f32 %v1148, %v1168
  %v1213 = vadd.f32 %v1149, %v1170
  %v1214 = vadd.f32 %v1150, %v1172
  %v1215 = vadd.f32 %v1151, %v1174
  %v1216 = vadd.f32 %v1152, %v1176
  %v1217 = vadd.f32 %v1153, %v1178
  %v1218 = vadd.f32 %v1154, %v1180
  %v1219 = vadd.f32 %v1155, %v1182
  %v1220 = vadd.f32 %v1156, %v1184
  %v1221 = vadd.f32 %v1157, %v1186
  %v1222 = vadd.f32 %v1158, %v1188
  %v1223 = vadd.f32 %v1159, %v1190
  %v1224 = vadd.f32 %v1160, %v1192
  %1225 = vrot.lane.b32.xlu0 %v953, 104
  %v1226 = vpop.permute.xlu0 %1225
  %1227 = vrot.lane.b32.xlu0 %v954, 104
  %v1228 = vpop.permute.xlu0 %1227
  %1229 = vrot.lane.b32.xlu0 %v955, 104
  %v1230 = vpop.permute.xlu0 %1229
  %1231 = vrot.lane.b32.xlu0 %v956, 104
  %v1232 = vpop.permute.xlu0 %1231
  %1233 = vrot.lane.b32.xlu0 %v957, 104
  %v1234 = vpop.permute.xlu0 %1233
  %1235 = vrot.lane.b32.xlu0 %v958, 104
  %v1236 = vpop.permute.xlu0 %1235
  %1237 = vrot.lane.b32.xlu0 %v959, 104
  %v1238 = vpop.permute.xlu0 %1237
  %1239 = vrot.lane.b32.xlu0 %v960, 104
  %v1240 = vpop.permute.xlu0 %1239
  %1241 = vrot.lane.b32.xlu0 %v961, 104
  %v1242 = vpop.permute.xlu0 %1241
  %1243 = vrot.lane.b32.xlu0 %v962, 104
  %v1244 = vpop.permute.xlu0 %1243
  %1245 = vrot.lane.b32.xlu0 %v963, 104
  %v1246 = vpop.permute.xlu0 %1245
  %1247 = vrot.lane.b32.xlu0 %v964, 104
  %v1248 = vpop.permute.xlu0 %1247
  %1249 = vrot.lane.b32.xlu0 %v965, 104
  %v1250 = vpop.permute.xlu0 %1249
  %1251 = vrot.lane.b32.xlu0 %v966, 104
  %v1252 = vpop.permute.xlu0 %1251
  %1253 = vrot.lane.b32.xlu0 %v967, 104
  %v1254 = vpop.permute.xlu0 %1253
  %1255 = vrot.lane.b32.xlu0 %v968, 104
  %v1256 = vpop.permute.xlu0 %1255
  %v1273 = vadd.f32 %v1209, %v1226
  %v1274 = vadd.f32 %v1210, %v1228
  %v1275 = vadd.f32 %v1211, %v1230
  %v1276 = vadd.f32 %v1212, %v1232
  %v1277 = vadd.f32 %v1213, %v1234
  %v1278 = vadd.f32 %v1214, %v1236
  %v1279 = vadd.f32 %v1215, %v1238
  %v1280 = vadd.f32 %v1216, %v1240
  %v1281 = vadd.f32 %v1217, %v1242
  %v1282 = vadd.f32 %v1218, %v1244
  %v1283 = vadd.f32 %v1219, %v1246
  %v1284 = vadd.f32 %v1220, %v1248
  %v1285 = vadd.f32 %v1221, %v1250
  %v1286 = vadd.f32 %v1222, %v1252
  %v1287 = vadd.f32 %v1223, %v1254
  %v1288 = vadd.f32 %v1224, %v1256
  %1289 = vrot.lane.b32.xlu0 %v953, 96
  %v1290 = vpop.permute.xlu0 %1289
  %1291 = vrot.lane.b32.xlu0 %v954, 96
  %v1292 = vpop.permute.xlu0 %1291
  %1293 = vrot.lane.b32.xlu0 %v955, 96
  %v1294 = vpop.permute.xlu0 %1293
  %1295 = vrot.lane.b32.xlu0 %v956, 96
  %v1296 = vpop.permute.xlu0 %1295
  %1297 = vrot.lane.b32.xlu0 %v957, 96
  %v1298 = vpop.permute.xlu0 %1297
  %1299 = vrot.lane.b32.xlu0 %v958, 96
  %v1300 = vpop.permute.xlu0 %1299
  %1301 = vrot.lane.b32.xlu0 %v959, 96
  %v1302 = vpop.permute.xlu0 %1301
  %1303 = vrot.lane.b32.xlu0 %v960, 96
  %v1304 = vpop.permute.xlu0 %1303
  %1305 = vrot.lane.b32.xlu0 %v961, 96
  %v1306 = vpop.permute.xlu0 %1305
  %1307 = vrot.lane.b32.xlu0 %v962, 96
  %v1308 = vpop.permute.xlu0 %1307
  %1309 = vrot.lane.b32.xlu0 %v963, 96
  %v1310 = vpop.permute.xlu0 %1309
  %1311 = vrot.lane.b32.xlu0 %v964, 96
  %v1312 = vpop.permute.xlu0 %1311
  %1313 = vrot.lane.b32.xlu0 %v965, 96
  %v1314 = vpop.permute.xlu0 %1313
  %1315 = vrot.lane.b32.xlu0 %v966, 96
  %v1316 = vpop.permute.xlu0 %1315
  %1317 = vrot.lane.b32.xlu0 %v967, 96
  %v1318 = vpop.permute.xlu0 %1317
  %1319 = vrot.lane.b32.xlu0 %v968, 96
  %v1320 = vpop.permute.xlu0 %1319
  %v1337 = vadd.f32 %v1273, %v1290
  %v1338 = vadd.f32 %v1274, %v1292
  %v1339 = vadd.f32 %v1275, %v1294
  %v1340 = vadd.f32 %v1276, %v1296
  %v1341 = vadd.f32 %v1277, %v1298
  %v1342 = vadd.f32 %v1278, %v1300
  %v1343 = vadd.f32 %v1279, %v1302
  %v1344 = vadd.f32 %v1280, %v1304
  %v1345 = vadd.f32 %v1281, %v1306
  %v1346 = vadd.f32 %v1282, %v1308
  %v1347 = vadd.f32 %v1283, %v1310
  %v1348 = vadd.f32 %v1284, %v1312
  %v1349 = vadd.f32 %v1285, %v1314
  %v1350 = vadd.f32 %v1286, %v1316
  %v1351 = vadd.f32 %v1287, %v1318
  %v1352 = vadd.f32 %v1288, %v1320
  %1353 = vrot.lane.b32.xlu0 %v953, 88
  %v1354 = vpop.permute.xlu0 %1353
  %1355 = vrot.lane.b32.xlu0 %v954, 88
  %v1356 = vpop.permute.xlu0 %1355
  %1357 = vrot.lane.b32.xlu0 %v955, 88
  %v1358 = vpop.permute.xlu0 %1357
  %1359 = vrot.lane.b32.xlu0 %v956, 88
  %v1360 = vpop.permute.xlu0 %1359
  %1361 = vrot.lane.b32.xlu0 %v957, 88
  %v1362 = vpop.permute.xlu0 %1361
  %1363 = vrot.lane.b32.xlu0 %v958, 88
  %v1364 = vpop.permute.xlu0 %1363
  %1365 = vrot.lane.b32.xlu0 %v959, 88
  %v1366 = vpop.permute.xlu0 %1365
  %1367 = vrot.lane.b32.xlu0 %v960, 88
  %v1368 = vpop.permute.xlu0 %1367
  %1369 = vrot.lane.b32.xlu0 %v961, 88
  %v1370 = vpop.permute.xlu0 %1369
  %1371 = vrot.lane.b32.xlu0 %v962, 88
  %v1372 = vpop.permute.xlu0 %1371
  %1373 = vrot.lane.b32.xlu0 %v963, 88
  %v1374 = vpop.permute.xlu0 %1373
  %1375 = vrot.lane.b32.xlu0 %v964, 88
  %v1376 = vpop.permute.xlu0 %1375
  %1377 = vrot.lane.b32.xlu0 %v965, 88
  %v1378 = vpop.permute.xlu0 %1377
  %1379 = vrot.lane.b32.xlu0 %v966, 88
  %v1380 = vpop.permute.xlu0 %1379
  %1381 = vrot.lane.b32.xlu0 %v967, 88
  %v1382 = vpop.permute.xlu0 %1381
  %1383 = vrot.lane.b32.xlu0 %v968, 88
  %v1384 = vpop.permute.xlu0 %1383
  %v1401 = vadd.f32 %v1337, %v1354
  %v1402 = vadd.f32 %v1338, %v1356
  %v1403 = vadd.f32 %v1339, %v1358
  %v1404 = vadd.f32 %v1340, %v1360
  %v1405 = vadd.f32 %v1341, %v1362
  %v1406 = vadd.f32 %v1342, %v1364
  %v1407 = vadd.f32 %v1343, %v1366
  %v1408 = vadd.f32 %v1344, %v1368
  %v1409 = vadd.f32 %v1345, %v1370
  %v1410 = vadd.f32 %v1346, %v1372
  %v1411 = vadd.f32 %v1347, %v1374
  %v1412 = vadd.f32 %v1348, %v1376
  %v1413 = vadd.f32 %v1349, %v1378
  %v1414 = vadd.f32 %v1350, %v1380
  %v1415 = vadd.f32 %v1351, %v1382
  %v1416 = vadd.f32 %v1352, %v1384
  %1417 = vrot.lane.b32.xlu0 %v953, 80
  %v1418 = vpop.permute.xlu0 %1417
  %1419 = vrot.lane.b32.xlu0 %v954, 80
  %v1420 = vpop.permute.xlu0 %1419
  %1421 = vrot.lane.b32.xlu0 %v955, 80
  %v1422 = vpop.permute.xlu0 %1421
  %1423 = vrot.lane.b32.xlu0 %v956, 80
  %v1424 = vpop.permute.xlu0 %1423
  %1425 = vrot.lane.b32.xlu0 %v957, 80
  %v1426 = vpop.permute.xlu0 %1425
  %1427 = vrot.lane.b32.xlu0 %v958, 80
  %v1428 = vpop.permute.xlu0 %1427
  %1429 = vrot.lane.b32.xlu0 %v959, 80
  %v1430 = vpop.permute.xlu0 %1429
  %1431 = vrot.lane.b32.xlu0 %v960, 80
  %v1432 = vpop.permute.xlu0 %1431
  %1433 = vrot.lane.b32.xlu0 %v961, 80
  %v1434 = vpop.permute.xlu0 %1433
  %1435 = vrot.lane.b32.xlu0 %v962, 80
  %v1436 = vpop.permute.xlu0 %1435
  %1437 = vrot.lane.b32.xlu0 %v963, 80
  %v1438 = vpop.permute.xlu0 %1437
  %1439 = vrot.lane.b32.xlu0 %v964, 80
  %v1440 = vpop.permute.xlu0 %1439
  %1441 = vrot.lane.b32.xlu0 %v965, 80
  %v1442 = vpop.permute.xlu0 %1441
  %1443 = vrot.lane.b32.xlu0 %v966, 80
  %v1444 = vpop.permute.xlu0 %1443
  %1445 = vrot.lane.b32.xlu0 %v967, 80
  %v1446 = vpop.permute.xlu0 %1445
  %1447 = vrot.lane.b32.xlu0 %v968, 80
  %v1448 = vpop.permute.xlu0 %1447
  %v1465 = vadd.f32 %v1401, %v1418
  %v1466 = vadd.f32 %v1402, %v1420
  %v1467 = vadd.f32 %v1403, %v1422
  %v1468 = vadd.f32 %v1404, %v1424
  %v1469 = vadd.f32 %v1405, %v1426
  %v1470 = vadd.f32 %v1406, %v1428
  %v1471 = vadd.f32 %v1407, %v1430
  %v1472 = vadd.f32 %v1408, %v1432
  %v1473 = vadd.f32 %v1409, %v1434
  %v1474 = vadd.f32 %v1410, %v1436
  %v1475 = vadd.f32 %v1411, %v1438
  %v1476 = vadd.f32 %v1412, %v1440
  %v1477 = vadd.f32 %v1413, %v1442
  %v1478 = vadd.f32 %v1414, %v1444
  %v1479 = vadd.f32 %v1415, %v1446
  %v1480 = vadd.f32 %v1416, %v1448
  %1481 = vrot.lane.b32.xlu0 %v953, 72
  %v1482 = vpop.permute.xlu0 %1481
  %1483 = vrot.lane.b32.xlu0 %v954, 72
  %v1484 = vpop.permute.xlu0 %1483
  %1485 = vrot.lane.b32.xlu0 %v955, 72
  %v1486 = vpop.permute.xlu0 %1485
  %1487 = vrot.lane.b32.xlu0 %v956, 72
  %v1488 = vpop.permute.xlu0 %1487
  %1489 = vrot.lane.b32.xlu0 %v957, 72
  %v1490 = vpop.permute.xlu0 %1489
  %1491 = vrot.lane.b32.xlu0 %v958, 72
  %v1492 = vpop.permute.xlu0 %1491
  %1493 = vrot.lane.b32.xlu0 %v959, 72
  %v1494 = vpop.permute.xlu0 %1493
  %1495 = vrot.lane.b32.xlu0 %v960, 72
  %v1496 = vpop.permute.xlu0 %1495
  %1497 = vrot.lane.b32.xlu0 %v961, 72
  %v1498 = vpop.permute.xlu0 %1497
  %1499 = vrot.lane.b32.xlu0 %v962, 72
  %v1500 = vpop.permute.xlu0 %1499
  %1501 = vrot.lane.b32.xlu0 %v963, 72
  %v1502 = vpop.permute.xlu0 %1501
  %1503 = vrot.lane.b32.xlu0 %v964, 72
  %v1504 = vpop.permute.xlu0 %1503
  %1505 = vrot.lane.b32.xlu0 %v965, 72
  %v1506 = vpop.permute.xlu0 %1505
  %1507 = vrot.lane.b32.xlu0 %v966, 72
  %v1508 = vpop.permute.xlu0 %1507
  %1509 = vrot.lane.b32.xlu0 %v967, 72
  %v1510 = vpop.permute.xlu0 %1509
  %1511 = vrot.lane.b32.xlu0 %v968, 72
  %v1512 = vpop.permute.xlu0 %1511
  %v1529 = vadd.f32 %v1465, %v1482
  %v1530 = vadd.f32 %v1466, %v1484
  %v1531 = vadd.f32 %v1467, %v1486
  %v1532 = vadd.f32 %v1468, %v1488
  %v1533 = vadd.f32 %v1469, %v1490
  %v1534 = vadd.f32 %v1470, %v1492
  %v1535 = vadd.f32 %v1471, %v1494
  %v1536 = vadd.f32 %v1472, %v1496
  %v1537 = vadd.f32 %v1473, %v1498
  %v1538 = vadd.f32 %v1474, %v1500
  %v1539 = vadd.f32 %v1475, %v1502
  %v1540 = vadd.f32 %v1476, %v1504
  %v1541 = vadd.f32 %v1477, %v1506
  %v1542 = vadd.f32 %v1478, %v1508
  %v1543 = vadd.f32 %v1479, %v1510
  %v1544 = vadd.f32 %v1480, %v1512
  %1561 = vrot.lane.b32.xlu0 %v1065, 120
  %v1562 = vpop.permute.xlu0 %1561
  %1563 = vrot.lane.b32.xlu0 %v1066, 120
  %v1564 = vpop.permute.xlu0 %1563
  %1565 = vrot.lane.b32.xlu0 %v1067, 120
  %v1566 = vpop.permute.xlu0 %1565
  %1567 = vrot.lane.b32.xlu0 %v1068, 120
  %v1568 = vpop.permute.xlu0 %1567
  %1569 = vrot.lane.b32.xlu0 %v1069, 120
  %v1570 = vpop.permute.xlu0 %1569
  %1571 = vrot.lane.b32.xlu0 %v1070, 120
  %v1572 = vpop.permute.xlu0 %1571
  %1573 = vrot.lane.b32.xlu0 %v1071, 120
  %v1574 = vpop.permute.xlu0 %1573
  %1575 = vrot.lane.b32.xlu0 %v1072, 120
  %v1576 = vpop.permute.xlu0 %1575
  %1577 = vrot.lane.b32.xlu0 %v1073, 120
  %v1578 = vpop.permute.xlu0 %1577
  %1579 = vrot.lane.b32.xlu0 %v1074, 120
  %v1580 = vpop.permute.xlu0 %1579
  %1581 = vrot.lane.b32.xlu0 %v1075, 120
  %v1582 = vpop.permute.xlu0 %1581
  %1583 = vrot.lane.b32.xlu0 %v1076, 120
  %v1584 = vpop.permute.xlu0 %1583
  %1585 = vrot.lane.b32.xlu0 %v1077, 120
  %v1586 = vpop.permute.xlu0 %1585
  %1587 = vrot.lane.b32.xlu0 %v1078, 120
  %v1588 = vpop.permute.xlu0 %1587
  %1589 = vrot.lane.b32.xlu0 %v1079, 120
  %v1590 = vpop.permute.xlu0 %1589
  %1591 = vrot.lane.b32.xlu0 %v1080, 120
  %v1592 = vpop.permute.xlu0 %1591
  %v1609 = vmax.f32 %v1065, %v1562
  %v1610 = vmax.f32 %v1066, %v1564
  %v1611 = vmax.f32 %v1067, %v1566
  %v1612 = vmax.f32 %v1068, %v1568
  %v1613 = vmax.f32 %v1069, %v1570
  %v1614 = vmax.f32 %v1070, %v1572
  %v1615 = vmax.f32 %v1071, %v1574
  %v1616 = vmax.f32 %v1072, %v1576
  %v1617 = vmax.f32 %v1073, %v1578
  %v1618 = vmax.f32 %v1074, %v1580
  %v1619 = vmax.f32 %v1075, %v1582
  %v1620 = vmax.f32 %v1076, %v1584
  %v1621 = vmax.f32 %v1077, %v1586
  %v1622 = vmax.f32 %v1078, %v1588
  %v1623 = vmax.f32 %v1079, %v1590
  %v1624 = vmax.f32 %v1080, %v1592
  %1625 = vrot.lane.b32.xlu0 %v1065, 112
  %v1626 = vpop.permute.xlu0 %1625
  %1627 = vrot.lane.b32.xlu0 %v1066, 112
  %v1628 = vpop.permute.xlu0 %1627
  %1629 = vrot.lane.b32.xlu0 %v1067, 112
  %v1630 = vpop.permute.xlu0 %1629
  %1631 = vrot.lane.b32.xlu0 %v1068, 112
  %v1632 = vpop.permute.xlu0 %1631
  %1633 = vrot.lane.b32.xlu0 %v1069, 112
  %v1634 = vpop.permute.xlu0 %1633
  %1635 = vrot.lane.b32.xlu0 %v1070, 112
  %v1636 = vpop.permute.xlu0 %1635
  %1637 = vrot.lane.b32.xlu0 %v1071, 112
  %v1638 = vpop.permute.xlu0 %1637
  %1639 = vrot.lane.b32.xlu0 %v1072, 112
  %v1640 = vpop.permute.xlu0 %1639
  %1641 = vrot.lane.b32.xlu0 %v1073, 112
  %v1642 = vpop.permute.xlu0 %1641
  %1643 = vrot.lane.b32.xlu0 %v1074, 112
  %v1644 = vpop.permute.xlu0 %1643
  %1645 = vrot.lane.b32.xlu0 %v1075, 112
  %v1646 = vpop.permute.xlu0 %1645
  %1647 = vrot.lane.b32.xlu0 %v1076, 112
  %v1648 = vpop.permute.xlu0 %1647
  %1649 = vrot.lane.b32.xlu0 %v1077, 112
  %v1650 = vpop.permute.xlu0 %1649
  %1651 = vrot.lane.b32.xlu0 %v1078, 112
  %v1652 = vpop.permute.xlu0 %1651
  %1653 = vrot.lane.b32.xlu0 %v1079, 112
  %v1654 = vpop.permute.xlu0 %1653
  %1655 = vrot.lane.b32.xlu0 %v1080, 112
  %v1656 = vpop.permute.xlu0 %1655
  %v1673 = vmax.f32 %v1609, %v1626
  %v1674 = vmax.f32 %v1610, %v1628
  %v1675 = vmax.f32 %v1611, %v1630
  %v1676 = vmax.f32 %v1612, %v1632
  %v1677 = vmax.f32 %v1613, %v1634
  %v1678 = vmax.f32 %v1614, %v1636
  %v1679 = vmax.f32 %v1615, %v1638
  %v1680 = vmax.f32 %v1616, %v1640
  %v1681 = vmax.f32 %v1617, %v1642
  %v1682 = vmax.f32 %v1618, %v1644
  %v1683 = vmax.f32 %v1619, %v1646
  %v1684 = vmax.f32 %v1620, %v1648
  %v1685 = vmax.f32 %v1621, %v1650
  %v1686 = vmax.f32 %v1622, %v1652
  %v1687 = vmax.f32 %v1623, %v1654
  %v1688 = vmax.f32 %v1624, %v1656
  %1689 = vrot.lane.b32.xlu0 %v1065, 104
  %v1690 = vpop.permute.xlu0 %1689
  %1691 = vrot.lane.b32.xlu0 %v1066, 104
  %v1692 = vpop.permute.xlu0 %1691
  %1693 = vrot.lane.b32.xlu0 %v1067, 104
  %v1694 = vpop.permute.xlu0 %1693
  %1695 = vrot.lane.b32.xlu0 %v1068, 104
  %v1696 = vpop.permute.xlu0 %1695
  %1697 = vrot.lane.b32.xlu0 %v1069, 104
  %v1698 = vpop.permute.xlu0 %1697
  %1699 = vrot.lane.b32.xlu0 %v1070, 104
  %v1700 = vpop.permute.xlu0 %1699
  %1701 = vrot.lane.b32.xlu0 %v1071, 104
  %v1702 = vpop.permute.xlu0 %1701
  %1703 = vrot.lane.b32.xlu0 %v1072, 104
  %v1704 = vpop.permute.xlu0 %1703
  %1705 = vrot.lane.b32.xlu0 %v1073, 104
  %v1706 = vpop.permute.xlu0 %1705
  %1707 = vrot.lane.b32.xlu0 %v1074, 104
  %v1708 = vpop.permute.xlu0 %1707
  %1709 = vrot.lane.b32.xlu0 %v1075, 104
  %v1710 = vpop.permute.xlu0 %1709
  %1711 = vrot.lane.b32.xlu0 %v1076, 104
  %v1712 = vpop.permute.xlu0 %1711
  %1713 = vrot.lane.b32.xlu0 %v1077, 104
  %v1714 = vpop.permute.xlu0 %1713
  %1715 = vrot.lane.b32.xlu0 %v1078, 104
  %v1716 = vpop.permute.xlu0 %1715
  %1717 = vrot.lane.b32.xlu0 %v1079, 104
  %v1718 = vpop.permute.xlu0 %1717
  %1719 = vrot.lane.b32.xlu0 %v1080, 104
  %v1720 = vpop.permute.xlu0 %1719
  %v1737 = vmax.f32 %v1673, %v1690
  %v1738 = vmax.f32 %v1674, %v1692
  %v1739 = vmax.f32 %v1675, %v1694
  %v1740 = vmax.f32 %v1676, %v1696
  %v1741 = vmax.f32 %v1677, %v1698
  %v1742 = vmax.f32 %v1678, %v1700
  %v1743 = vmax.f32 %v1679, %v1702
  %v1744 = vmax.f32 %v1680, %v1704
  %v1745 = vmax.f32 %v1681, %v1706
  %v1746 = vmax.f32 %v1682, %v1708
  %v1747 = vmax.f32 %v1683, %v1710
  %v1748 = vmax.f32 %v1684, %v1712
  %v1749 = vmax.f32 %v1685, %v1714
  %v1750 = vmax.f32 %v1686, %v1716
  %v1751 = vmax.f32 %v1687, %v1718
  %v1752 = vmax.f32 %v1688, %v1720
  %1753 = vrot.lane.b32.xlu0 %v1065, 96
  %v1754 = vpop.permute.xlu0 %1753
  %1755 = vrot.lane.b32.xlu0 %v1066, 96
  %v1756 = vpop.permute.xlu0 %1755
  %1757 = vrot.lane.b32.xlu0 %v1067, 96
  %v1758 = vpop.permute.xlu0 %1757
  %1759 = vrot.lane.b32.xlu0 %v1068, 96
  %v1760 = vpop.permute.xlu0 %1759
  %1761 = vrot.lane.b32.xlu0 %v1069, 96
  %v1762 = vpop.permute.xlu0 %1761
  %1763 = vrot.lane.b32.xlu0 %v1070, 96
  %v1764 = vpop.permute.xlu0 %1763
  %1765 = vrot.lane.b32.xlu0 %v1071, 96
  %v1766 = vpop.permute.xlu0 %1765
  %1767 = vrot.lane.b32.xlu0 %v1072, 96
  %v1768 = vpop.permute.xlu0 %1767
  %1769 = vrot.lane.b32.xlu0 %v1073, 96
  %v1770 = vpop.permute.xlu0 %1769
  %1771 = vrot.lane.b32.xlu0 %v1074, 96
  %v1772 = vpop.permute.xlu0 %1771
  %1773 = vrot.lane.b32.xlu0 %v1075, 96
  %v1774 = vpop.permute.xlu0 %1773
  %1775 = vrot.lane.b32.xlu0 %v1076, 96
  %v1776 = vpop.permute.xlu0 %1775
  %1777 = vrot.lane.b32.xlu0 %v1077, 96
  %v1778 = vpop.permute.xlu0 %1777
  %1779 = vrot.lane.b32.xlu0 %v1078, 96
  %v1780 = vpop.permute.xlu0 %1779
  %1781 = vrot.lane.b32.xlu0 %v1079, 96
  %v1782 = vpop.permute.xlu0 %1781
  %1783 = vrot.lane.b32.xlu0 %v1080, 96
  %v1784 = vpop.permute.xlu0 %1783
  %v1801 = vmax.f32 %v1737, %v1754
  %v1802 = vmax.f32 %v1738, %v1756
  %v1803 = vmax.f32 %v1739, %v1758
  %v1804 = vmax.f32 %v1740, %v1760
  %v1805 = vmax.f32 %v1741, %v1762
  %v1806 = vmax.f32 %v1742, %v1764
  %v1807 = vmax.f32 %v1743, %v1766
  %v1808 = vmax.f32 %v1744, %v1768
  %v1809 = vmax.f32 %v1745, %v1770
  %v1810 = vmax.f32 %v1746, %v1772
  %v1811 = vmax.f32 %v1747, %v1774
  %v1812 = vmax.f32 %v1748, %v1776
  %v1813 = vmax.f32 %v1749, %v1778
  %v1814 = vmax.f32 %v1750, %v1780
  %v1815 = vmax.f32 %v1751, %v1782
  %v1816 = vmax.f32 %v1752, %v1784
  %1817 = vrot.lane.b32.xlu0 %v1065, 88
  %v1818 = vpop.permute.xlu0 %1817
  %1819 = vrot.lane.b32.xlu0 %v1066, 88
  %v1820 = vpop.permute.xlu0 %1819
  %1821 = vrot.lane.b32.xlu0 %v1067, 88
  %v1822 = vpop.permute.xlu0 %1821
  %1823 = vrot.lane.b32.xlu0 %v1068, 88
  %v1824 = vpop.permute.xlu0 %1823
  %1825 = vrot.lane.b32.xlu0 %v1069, 88
  %v1826 = vpop.permute.xlu0 %1825
  %1827 = vrot.lane.b32.xlu0 %v1070, 88
  %v1828 = vpop.permute.xlu0 %1827
  %1829 = vrot.lane.b32.xlu0 %v1071, 88
  %v1830 = vpop.permute.xlu0 %1829
  %1831 = vrot.lane.b32.xlu0 %v1072, 88
  %v1832 = vpop.permute.xlu0 %1831
  %1833 = vrot.lane.b32.xlu0 %v1073, 88
  %v1834 = vpop.permute.xlu0 %1833
  %1835 = vrot.lane.b32.xlu0 %v1074, 88
  %v1836 = vpop.permute.xlu0 %1835
  %1837 = vrot.lane.b32.xlu0 %v1075, 88
  %v1838 = vpop.permute.xlu0 %1837
  %1839 = vrot.lane.b32.xlu0 %v1076, 88
  %v1840 = vpop.permute.xlu0 %1839
  %1841 = vrot.lane.b32.xlu0 %v1077, 88
  %v1842 = vpop.permute.xlu0 %1841
  %1843 = vrot.lane.b32.xlu0 %v1078, 88
  %v1844 = vpop.permute.xlu0 %1843
  %1845 = vrot.lane.b32.xlu0 %v1079, 88
  %v1846 = vpop.permute.xlu0 %1845
  %1847 = vrot.lane.b32.xlu0 %v1080, 88
  %v1848 = vpop.permute.xlu0 %1847
  %v1865 = vmax.f32 %v1801, %v1818
  %v1866 = vmax.f32 %v1802, %v1820
  %v1867 = vmax.f32 %v1803, %v1822
  %v1868 = vmax.f32 %v1804, %v1824
  %v1869 = vmax.f32 %v1805, %v1826
  %v1870 = vmax.f32 %v1806, %v1828
  %v1871 = vmax.f32 %v1807, %v1830
  %v1872 = vmax.f32 %v1808, %v1832
  %v1873 = vmax.f32 %v1809, %v1834
  %v1874 = vmax.f32 %v1810, %v1836
  %v1875 = vmax.f32 %v1811, %v1838
  %v1876 = vmax.f32 %v1812, %v1840
  %v1877 = vmax.f32 %v1813, %v1842
  %v1878 = vmax.f32 %v1814, %v1844
  %v1879 = vmax.f32 %v1815, %v1846
  %v1880 = vmax.f32 %v1816, %v1848
  %1881 = vrot.lane.b32.xlu0 %v1065, 80
  %v1882 = vpop.permute.xlu0 %1881
  %1883 = vrot.lane.b32.xlu0 %v1066, 80
  %v1884 = vpop.permute.xlu0 %1883
  %1885 = vrot.lane.b32.xlu0 %v1067, 80
  %v1886 = vpop.permute.xlu0 %1885
  %1887 = vrot.lane.b32.xlu0 %v1068, 80
  %v1888 = vpop.permute.xlu0 %1887
  %1889 = vrot.lane.b32.xlu0 %v1069, 80
  %v1890 = vpop.permute.xlu0 %1889
  %1891 = vrot.lane.b32.xlu0 %v1070, 80
  %v1892 = vpop.permute.xlu0 %1891
  %1893 = vrot.lane.b32.xlu0 %v1071, 80
  %v1894 = vpop.permute.xlu0 %1893
  %1895 = vrot.lane.b32.xlu0 %v1072, 80
  %v1896 = vpop.permute.xlu0 %1895
  %1897 = vrot.lane.b32.xlu0 %v1073, 80
  %v1898 = vpop.permute.xlu0 %1897
  %1899 = vrot.lane.b32.xlu0 %v1074, 80
  %v1900 = vpop.permute.xlu0 %1899
  %1901 = vrot.lane.b32.xlu0 %v1075, 80
  %v1902 = vpop.permute.xlu0 %1901
  %1903 = vrot.lane.b32.xlu0 %v1076, 80
  %v1904 = vpop.permute.xlu0 %1903
  %1905 = vrot.lane.b32.xlu0 %v1077, 80
  %v1906 = vpop.permute.xlu0 %1905
  %1907 = vrot.lane.b32.xlu0 %v1078, 80
  %v1908 = vpop.permute.xlu0 %1907
  %1909 = vrot.lane.b32.xlu0 %v1079, 80
  %v1910 = vpop.permute.xlu0 %1909
  %1911 = vrot.lane.b32.xlu0 %v1080, 80
  %v1912 = vpop.permute.xlu0 %1911
  %v1929 = vmax.f32 %v1865, %v1882
  %v1930 = vmax.f32 %v1866, %v1884
  %v1931 = vmax.f32 %v1867, %v1886
  %v1932 = vmax.f32 %v1868, %v1888
  %v1933 = vmax.f32 %v1869, %v1890
  %v1934 = vmax.f32 %v1870, %v1892
  %v1935 = vmax.f32 %v1871, %v1894
  %v1936 = vmax.f32 %v1872, %v1896
  %v1937 = vmax.f32 %v1873, %v1898
  %v1938 = vmax.f32 %v1874, %v1900
  %v1939 = vmax.f32 %v1875, %v1902
  %v1940 = vmax.f32 %v1876, %v1904
  %v1941 = vmax.f32 %v1877, %v1906
  %v1942 = vmax.f32 %v1878, %v1908
  %v1943 = vmax.f32 %v1879, %v1910
  %v1944 = vmax.f32 %v1880, %v1912
  %1945 = vrot.lane.b32.xlu0 %v1065, 72
  %v1946 = vpop.permute.xlu0 %1945
  %1947 = vrot.lane.b32.xlu0 %v1066, 72
  %v1948 = vpop.permute.xlu0 %1947
  %1949 = vrot.lane.b32.xlu0 %v1067, 72
  %v1950 = vpop.permute.xlu0 %1949
  %1951 = vrot.lane.b32.xlu0 %v1068, 72
  %v1952 = vpop.permute.xlu0 %1951
  %1953 = vrot.lane.b32.xlu0 %v1069, 72
  %v1954 = vpop.permute.xlu0 %1953
  %1955 = vrot.lane.b32.xlu0 %v1070, 72
  %v1956 = vpop.permute.xlu0 %1955
  %1957 = vrot.lane.b32.xlu0 %v1071, 72
  %v1958 = vpop.permute.xlu0 %1957
  %1959 = vrot.lane.b32.xlu0 %v1072, 72
  %v1960 = vpop.permute.xlu0 %1959
  %1961 = vrot.lane.b32.xlu0 %v1073, 72
  %v1962 = vpop.permute.xlu0 %1961
  %1963 = vrot.lane.b32.xlu0 %v1074, 72
  %v1964 = vpop.permute.xlu0 %1963
  %1965 = vrot.lane.b32.xlu0 %v1075, 72
  %v1966 = vpop.permute.xlu0 %1965
  %1967 = vrot.lane.b32.xlu0 %v1076, 72
  %v1968 = vpop.permute.xlu0 %1967
  %1969 = vrot.lane.b32.xlu0 %v1077, 72
  %v1970 = vpop.permute.xlu0 %1969
  %1971 = vrot.lane.b32.xlu0 %v1078, 72
  %v1972 = vpop.permute.xlu0 %1971
  %1973 = vrot.lane.b32.xlu0 %v1079, 72
  %v1974 = vpop.permute.xlu0 %1973
  %1975 = vrot.lane.b32.xlu0 %v1080, 72
  %v1976 = vpop.permute.xlu0 %1975
  %v1993 = vmax.f32 %v1929, %v1946
  %v1994 = vmax.f32 %v1930, %v1948
  %v1995 = vmax.f32 %v1931, %v1950
  %v1996 = vmax.f32 %v1932, %v1952
  %v1997 = vmax.f32 %v1933, %v1954
  %v1998 = vmax.f32 %v1934, %v1956
  %v1999 = vmax.f32 %v1935, %v1958
  %v2000 = vmax.f32 %v1936, %v1960
  %v2001 = vmax.f32 %v1937, %v1962
  %v2002 = vmax.f32 %v1938, %v1964
  %v2003 = vmax.f32 %v1939, %v1966
  %v2004 = vmax.f32 %v1940, %v1968
  %v2005 = vmax.f32 %v1941, %v1970
  %v2006 = vmax.f32 %v1942, %v1972
  %v2007 = vmax.f32 %v1943, %v1974
  %v2008 = vmax.f32 %v1944, %v1976
  %v2009 = vld [vmem:[%s2] sm:$0x1]
  %v2010 = vmul.f32 %v1529, 0.015625
  %v2011 = vmul.f32 %v1530, 0.015625
  %v2012 = vmul.f32 %v1531, 0.015625
  %v2013 = vmul.f32 %v1532, 0.015625
  %v2014 = vmul.f32 %v1533, 0.015625
  %v2015 = vmul.f32 %v1534, 0.015625
  %v2016 = vmul.f32 %v1535, 0.015625
  %v2017 = vmul.f32 %v1536, 0.015625
  %v2018 = vmul.f32 %v1537, 0.015625
  %v2019 = vmul.f32 %v1538, 0.015625
  %v2020 = vmul.f32 %v1539, 0.015625
  %v2021 = vmul.f32 %v1540, 0.015625
  %v2022 = vmul.f32 %v1541, 0.015625
  %v2023 = vmul.f32 %v1542, 0.015625
  %v2024 = vmul.f32 %v1543, 0.015625
  %v2025 = vmul.f32 %v1544, 0.015625
  %v2027 = vperm.slane %v2009, 0
  %v2029 = vadd.f32 %v2010, %v2027
  %v2030 = vadd.f32 %v2011, %v2027
  %v2031 = vadd.f32 %v2012, %v2027
  %v2032 = vadd.f32 %v2013, %v2027
  %v2033 = vadd.f32 %v2014, %v2027
  %v2034 = vadd.f32 %v2015, %v2027
  %v2035 = vadd.f32 %v2016, %v2027
  %v2036 = vadd.f32 %v2017, %v2027
  %v2037 = vadd.f32 %v2018, %v2027
  %v2038 = vadd.f32 %v2019, %v2027
  %v2039 = vadd.f32 %v2020, %v2027
  %v2040 = vadd.f32 %v2021, %v2027
  %v2041 = vadd.f32 %v2022, %v2027
  %v2042 = vadd.f32 %v2023, %v2027
  %v2043 = vadd.f32 %v2024, %v2027
  %v2044 = vadd.f32 %v2025, %v2027
  %v2045 = vadd.f32 %v1993, %v2027
  %v2046 = vadd.f32 %v1994, %v2027
  %v2047 = vadd.f32 %v1995, %v2027
  %v2048 = vadd.f32 %v1996, %v2027
  %v2049 = vadd.f32 %v1997, %v2027
  %v2050 = vadd.f32 %v1998, %v2027
  %v2051 = vadd.f32 %v1999, %v2027
  %v2052 = vadd.f32 %v2000, %v2027
  %v2053 = vadd.f32 %v2001, %v2027
  %v2054 = vadd.f32 %v2002, %v2027
  %v2055 = vadd.f32 %v2003, %v2027
  %v2056 = vadd.f32 %v2004, %v2027
  %v2057 = vadd.f32 %v2005, %v2027
  %v2058 = vadd.f32 %v2006, %v2027
  %v2059 = vadd.f32 %v2007, %v2027
  %v2060 = vadd.f32 %v2008, %v2027
  %v2077 = vrot.slane %v2030, 7
  %vm2078 = vcmask 1041409
  %v2079 = vsel %vm2078, %v2077, %v2029
  %v2080 = vrot.slane %v2031, 6
  %vm2081 = vcmask 1042434
  %v2082 = vsel %vm2081, %v2080, %v2079
  %v2083 = vrot.slane %v2032, 5
  %vm2084 = vcmask 1043459
  %v2085 = vsel %vm2084, %v2083, %v2082
  %v2086 = vrot.slane %v2033, 4
  %vm2087 = vcmask 1044484
  %v2088 = vsel %vm2087, %v2086, %v2085
  %v2089 = vrot.slane %v2034, 3
  %vm2090 = vcmask 1045509
  %v2091 = vsel %vm2090, %v2089, %v2088
  %v2092 = vrot.slane %v2035, 2
  %vm2093 = vcmask 1046534
  %v2094 = vsel %vm2093, %v2092, %v2091
  %v2095 = vrot.slane %v2036, 1
  %vm2096 = vcmask 1047559
  %v2097 = vsel %vm2096, %v2095, %v2094
  %v2098 = vrot.slane %v2038, 7
  %v2099 = vsel %vm2078, %v2098, %v2037
  %v2100 = vrot.slane %v2039, 6
  %v2101 = vsel %vm2081, %v2100, %v2099
  %v2102 = vrot.slane %v2040, 5
  %v2103 = vsel %vm2084, %v2102, %v2101
  %v2104 = vrot.slane %v2041, 4
  %v2105 = vsel %vm2087, %v2104, %v2103
  %v2106 = vrot.slane %v2042, 3
  %v2107 = vsel %vm2090, %v2106, %v2105
  %v2108 = vrot.slane %v2043, 2
  %v2109 = vsel %vm2093, %v2108, %v2107
  %v2110 = vrot.slane %v2044, 1
  %v2111 = vsel %vm2096, %v2110, %v2109
  %v2130 = vrot.slane %v2046, 7
  %v2131 = vsel %vm2078, %v2130, %v2045
  %v2132 = vrot.slane %v2047, 6
  %v2133 = vsel %vm2081, %v2132, %v2131
  %v2134 = vrot.slane %v2048, 5
  %v2135 = vsel %vm2084, %v2134, %v2133
  %v2136 = vrot.slane %v2049, 4
  %v2137 = vsel %vm2087, %v2136, %v2135
  %v2138 = vrot.slane %v2050, 3
  %v2139 = vsel %vm2090, %v2138, %v2137
  %v2140 = vrot.slane %v2051, 2
  %v2141 = vsel %vm2093, %v2140, %v2139
  %v2142 = vrot.slane %v2052, 1
  %v2143 = vsel %vm2096, %v2142, %v2141
  %v2144 = vrot.slane %v2054, 7
  %v2145 = vsel %vm2078, %v2144, %v2053
  %v2146 = vrot.slane %v2055, 6
  %v2147 = vsel %vm2081, %v2146, %v2145
  %v2148 = vrot.slane %v2056, 5
  %v2149 = vsel %vm2084, %v2148, %v2147
  %v2150 = vrot.slane %v2057, 4
  %v2151 = vsel %vm2087, %v2150, %v2149
  %v2152 = vrot.slane %v2058, 3
  %v2153 = vsel %vm2090, %v2152, %v2151
  %v2154 = vrot.slane %v2059, 2
  %v2155 = vsel %vm2093, %v2154, %v2153
  %v2156 = vrot.slane %v2060, 1
  %v2157 = vsel %vm2096, %v2156, %v2155
  %2158 = vrot.lane.b32.xlu0 %v2143, 8
  %v2159 = vpop.permute.xlu0 %2158
  %2160 = vrot.lane.b32.xlu0 %v2157, 8
  %v2161 = vpop.permute.xlu0 %2160
  %vm2164 = vcmask 64512
  %v2165 = vsel %vm2164, %v2097, %v2159
  %v2166 = vsel %vm2164, %v2111, %v2161
  %2167 = vst.msk [vmem:[%s3] sm:$0xff] %vm292, %v2165
  %2168 = vst.msk [vmem:[%s3 + $0x8] sm:$0xff] %vm292, %v2166
  // Predicated region
  $region14: #{rnn_attention_pallas.3} parent=0 // pred_check
    _
  $region15: #{rnn_attention_pallas.3} parent=0 // pred_check_branch
    %2170 = sbr.rel (0) target = $region17
  $region16: #{rnn_attention_pallas.3} parent=0 // pred_region
    _
  $region17: #{rnn_attention_pallas.3} parent=0 // pred_fallthru
    _
  // Predicated region
  $region18: #{rnn_attention_pallas.3} parent=0 // pred_check
    _
  $region19: #{rnn_attention_pallas.3} parent=0 // pred_check_branch
    %2172 = sbr.rel (0) target = $region21
  $region20: #{rnn_attention_pallas.3} parent=0 // pred_region
    _
  $region21: #{rnn_attention_pallas.3} parent=0 // pred_fallthru
    _

// kernel: rnn_attention_pallas.4
$region0: #{rnn_attention_pallas.4}
  #allocation0 [shape = 'u32[]', space=smem, size = 0x4, offset = 0x4, fixed_abs, tag = 'smem constant byte address 0x4 - core index']
  #allocation1 [shape = 'u32[72,128]{1,0:T(1,128)}', space=vmem, size = 0x9000, scoped, tag = 'internal scratch']
  #allocation2 [shape = 'f32[2,3,16,16]{3,2,1,0:T(8,128)}', space=vmem, size = 0xc000, scoped, tag = 'scratch operand']
  #allocation3 [shape = 'f32[16,16]{1,0:T(8,128)}', space=vmem, size = 0x2000, scoped, tag = 'scratch operand']
  #allocation4 [shape = 'f32[16,16]{1,0:T(8,128)}', space=vmem, size = 0x2000, scoped, tag = 'scratch operand']
  %s0 = inlined_call_operand.vmem [shape: f32[16,16], index: 0, kind: input, shape index: {}]
  %s1 = inlined_call_operand.vmem [shape: f32[2,3,16,16], index: 1, kind: input, shape index: {}]
  %s2 = inlined_call_operand.vmem [shape: f32[2,3,16,16], index: 2, kind: input, shape index: {}]
  %s3 = inlined_call_operand.vmem [shape: f32[2,4,1,16], index: 3, kind: input, shape index: {}]
  %s4 = inlined_call_operand.vmem [shape: f32[16,4], index: 4, kind: input, shape index: {}]
  %s5 = inlined_call_operand.vmem [shape: f32[16,4], index: 5, kind: input, shape index: {}]
  %s6 = inlined_call_operand.vmem [shape: f32[1,4], index: 6, kind: input, shape index: {}]
  %s7 = inlined_call_operand.vmem [shape: f32[16,4], index: 7, kind: output, shape index: {}]
  %s8 = sld [smem:[#allocation0]]
  $region38: #{rnn_attention_pallas.4} parent=0
    _
  %s10 = ssub.s32 1, %s8
  %s11 = scalar_select 0, %s10, %s8
  // Predicated region
  $region2: #{rnn_attention_pallas.4} parent=0 // pred_check
    _
  $region3: #{rnn_attention_pallas.4} parent=0 // pred_check_branch
    %13 = sbr.rel (0) target = $region5
  $region4: #{rnn_attention_pallas.4} parent=0 // pred_region
    _
  $region5: #{rnn_attention_pallas.4} parent=0 // pred_fallthru
    _
  // Predicated region
  $region6: #{rnn_attention_pallas.4} parent=0 // pred_check
    _
  $region7: #{rnn_attention_pallas.4} parent=0 // pred_check_branch
    %15 = sbr.rel (0) target = $region9
  $region8: #{rnn_attention_pallas.4} parent=0 // pred_region
    _
  $region9: #{rnn_attention_pallas.4} parent=0 // pred_fallthru
    _
  // Predicated region
  $region10: #{rnn_attention_pallas.4} parent=0 // pred_check
    _
  $region11: #{rnn_attention_pallas.4} parent=0 // pred_check_branch
    %17 = sbr.rel (0) target = $region13
  $region12: #{rnn_attention_pallas.4} parent=0 // pred_region
    _
  $region13: #{rnn_attention_pallas.4} parent=0 // pred_fallthru
    _
  // Predicated region
  $region14: #{rnn_attention_pallas.4} parent=0 // pred_check
    _
  $region15: #{rnn_attention_pallas.4} parent=0 // pred_check_branch
    %19 = sbr.rel (0) target = $region17
  $region16: #{rnn_attention_pallas.4} parent=0 // pred_region
    _
  $region17: #{rnn_attention_pallas.4} parent=0 // pred_fallthru
    _
  // Predicated region
  $region18: #{rnn_attention_pallas.4} parent=0 // pred_check
    _
  $region19: #{rnn_attention_pallas.4} parent=0 // pred_check_branch
    %21 = sbr.rel (0) target = $region21
  $region20: #{rnn_attention_pallas.4} parent=0 // pred_region
    _
  $region21: #{rnn_attention_pallas.4} parent=0 // pred_fallthru
    _
  // Predicated region
  $region22: #{rnn_attention_pallas.4} parent=0 // pred_check
    _
  $region23: #{rnn_attention_pallas.4} parent=0 // pred_check_branch
    %23 = sbr.rel (0) target = $region25
  $region24: #{rnn_attention_pallas.4} parent=0 // pred_region
    _
  $region25: #{rnn_attention_pallas.4} parent=0 // pred_fallthru
    _
  // Predicated region
  $region26: #{rnn_attention_pallas.4} parent=0 // pred_check
    _
  $region27: #{rnn_attention_pallas.4} parent=0 // pred_check_branch
    %25 = sbr.rel (0) target = $region29
  $region28: #{rnn_attention_pallas.4} parent=0 // pred_region
    _
  $region29: #{rnn_attention_pallas.4} parent=0 // pred_fallthru
    _
  %v26 = vld [vmem:[%s0] sm:$0xff]
  %v27 = vld [vmem:[%s0 + $0x8] sm:$0xff]
  %v28 = vld [vmem:[%s1] sm:$0xff]
  %v29 = vld [vmem:[%s1 + $0x8] sm:$0xff]
  %v30 = vld [vmem:[%s3] sm:$0x1]
  %v32 = vperm.slane %v30, 0
  %vm34 = vcmask 130048
  %v36 = vsel %vm34, %v26, 0
  %v39 = vsel %vm34, %v27, 0
  %41 = vmatpush.msra.mxu0 0.0
  %42 = vmatpush.msra.mxu0 0.0
  %43 = vmatpush.msra.mxu0 0.0
  %44 = vmatpush.msra.mxu0 0.0
  %45 = vmatpush.msra.mxu0 0.0
  %46 = vmatpush.msra.mxu0 0.0
  %47 = vmatpush.msra.mxu0 0.0
  %48 = vmatpush.msra.mxu0 0.0
  %49 = vmatpush.msra.mxu0 0.0
  %50 = vmatpush.msra.mxu0 0.0
  %51 = vmatpush.msra.mxu0 0.0
  %52 = vmatpush.msra.mxu0 0.0
  %53 = vmatpush.msra.mxu0 0.0
  %54 = vmatpush.msra.mxu0 0.0
  %55 = vmatpush.msra.mxu0 %v29
  %56 = vmatpush.msra.mxu0 %v28
  %57 = vmatmul.f32.gmra.mxu0 %v36
  %v58 = vpop.f32.mrf.mxu0
  %v59 = vadd.f32 %v32, %v58
  %60 = vmatmul.f32.gmra.mxu0 %v39
  %v61 = vpop.f32.mrf.mxu0
  %v62 = vadd.f32 %v32, %v61
  %63 = vdwg.mxu0
  %64 = vst.msk [vmem:[#allocation2] sm:$0xff] %vm34, %v59
  %65 = vst.msk [vmem:[#allocation2 + $0x8] sm:$0xff] %vm34, %v62
  %s66 = scalar_lea.vmem %s1, 16
  %v67 = vld [vmem:[%s66] sm:$0xff]
  %v68 = vld [vmem:[%s66 + $0x8] sm:$0xff]
  %s69 = scalar_lea.vmem %s3, 1
  %v70 = vld [vmem:[%s69] sm:$0x1]
  %v72 = vperm.slane %v70, 0
  %74 = vmatpush.msra.mxu0 0.0
  %75 = vmatpush.msra.mxu0 0.0
  %76 = vmatpush.msra.mxu0 0.0
  %77 = vmatpush.msra.mxu0 0.0
  %78 = vmatpush.msra.mxu0 0.0
  %79 = vmatpush.msra.mxu0 0.0
  %80 = vmatpush.msra.mxu0 0.0
  %81 = vmatpush.msra.mxu0 0.0
  %82 = vmatpush.msra.mxu0 0.0
  %83 = vmatpush.msra.mxu0 0.0
  %84 = vmatpush.msra.mxu0 0.0
  %85 = vmatpush.msra.mxu0 0.0
  %86 = vmatpush.msra.mxu0 0.0
  %87 = vmatpush.msra.mxu0 0.0
  %88 = vmatpush.msra.mxu0 %v68
  %89 = vmatpush.msra.mxu0 %v67
  %90 = vmatmul.f32.gmra.mxu0 %v36
  %v91 = vpop.f32.mrf.mxu0
  %v92 = vadd.f32 %v72, %v91
  %93 = vmatmul.f32.gmra.mxu0 %v39
  %v94 = vpop.f32.mrf.mxu0
  %v95 = vadd.f32 %v72, %v94
  %96 = vdwg.mxu0
  %s97 = scalar_lea.vmem [#allocation2], 16
  %98 = vst.msk [vmem:[%s97] sm:$0xff] %vm34, %v92
  %99 = vst.msk [vmem:[%s97 + $0x8] sm:$0xff] %vm34, %v95
  %s100 = scalar_lea.vmem %s1, 32
  %v101 = vld [vmem:[%s100] sm:$0xff]
  %v102 = vld [vmem:[%s100 + $0x8] sm:$0xff]
  %s103 = scalar_lea.vmem %s3, 2
  %v104 = vld [vmem:[%s103] sm:$0x1]
  %v106 = vperm.slane %v104, 0
  %108 = vmatpush.msra.mxu0 0.0
  %109 = vmatpush.msra.mxu0 0.0
  %110 = vmatpush.msra.mxu0 0.0
  %111 = vmatpush.msra.mxu0 0.0
  %112 = vmatpush.msra.mxu0 0.0
  %113 = vmatpush.msra.mxu0 0.0
  %114 = vmatpush.msra.mxu0 0.0
  %115 = vmatpush.msra.mxu0 0.0
  %116 = vmatpush.msra.mxu0 0.0
  %117 = vmatpush.msra.mxu0 0.0
  %118 = vmatpush.msra.mxu0 0.0
  %119 = vmatpush.msra.mxu0 0.0
  %120 = vmatpush.msra.mxu0 0.0
  %121 = vmatpush.msra.mxu0 0.0
  %122 = vmatpush.msra.mxu0 %v102
  %123 = vmatpush.msra.mxu0 %v101
  %124 = vmatmul.f32.gmra.mxu0 %v36
  %v125 = vpop.f32.mrf.mxu0
  %v126 = vadd.f32 %v106, %v125
  %127 = vmatmul.f32.gmra.mxu0 %v39
  %v128 = vpop.f32.mrf.mxu0
  %v129 = vadd.f32 %v106, %v128
  %130 = vdwg.mxu0
  %s131 = scalar_lea.vmem [#allocation2], 32
  %132 = vst.msk [vmem:[%s131] sm:$0xff] %vm34, %v126
  %133 = vst.msk [vmem:[%s131 + $0x8] sm:$0xff] %vm34, %v129
  %s134 = scalar_lea.vmem %s1, 48
  %v135 = vld [vmem:[%s134] sm:$0xff]
  %v136 = vld [vmem:[%s134 + $0x8] sm:$0xff]
  %s137 = scalar_lea.vmem %s3, 4
  %v138 = vld [vmem:[%s137] sm:$0x1]
  %v140 = vperm.slane %v138, 0
  %142 = vmatpush.msra.mxu0 0.0
  %143 = vmatpush.msra.mxu0 0.0
  %144 = vmatpush.msra.mxu0 0.0
  %145 = vmatpush.msra.mxu0 0.0
  %146 = vmatpush.msra.mxu0 0.0
  %147 = vmatpush.msra.mxu0 0.0
  %148 = vmatpush.msra.mxu0 0.0
  %149 = vmatpush.msra.mxu0 0.0
  %150 = vmatpush.msra.mxu0 0.0
  %151 = vmatpush.msra.mxu0 0.0
  %152 = vmatpush.msra.mxu0 0.0
  %153 = vmatpush.msra.mxu0 0.0
  %154 = vmatpush.msra.mxu0 0.0
  %155 = vmatpush.msra.mxu0 0.0
  %156 = vmatpush.msra.mxu0 %v136
  %157 = vmatpush.msra.mxu0 %v135
  %158 = vmatmul.f32.gmra.mxu0 %v36
  %v159 = vpop.f32.mrf.mxu0
  %v160 = vadd.f32 %v140, %v159
  %161 = vmatmul.f32.gmra.mxu0 %v39
  %v162 = vpop.f32.mrf.mxu0
  %v163 = vadd.f32 %v140, %v162
  %164 = vdwg.mxu0
  %s165 = scalar_lea.vmem [#allocation2], 48
  %166 = vst.msk [vmem:[%s165] sm:$0xff] %vm34, %v160
  %167 = vst.msk [vmem:[%s165 + $0x8] sm:$0xff] %vm34, %v163
  %s168 = scalar_lea.vmem %s1, 64
  %v169 = vld [vmem:[%s168] sm:$0xff]
  %v170 = vld [vmem:[%s168 + $0x8] sm:$0xff]
  %s171 = scalar_lea.vmem %s3, 5
  %v172 = vld [vmem:[%s171] sm:$0x1]
  %v174 = vperm.slane %v172, 0
  %176 = vmatpush.msra.mxu0 0.0
  %177 = vmatpush.msra.mxu0 0.0
  %178 = vmatpush.msra.mxu0 0.0
  %179 = vmatpush.msra.mxu0 0.0
  %180 = vmatpush.msra.mxu0 0.0
  %181 = vmatpush.msra.mxu0 0.0
  %182 = vmatpush.msra.mxu0 0.0
  %183 = vmatpush.msra.mxu0 0.0
  %184 = vmatpush.msra.mxu0 0.0
  %185 = vmatpush.msra.mxu0 0.0
  %186 = vmatpush.msra.mxu0 0.0
  %187 = vmatpush.msra.mxu0 0.0
  %188 = vmatpush.msra.mxu0 0.0
  %189 = vmatpush.msra.mxu0 0.0
  %190 = vmatpush.msra.mxu0 %v170
  %191 = vmatpush.msra.mxu0 %v169
  %192 = vmatmul.f32.gmra.mxu0 %v36
  %v193 = vpop.f32.mrf.mxu0
  %v194 = vadd.f32 %v174, %v193
  %195 = vmatmul.f32.gmra.mxu0 %v39
  %v196 = vpop.f32.mrf.mxu0
  %v197 = vadd.f32 %v174, %v196
  %198 = vdwg.mxu0
  %s199 = scalar_lea.vmem [#allocation2], 64
  %200 = vst.msk [vmem:[%s199] sm:$0xff] %vm34, %v194
  %201 = vst.msk [vmem:[%s199 + $0x8] sm:$0xff] %vm34, %v197
  %s202 = scalar_lea.vmem %s1, 80
  %v203 = vld [vmem:[%s202] sm:$0xff]
  %v204 = vld [vmem:[%s202 + $0x8] sm:$0xff]
  %s205 = scalar_lea.vmem %s3, 6
  %v206 = vld [vmem:[%s205] sm:$0x1]
  %v208 = vperm.slane %v206, 0
  %210 = vmatpush.msra.mxu0 0.0
  %211 = vmatpush.msra.mxu0 0.0
  %212 = vmatpush.msra.mxu0 0.0
  %213 = vmatpush.msra.mxu0 0.0
  %214 = vmatpush.msra.mxu0 0.0
  %215 = vmatpush.msra.mxu0 0.0
  %216 = vmatpush.msra.mxu0 0.0
  %217 = vmatpush.msra.mxu0 0.0
  %218 = vmatpush.msra.mxu0 0.0
  %219 = vmatpush.msra.mxu0 0.0
  %220 = vmatpush.msra.mxu0 0.0
  %221 = vmatpush.msra.mxu0 0.0
  %222 = vmatpush.msra.mxu0 0.0
  %223 = vmatpush.msra.mxu0 0.0
  %224 = vmatpush.msra.mxu0 %v204
  %225 = vmatpush.msra.mxu0 %v203
  %226 = vmatmul.f32.gmra.mxu0 %v36
  %v227 = vpop.f32.mrf.mxu0
  %v228 = vadd.f32 %v208, %v227
  %229 = vmatmul.f32.gmra.mxu0 %v39
  %v230 = vpop.f32.mrf.mxu0
  %v231 = vadd.f32 %v208, %v230
  %232 = vdwg.mxu0
  %s233 = scalar_lea.vmem [#allocation2], 80
  %234 = vst.msk [vmem:[%s233] sm:$0xff] %vm34, %v228
  %235 = vst.msk [vmem:[%s233 + $0x8] sm:$0xff] %vm34, %v231
  %v236 = vld [vmem:[%s2] sm:$0xff]
  %v237 = vld [vmem:[%s2 + $0x8] sm:$0xff]
  %s238 = scalar_lea.vmem %s2, 16
  %v239 = vld [vmem:[%s238] sm:$0xff]
  %v240 = vld [vmem:[%s238 + $0x8] sm:$0xff]
  %s241 = scalar_lea.vmem %s2, 32
  %v242 = vld [vmem:[%s241] sm:$0xff]
  %v243 = vld [vmem:[%s241 + $0x8] sm:$0xff]
  %s244 = scalar_lea.vmem %s2, 48
  %v245 = vld [vmem:[%s244] sm:$0xff]
  %v246 = vld [vmem:[%s244 + $0x8] sm:$0xff]
  %s247 = scalar_lea.vmem %s2, 64
  %v248 = vld [vmem:[%s247] sm:$0xff]
  %v249 = vld [vmem:[%s247 + $0x8] sm:$0xff]
  %s250 = scalar_lea.vmem %s2, 80
  %v251 = vld [vmem:[%s250] sm:$0xff]
  %v252 = vld [vmem:[%s250 + $0x8] sm:$0xff]
  %s253 = scalar_lea.vmem %s3, 3
  %v254 = vld [vmem:[%s253] sm:$0x1]
  %s255 = scalar_lea.vmem %s3, 7
  %v256 = vld [vmem:[%s255] sm:$0x1]
  %v257 = vld [vmem:[#allocation2] sm:$0x3]
  %v259 = vsel %vm34, 0.0, 0
  %261 = vmatpush.msra.mxu0 0.0
  %262 = vmatpush.msra.mxu0 0.0
  %263 = vmatpush.msra.mxu0 0.0
  %264 = vmatpush.msra.mxu0 0.0
  %265 = vmatpush.msra.mxu0 0.0
  %266 = vmatpush.msra.mxu0 0.0
  %267 = vmatpush.msra.mxu0 0.0
  %268 = vmatpush.msra.mxu0 0.0
  %269 = vmatpush.msra.mxu0 0.0
  %270 = vmatpush.msra.mxu0 0.0
  %271 = vmatpush.msra.mxu0 0.0
  %272 = vmatpush.msra.mxu0 0.0
  %273 = vmatpush.msra.mxu0 0.0
  %274 = vmatpush.msra.mxu0 0.0
  %275 = vmatpush.msra.mxu0 %v237
  %276 = vmatpush.msra.mxu0 %v236
  %277 = vmatmul.f32.gmra.mxu0 %v259
  %v278 = vpop.f32.mrf.mxu0
  %v279 = vadd.f32 0.0, %v278
  %280 = vdwg.mxu0
  %v281 = vadd.f32 %v257, %v279
  %v282 = vxor.u32 %v281, 2147483648
  %v283 = vmul.f32 %v282, 1.442695
  %v284 = vpow.pop %v283
  %v285 = vadd.f32 %v284, 1.0
  %v286 = vrcp.pop %v285
  %v287 = vmul.f32 %v285, %v286
  %v288 = vsub.f32 1.0, %v287
  %v289 = vmul.f32 %v286, %v288
  %v290 = vadd.f32 %v286, %v289
  %vm291 = vweird.f32 %v285
  %vm292 = vweird.f32 %v286
  %vm293 = vmor %vm291, %vm292
  %v294 = vsel %vm293, %v286, %v290
  %v295 = vand.u32 2147483647, %v285
  %vm296 = vcmp.eq.f32.partialorder %v295, 8.507059e+37
  %v297 = vand.u32 %v285, 2147483648
  %v298 = vor.u32 1.1754944e-38, %v297
  %v299 = vsel %vm296, %v298, %v294
  %v300 = vmul.f32 1.0, %v299
  %v301 = vld [vmem:[%s97] sm:$0x3]
  %302 = vmatpush.msra.mxu0 0.0
  %303 = vmatpush.msra.mxu0 0.0
  %304 = vmatpush.msra.mxu0 0.0
  %305 = vmatpush.msra.mxu0 0.0
  %306 = vmatpush.msra.mxu0 0.0
  %307 = vmatpush.msra.mxu0 0.0
  %308 = vmatpush.msra.mxu0 0.0
  %309 = vmatpush.msra.mxu0 0.0
  %310 = vmatpush.msra.mxu0 0.0
  %311 = vmatpush.msra.mxu0 0.0
  %312 = vmatpush.msra.mxu0 0.0
  %313 = vmatpush.msra.mxu0 0.0
  %314 = vmatpush.msra.mxu0 0.0
  %315 = vmatpush.msra.mxu0 0.0
  %316 = vmatpush.msra.mxu0 %v240
  %317 = vmatpush.msra.mxu0 %v239
  %318 = vmatmul.f32.gmra.mxu0 %v259
  %v319 = vpop.f32.mrf.mxu0
  %v320 = vadd.f32 0.0, %v319
  %321 = vdwg.mxu0
  %v322 = vadd.f32 %v301, %v320
  %v323 = vxor.u32 %v322, 2147483648
  %v324 = vmul.f32 %v323, 1.442695
  %v325 = vpow.pop %v324
  %v326 = vadd.f32 %v325, 1.0
  %v327 = vrcp.pop %v326
  %v328 = vmul.f32 %v326, %v327
  %v329 = vsub.f32 1.0, %v328
  %v330 = vmul.f32 %v327, %v329
  %v331 = vadd.f32 %v327, %v330
  %vm332 = vweird.f32 %v326
  %vm333 = vweird.f32 %v327
  %vm334 = vmor %vm332, %vm333
  %v335 = vsel %vm334, %v327, %v331
  %v336 = vand.u32 2147483647, %v326
  %vm337 = vcmp.eq.f32.partialorder %v336, 8.507059e+37
  %v338 = vand.u32 %v326, 2147483648
  %v339 = vor.u32 1.1754944e-38, %v338
  %v340 = vsel %vm337, %v339, %v335
  %v341 = vmul.f32 1.0, %v340
  %v342 = vld [vmem:[%s131] sm:$0x3]
  %v344 = vperm.slane %v254, 0
  %346 = vmatpush.msra.mxu0 0.0
  %347 = vmatpush.msra.mxu0 0.0
  %348 = vmatpush.msra.mxu0 0.0
  %349 = vmatpush.msra.mxu0 0.0
  %350 = vmatpush.msra.mxu0 0.0
  %351 = vmatpush.msra.mxu0 0.0
  %352 = vmatpush.msra.mxu0 0.0
  %353 = vmatpush.msra.mxu0 0.0
  %354 = vmatpush.msra.mxu0 0.0
  %355 = vmatpush.msra.mxu0 0.0
  %356 = vmatpush.msra.mxu0 0.0
  %357 = vmatpush.msra.mxu0 0.0
  %358 = vmatpush.msra.mxu0 0.0
  %359 = vmatpush.msra.mxu0 0.0
  %360 = vmatpush.msra.mxu0 %v243
  %361 = vmatpush.msra.mxu0 %v242
  %362 = vmatmul.f32.gmra.mxu0 %v259
  %v363 = vpop.f32.mrf.mxu0
  %v364 = vadd.f32 %v344, %v363
  %365 = vdwg.mxu0
  %v366 = vmul.f32 %v300, %v364
  %v367 = vadd.f32 %v342, %v366
  %v368 = vtanh.pop %v367
  %v369 = vsub.f32 1.0, %v341
  %v370 = vmul.f32 %v369, %v368
  %v371 = vmul.f32 %v341, 0.0
  %v372 = vadd.f32 %v370, %v371
  %vm373 = vcmask 123904
  %374 = vst.msk [vmem:[#allocation3] sm:$0x3] %vm373, %v372
  %v375 = vld [vmem:[%s165 + $0xe] sm:$0x3]
  %376 = vmatpush.msra.mxu0 0.0
  %377 = vmatpush.msra.mxu0 0.0
  %378 = vmatpush.msra.mxu0 0.0
  %379 = vmatpush.msra.mxu0 0.0
  %380 = vmatpush.msra.mxu0 0.0
  %381 = vmatpush.msra.mxu0 0.0
  %382 = vmatpush.msra.mxu0 0.0
  %383 = vmatpush.msra.mxu0 0.0
  %384 = vmatpush.msra.mxu0 0.0
  %385 = vmatpush.msra.mxu0 0.0
  %386 = vmatpush.msra.mxu0 0.0
  %387 = vmatpush.msra.mxu0 0.0
  %388 = vmatpush.msra.mxu0 0.0
  %389 = vmatpush.msra.mxu0 0.0
  %390 = vmatpush.msra.mxu0 %v246
  %391 = vmatpush.msra.mxu0 %v245
  %392 = vmatmul.f32.gmra.mxu0 %v259
  %v393 = vpop.f32.mrf.mxu0
  %v394 = vadd.f32 0.0, %v393
  %395 = vdwg.mxu0
  %v396 = vadd.f32 %v375, %v394
  %v397 = vxor.u32 %v396, 2147483648
  %v398 = vmul.f32 %v397, 1.442695
  %v399 = vpow.pop %v398
  %v400 = vadd.f32 %v399, 1.0
  %v401 = vrcp.pop %v400
  %v402 = vmul.f32 %v400, %v401
  %v403 = vsub.f32 1.0, %v402
  %v404 = vmul.f32 %v401, %v403
  %v405 = vadd.f32 %v401, %v404
  %vm406 = vweird.f32 %v400
  %vm407 = vweird.f32 %v401
  %vm408 = vmor %vm406, %vm407
  %v409 = vsel %vm408, %v401, %v405
  %v410 = vand.u32 2147483647, %v400
  %vm411 = vcmp.eq.f32.partialorder %v410, 8.507059e+37
  %v412 = vand.u32 %v400, 2147483648
  %v413 = vor.u32 1.1754944e-38, %v412
  %v414 = vsel %vm411, %v413, %v409
  %v415 = vmul.f32 1.0, %v414
  %v416 = vld [vmem:[%s199 + $0xe] sm:$0x3]
  %417 = vmatpush.msra.mxu0 0.0
  %418 = vmatpush.msra.mxu0 0.0
  %419 = vmatpush.msra.mxu0 0.0
  %420 = vmatpush.msra.mxu0 0.0
  %421 = vmatpush.msra.mxu0 0.0
  %422 = vmatpush.msra.mxu0 0.0
  %423 = vmatpush.msra.mxu0 0.0
  %424 = vmatpush.msra.mxu0 0.0
  %425 = vmatpush.msra.mxu0 0.0
  %426 = vmatpush.msra.mxu0 0.0
  %427 = vmatpush.msra.mxu0 0.0
  %428 = vmatpush.msra.mxu0 0.0
  %429 = vmatpush.msra.mxu0 0.0
  %430 = vmatpush.msra.mxu0 0.0
  %431 = vmatpush.msra.mxu0 %v249
  %432 = vmatpush.msra.mxu0 %v248
  %433 = vmatmul.f32.gmra.mxu0 %v259
  %v434 = vpop.f32.mrf.mxu0
  %v435 = vadd.f32 0.0, %v434
  %436 = vdwg.mxu0
  %v437 = vadd.f32 %v416, %v435
  %v438 = vxor.u32 %v437, 2147483648
  %v439 = vmul.f32 %v438, 1.442695
  %v440 = vpow.pop %v439
  %v441 = vadd.f32 %v440, 1.0
  %v442 = vrcp.pop %v441
  %v443 = vmul.f32 %v441, %v442
  %v444 = vsub.f32 1.0, %v443
  %v445 = vmul.f32 %v442, %v444
  %v446 = vadd.f32 %v442, %v445
  %vm447 = vweird.f32 %v441
  %vm448 = vweird.f32 %v442
  %vm449 = vmor %vm447, %vm448
  %v450 = vsel %vm449, %v442, %v446
  %v451 = vand.u32 2147483647, %v441
  %vm452 = vcmp.eq.f32.partialorder %v451, 8.507059e+37
  %v453 = vand.u32 %v441, 2147483648
  %v454 = vor.u32 1.1754944e-38, %v453
  %v455 = vsel %vm452, %v454, %v450
  %v456 = vmul.f32 1.0, %v455
  %v457 = vld [vmem:[%s233 + $0xe] sm:$0x3]
  %v459 = vperm.slane %v256, 0
  %461 = vmatpush.msra.mxu0 0.0
  %462 = vmatpush.msra.mxu0 0.0
  %463 = vmatpush.msra.mxu0 0.0
  %464 = vmatpush.msra.mxu0 0.0
  %465 = vmatpush.msra.mxu0 0.0
  %466 = vmatpush.msra.mxu0 0.0
  %467 = vmatpush.msra.mxu0 0.0
  %468 = vmatpush.msra.mxu0 0.0
  %469 = vmatpush.msra.mxu0 0.0
  %470 = vmatpush.msra.mxu0 0.0
  %471 = vmatpush.msra.mxu0 0.0
  %472 = vmatpush.msra.mxu0 0.0
  %473 = vmatpush.msra.mxu0 0.0
  %474 = vmatpush.msra.mxu0 0.0
  %475 = vmatpush.msra.mxu0 %v252
  %476 = vmatpush.msra.mxu0 %v251
  %477 = vmatmul.f32.gmra.mxu0 %v259
  %v478 = vpop.f32.mrf.mxu0
  %v479 = vadd.f32 %v459, %v478
  %480 = vdwg.mxu0
  %v481 = vmul.f32 %v415, %v479
  %v482 = vadd.f32 %v457, %v481
  %v483 = vtanh.pop %v482
  %v484 = vsub.f32 1.0, %v456
  %v485 = vmul.f32 %v484, %v483
  %v486 = vmul.f32 %v456, 0.0
  %v487 = vadd.f32 %v485, %v486
  %488 = vst.msk [vmem:[#allocation4 + $0xe] sm:$0x3] %vm373, %v487
  %v489 = vld [vmem:[#allocation2 + $0x2] sm:$0x3]
  %v491 = vsel %vm34, %v372, 0
  %493 = vmatpush.msra.mxu0 0.0
  %494 = vmatpush.msra.mxu0 0.0
  %495 = vmatpush.msra.mxu0 0.0
  %496 = vmatpush.msra.mxu0 0.0
  %497 = vmatpush.msra.mxu0 0.0
  %498 = vmatpush.msra.mxu0 0.0
  %499 = vmatpush.msra.mxu0 0.0
  %500 = vmatpush.msra.mxu0 0.0
  %501 = vmatpush.msra.mxu0 0.0
  %502 = vmatpush.msra.mxu0 0.0
  %503 = vmatpush.msra.mxu0 0.0
  %504 = vmatpush.msra.mxu0 0.0
  %505 = vmatpush.msra.mxu0 0.0
  %506 = vmatpush.msra.mxu0 0.0
  %507 = vmatpush.msra.mxu0 %v237
  %508 = vmatpush.msra.mxu0 %v236
  %509 = vmatmul.f32.gmra.mxu0 %v491
  %v510 = vpop.f32.mrf.mxu0
  %v511 = vadd.f32 0.0, %v510
  %512 = vdwg.mxu0
  %v513 = vadd.f32 %v489, %v511
  %v514 = vxor.u32 %v513, 2147483648
  %v515 = vmul.f32 %v514, 1.442695
  %v516 = vpow.pop %v515
  %v517 = vadd.f32 %v516, 1.0
  %v518 = vrcp.pop %v517
  %v519 = vmul.f32 %v517, %v518
  %v520 = vsub.f32 1.0, %v519
  %v521 = vmul.f32 %v518, %v520
  %v522 = vadd.f32 %v518, %v521
  %vm523 = vweird.f32 %v517
  %vm524 = vweird.f32 %v518
  %vm525 = vmor %vm523, %vm524
  %v526 = vsel %vm525, %v518, %v522
  %v527 = vand.u32 2147483647, %v517
  %vm528 = vcmp.eq.f32.partialorder %v527, 8.507059e+37
  %v529 = vand.u32 %v517, 2147483648
  %v530 = vor.u32 1.1754944e-38, %v529
  %v531 = vsel %vm528, %v530, %v526
  %v532 = vmul.f32 1.0, %v531
  %v533 = vld [vmem:[%s97 + $0x2] sm:$0x3]
  %534 = vmatpush.msra.mxu0 0.0
  %535 = vmatpush.msra.mxu0 0.0
  %536 = vmatpush.msra.mxu0 0.0
  %537 = vmatpush.msra.mxu0 0.0
  %538 = vmatpush.msra.mxu0 0.0
  %539 = vmatpush.msra.mxu0 0.0
  %540 = vmatpush.msra.mxu0 0.0
  %541 = vmatpush.msra.mxu0 0.0
  %542 = vmatpush.msra.mxu0 0.0
  %543 = vmatpush.msra.mxu0 0.0
  %544 = vmatpush.msra.mxu0 0.0
  %545 = vmatpush.msra.mxu0 0.0
  %546 = vmatpush.msra.mxu0 0.0
  %547 = vmatpush.msra.mxu0 0.0
  %548 = vmatpush.msra.mxu0 %v240
  %549 = vmatpush.msra.mxu0 %v239
  %550 = vmatmul.f32.gmra.mxu0 %v491
  %v551 = vpop.f32.mrf.mxu0
  %v552 = vadd.f32 0.0, %v551
  %553 = vdwg.mxu0
  %v554 = vadd.f32 %v533, %v552
  %v555 = vxor.u32 %v554, 2147483648
  %v556 = vmul.f32 %v555, 1.442695
  %v557 = vpow.pop %v556
  %v558 = vadd.f32 %v557, 1.0
  %v559 = vrcp.pop %v558
  %v560 = vmul.f32 %v558, %v559
  %v561 = vsub.f32 1.0, %v560
  %v562 = vmul.f32 %v559, %v561
  %v563 = vadd.f32 %v559, %v562
  %vm564 = vweird.f32 %v558
  %vm565 = vweird.f32 %v559
  %vm566 = vmor %vm564, %vm565
  %v567 = vsel %vm566, %v559, %v563
  %v568 = vand.u32 2147483647, %v558
  %vm569 = vcmp.eq.f32.partialorder %v568, 8.507059e+37
  %v570 = vand.u32 %v558, 2147483648
  %v571 = vor.u32 1.1754944e-38, %v570
  %v572 = vsel %vm569, %v571, %v567
  %v573 = vmul.f32 1.0, %v572
  %v574 = vld [vmem:[%s131 + $0x2] sm:$0x3]
  %575 = vmatpush.msra.mxu0 0.0
  %576 = vmatpush.msra.mxu0 0.0
  %577 = vmatpush.msra.mxu0 0.0
  %578 = vmatpush.msra.mxu0 0.0
  %579 = vmatpush.msra.mxu0 0.0
  %580 = vmatpush.msra.mxu0 0.0
  %581 = vmatpush.msra.mxu0 0.0
  %582 = vmatpush.msra.mxu0 0.0
  %583 = vmatpush.msra.mxu0 0.0
  %584 = vmatpush.msra.mxu0 0.0
  %585 = vmatpush.msra.mxu0 0.0
  %586 = vmatpush.msra.mxu0 0.0
  %587 = vmatpush.msra.mxu0 0.0
  %588 = vmatpush.msra.mxu0 0.0
  %589 = vmatpush.msra.mxu0 %v243
  %590 = vmatpush.msra.mxu0 %v242
  %591 = vmatmul.f32.gmra.mxu0 %v491
  %v592 = vpop.f32.mrf.mxu0
  %v593 = vadd.f32 %v344, %v592
  %594 = vdwg.mxu0
  %v595 = vmul.f32 %v532, %v593
  %v596 = vadd.f32 %v574, %v595
  %v597 = vtanh.pop %v596
  %v598 = vsub.f32 1.0, %v573
  %v599 = vmul.f32 %v598, %v597
  %v600 = vmul.f32 %v573, %v372
  %v601 = vadd.f32 %v599, %v600
  %602 = vst.msk [vmem:[#allocation3 + $0x2] sm:$0x3] %vm373, %v601
  %v603 = vld [vmem:[%s165 + $0xc] sm:$0x3]
  %v605 = vsel %vm34, %v487, 0
  %607 = vmatpush.msra.mxu0 0.0
  %608 = vmatpush.msra.mxu0 0.0
  %609 = vmatpush.msra.mxu0 0.0
  %610 = vmatpush.msra.mxu0 0.0
  %611 = vmatpush.msra.mxu0 0.0
  %612 = vmatpush.msra.mxu0 0.0
  %613 = vmatpush.msra.mxu0 0.0
  %614 = vmatpush.msra.mxu0 0.0
  %615 = vmatpush.msra.mxu0 0.0
  %616 = vmatpush.msra.mxu0 0.0
  %617 = vmatpush.msra.mxu0 0.0
  %618 = vmatpush.msra.mxu0 0.0
  %619 = vmatpush.msra.mxu0 0.0
  %620 = vmatpush.msra.mxu0 0.0
  %621 = vmatpush.msra.mxu0 %v246
  %622 = vmatpush.msra.mxu0 %v245
  %623 = vmatmul.f32.gmra.mxu0 %v605
  %v624 = vpop.f32.mrf.mxu0
  %v625 = vadd.f32 0.0, %v624
  %626 = vdwg.mxu0
  %v627 = vadd.f32 %v603, %v625
  %v628 = vxor.u32 %v627, 2147483648
  %v629 = vmul.f32 %v628, 1.442695
  %v630 = vpow.pop %v629
  %v631 = vadd.f32 %v630, 1.0
  %v632 = vrcp.pop %v631
  %v633 = vmul.f32 %v631, %v632
  %v634 = vsub.f32 1.0, %v633
  %v635 = vmul.f32 %v632, %v634
  %v636 = vadd.f32 %v632, %v635
  %vm637 = vweird.f32 %v631
  %vm638 = vweird.f32 %v632
  %vm639 = vmor %vm637, %vm638
  %v640 = vsel %vm639, %v632, %v636
  %v641 = vand.u32 2147483647, %v631
  %vm642 = vcmp.eq.f32.partialorder %v641, 8.507059e+37
  %v643 = vand.u32 %v631, 2147483648
  %v644 = vor.u32 1.1754944e-38, %v643
  %v645 = vsel %vm642, %v644, %v640
  %v646 = vmul.f32 1.0, %v645
  %v647 = vld [vmem:[%s199 + $0xc] sm:$0x3]
  %648 = vmatpush.msra.mxu0 0.0
  %649 = vmatpush.msra.mxu0 0.0
  %650 = vmatpush.msra.mxu0 0.0
  %651 = vmatpush.msra.mxu0 0.0
  %652 = vmatpush.msra.mxu0 0.0
  %653 = vmatpush.msra.mxu0 0.0
  %654 = vmatpush.msra.mxu0 0.0
  %655 = vmatpush.msra.mxu0 0.0
  %656 = vmatpush.msra.mxu0 0.0
  %657 = vmatpush.msra.mxu0 0.0
  %658 = vmatpush.msra.mxu0 0.0
  %659 = vmatpush.msra.mxu0 0.0
  %660 = vmatpush.msra.mxu0 0.0
  %661 = vmatpush.msra.mxu0 0.0
  %662 = vmatpush.msra.mxu0 %v249
  %663 = vmatpush.msra.mxu0 %v248
  %664 = vmatmul.f32.gmra.mxu0 %v605
  %v665 = vpop.f32.mrf.mxu0
  %v666 = vadd.f32 0.0, %v665
  %667 = vdwg.mxu0
  %v668 = vadd.f32 %v647, %v666
  %v669 = vxor.u32 %v668, 2147483648
  %v670 = vmul.f32 %v669, 1.442695
  %v671 = vpow.pop %v670
  %v672 = vadd.f32 %v671, 1.0
  %v673 = vrcp.pop %v672
  %v674 = vmul.f32 %v672, %v673
  %v675 = vsub.f32 1.0, %v674
  %v676 = vmul.f32 %v673, %v675
  %v677 = vadd.f32 %v673, %v676
  %vm678 = vweird.f32 %v672
  %vm679 = vweird.f32 %v673
  %vm680 = vmor %vm678, %vm679
  %v681 = vsel %vm680, %v673, %v677
  %v682 = vand.u32 2147483647, %v672
  %vm683 = vcmp.eq.f32.partialorder %v682, 8.507059e+37
  %v684 = vand.u32 %v672, 2147483648
  %v685 = vor.u32 1.1754944e-38, %v684
  %v686 = vsel %vm683, %v685, %v681
  %v687 = vmul.f32 1.0, %v686
  %v688 = vld [vmem:[%s233 + $0xc] sm:$0x3]
  %689 = vmatpush.msra.mxu0 0.0
  %690 = vmatpush.msra.mxu0 0.0
  %691 = vmatpush.msra.mxu0 0.0
  %692 = vmatpush.msra.mxu0 0.0
  %693 = vmatpush.msra.mxu0 0.0
  %694 = vmatpush.msra.mxu0 0.0
  %695 = vmatpush.msra.mxu0 0.0
  %696 = vmatpush.msra.mxu0 0.0
  %697 = vmatpush.msra.mxu0 0.0
  %698 = vmatpush.msra.mxu0 0.0
  %699 = vmatpush.msra.mxu0 0.0
  %700 = vmatpush.msra.mxu0 0.0
  %701 = vmatpush.msra.mxu0 0.0
  %702 = vmatpush.msra.mxu0 0.0
  %703 = vmatpush.msra.mxu0 %v252
  %704 = vmatpush.msra.mxu0 %v251
  %705 = vmatmul.f32.gmra.mxu0 %v605
  %v706 = vpop.f32.mrf.mxu0
  %v707 = vadd.f32 %v459, %v706
  %708 = vdwg.mxu0
  %v709 = vmul.f32 %v646, %v707
  %v710 = vadd.f32 %v688, %v709
  %v711 = vtanh.pop %v710
  %v712 = vsub.f32 1.0, %v687
  %v713 = vmul.f32 %v712, %v711
  %v714 = vmul.f32 %v687, %v487
  %v715 = vadd.f32 %v713, %v714
  %716 = vst.msk [vmem:[#allocation4 + $0xc] sm:$0x3] %vm373, %v715
  %v717 = vld [vmem:[#allocation2 + $0x4] sm:$0x3]
  %v719 = vsel %vm34, %v601, 0
  %721 = vmatpush.msra.mxu0 0.0
  %722 = vmatpush.msra.mxu0 0.0
  %723 = vmatpush.msra.mxu0 0.0
  %724 = vmatpush.msra.mxu0 0.0
  %725 = vmatpush.msra.mxu0 0.0
  %726 = vmatpush.msra.mxu0 0.0
  %727 = vmatpush.msra.mxu0 0.0
  %728 = vmatpush.msra.mxu0 0.0
  %729 = vmatpush.msra.mxu0 0.0
  %730 = vmatpush.msra.mxu0 0.0
  %731 = vmatpush.msra.mxu0 0.0
  %732 = vmatpush.msra.mxu0 0.0
  %733 = vmatpush.msra.mxu0 0.0
  %734 = vmatpush.msra.mxu0 0.0
  %735 = vmatpush.msra.mxu0 %v237
  %736 = vmatpush.msra.mxu0 %v236
  %737 = vmatmul.f32.gmra.mxu0 %v719
  %v738 = vpop.f32.mrf.mxu0
  %v739 = vadd.f32 0.0, %v738
  %740 = vdwg.mxu0
  %v741 = vadd.f32 %v717, %v739
  %v742 = vxor.u32 %v741, 2147483648
  %v743 = vmul.f32 %v742, 1.442695
  %v744 = vpow.pop %v743
  %v745 = vadd.f32 %v744, 1.0
  %v746 = vrcp.pop %v745
  %v747 = vmul.f32 %v745, %v746
  %v748 = vsub.f32 1.0, %v747
  %v749 = vmul.f32 %v746, %v748
  %v750 = vadd.f32 %v746, %v749
  %vm751 = vweird.f32 %v745
  %vm752 = vweird.f32 %v746
  %vm753 = vmor %vm751, %vm752
  %v754 = vsel %vm753, %v746, %v750
  %v755 = vand.u32 2147483647, %v745
  %vm756 = vcmp.eq.f32.partialorder %v755, 8.507059e+37
  %v757 = vand.u32 %v745, 2147483648
  %v758 = vor.u32 1.1754944e-38, %v757
  %v759 = vsel %vm756, %v758, %v754
  %v760 = vmul.f32 1.0, %v759
  %v761 = vld [vmem:[%s97 + $0x4] sm:$0x3]
  %762 = vmatpush.msra.mxu0 0.0
  %763 = vmatpush.msra.mxu0 0.0
  %764 = vmatpush.msra.mxu0 0.0
  %765 = vmatpush.msra.mxu0 0.0
  %766 = vmatpush.msra.mxu0 0.0
  %767 = vmatpush.msra.mxu0 0.0
  %768 = vmatpush.msra.mxu0 0.0
  %769 = vmatpush.msra.mxu0 0.0
  %770 = vmatpush.msra.mxu0 0.0
  %771 = vmatpush.msra.mxu0 0.0
  %772 = vmatpush.msra.mxu0 0.0
  %773 = vmatpush.msra.mxu0 0.0
  %774 = vmatpush.msra.mxu0 0.0
  %775 = vmatpush.msra.mxu0 0.0
  %776 = vmatpush.msra.mxu0 %v240
  %777 = vmatpush.msra.mxu0 %v239
  %778 = vmatmul.f32.gmra.mxu0 %v719
  %v779 = vpop.f32.mrf.mxu0
  %v780 = vadd.f32 0.0, %v779
  %781 = vdwg.mxu0
  %v782 = vadd.f32 %v761, %v780
  %v783 = vxor.u32 %v782, 2147483648
  %v784 = vmul.f32 %v783, 1.442695
  %v785 = vpow.pop %v784
  %v786 = vadd.f32 %v785, 1.0
  %v787 = vrcp.pop %v786
  %v788 = vmul.f32 %v786, %v787
  %v789 = vsub.f32 1.0, %v788
  %v790 = vmul.f32 %v787, %v789
  %v791 = vadd.f32 %v787, %v790
  %vm792 = vweird.f32 %v786
  %vm793 = vweird.f32 %v787
  %vm794 = vmor %vm792, %vm793
  %v795 = vsel %vm794, %v787, %v791
  %v796 = vand.u32 2147483647, %v786
  %vm797 = vcmp.eq.f32.partialorder %v796, 8.507059e+37
  %v798 = vand.u32 %v786, 2147483648
  %v799 = vor.u32 1.1754944e-38, %v798
  %v800 = vsel %vm797, %v799, %v795
  %v801 = vmul.f32 1.0, %v800
  %v802 = vld [vmem:[%s131 + $0x4] sm:$0x3]
  %803 = vmatpush.msra.mxu0 0.0
  %804 = vmatpush.msra.mxu0 0.0
  %805 = vmatpush.msra.mxu0 0.0
  %806 = vmatpush.msra.mxu0 0.0
  %807 = vmatpush.msra.mxu0 0.0
  %808 = vmatpush.msra.mxu0 0.0
  %809 = vmatpush.msra.mxu0 0.0
  %810 = vmatpush.msra.mxu0 0.0
  %811 = vmatpush.msra.mxu0 0.0
  %812 = vmatpush.msra.mxu0 0.0
  %813 = vmatpush.msra.mxu0 0.0
  %814 = vmatpush.msra.mxu0 0.0
  %815 = vmatpush.msra.mxu0 0.0
  %816 = vmatpush.msra.mxu0 0.0
  %817 = vmatpush.msra.mxu0 %v243
  %818 = vmatpush.msra.mxu0 %v242
  %819 = vmatmul.f32.gmra.mxu0 %v719
  %v820 = vpop.f32.mrf.mxu0
  %v821 = vadd.f32 %v344, %v820
  %822 = vdwg.mxu0
  %v823 = vmul.f32 %v760, %v821
  %v824 = vadd.f32 %v802, %v823
  %v825 = vtanh.pop %v824
  %v826 = vsub.f32 1.0, %v801
  %v827 = vmul.f32 %v826, %v825
  %v828 = vmul.f32 %v801, %v601
  %v829 = vadd.f32 %v827, %v828
  %830 = vst.msk [vmem:[#allocation3 + $0x4] sm:$0x3] %vm373, %v829
  %v831 = vld [vmem:[%s165 + $0xa] sm:$0x3]
  %v833 = vsel %vm34, %v715, 0
  %835 = vmatpush.msra.mxu0 0.0
  %836 = vmatpush.msra.mxu0 0.0
  %837 = vmatpush.msra.mxu0 0.0
  %838 = vmatpush.msra.mxu0 0.0
  %839 = vmatpush.msra.mxu0 0.0
  %840 = vmatpush.msra.mxu0 0.0
  %841 = vmatpush.msra.mxu0 0.0
  %842 = vmatpush.msra.mxu0 0.0
  %843 = vmatpush.msra.mxu0 0.0
  %844 = vmatpush.msra.mxu0 0.0
  %845 = vmatpush.msra.mxu0 0.0
  %846 = vmatpush.msra.mxu0 0.0
  %847 = vmatpush.msra.mxu0 0.0
  %848 = vmatpush.msra.mxu0 0.0
  %849 = vmatpush.msra.mxu0 %v246
  %850 = vmatpush.msra.mxu0 %v245
  %851 = vmatmul.f32.gmra.mxu0 %v833
  %v852 = vpop.f32.mrf.mxu0
  %v853 = vadd.f32 0.0, %v852
  %854 = vdwg.mxu0
  %v855 = vadd.f32 %v831, %v853
  %v856 = vxor.u32 %v855, 2147483648
  %v857 = vmul.f32 %v856, 1.442695
  %v858 = vpow.pop %v857
  %v859 = vadd.f32 %v858, 1.0
  %v860 = vrcp.pop %v859
  %v861 = vmul.f32 %v859, %v860
  %v862 = vsub.f32 1.0, %v861
  %v863 = vmul.f32 %v860, %v862
  %v864 = vadd.f32 %v860, %v863
  %vm865 = vweird.f32 %v859
  %vm866 = vweird.f32 %v860
  %vm867 = vmor %vm865, %vm866
  %v868 = vsel %vm867, %v860, %v864
  %v869 = vand.u32 2147483647, %v859
  %vm870 = vcmp.eq.f32.partialorder %v869, 8.507059e+37
  %v871 = vand.u32 %v859, 2147483648
  %v872 = vor.u32 1.1754944e-38, %v871
  %v873 = vsel %vm870, %v872, %v868
  %v874 = vmul.f32 1.0, %v873
  %v875 = vld [vmem:[%s199 + $0xa] sm:$0x3]
  %876 = vmatpush.msra.mxu0 0.0
  %877 = vmatpush.msra.mxu0 0.0
  %878 = vmatpush.msra.mxu0 0.0
  %879 = vmatpush.msra.mxu0 0.0
  %880 = vmatpush.msra.mxu0 0.0
  %881 = vmatpush.msra.mxu0 0.0
  %882 = vmatpush.msra.mxu0 0.0
  %883 = vmatpush.msra.mxu0 0.0
  %884 = vmatpush.msra.mxu0 0.0
  %885 = vmatpush.msra.mxu0 0.0
  %886 = vmatpush.msra.mxu0 0.0
  %887 = vmatpush.msra.mxu0 0.0
  %888 = vmatpush.msra.mxu0 0.0
  %889 = vmatpush.msra.mxu0 0.0
  %890 = vmatpush.msra.mxu0 %v249
  %891 = vmatpush.msra.mxu0 %v248
  %892 = vmatmul.f32.gmra.mxu0 %v833
  %v893 = vpop.f32.mrf.mxu0
  %v894 = vadd.f32 0.0, %v893
  %895 = vdwg.mxu0
  %v896 = vadd.f32 %v875, %v894
  %v897 = vxor.u32 %v896, 2147483648
  %v898 = vmul.f32 %v897, 1.442695
  %v899 = vpow.pop %v898
  %v900 = vadd.f32 %v899, 1.0
  %v901 = vrcp.pop %v900
  %v902 = vmul.f32 %v900, %v901
  %v903 = vsub.f32 1.0, %v902
  %v904 = vmul.f32 %v901, %v903
  %v905 = vadd.f32 %v901, %v904
  %vm906 = vweird.f32 %v900
  %vm907 = vweird.f32 %v901
  %vm908 = vmor %vm906, %vm907
  %v909 = vsel %vm908, %v901, %v905
  %v910 = vand.u32 2147483647, %v900
  %vm911 = vcmp.eq.f32.partialorder %v910, 8.507059e+37
  %v912 = vand.u32 %v900, 2147483648
  %v913 = vor.u32 1.1754944e-38, %v912
  %v914 = vsel %vm911, %v913, %v909
  %v915 = vmul.f32 1.0, %v914
  %v916 = vld [vmem:[%s233 + $0xa] sm:$0x3]
  %917 = vmatpush.msra.mxu0 0.0
  %918 = vmatpush.msra.mxu0 0.0
  %919 = vmatpush.msra.mxu0 0.0
  %920 = vmatpush.msra.mxu0 0.0
  %921 = vmatpush.msra.mxu0 0.0
  %922 = vmatpush.msra.mxu0 0.0
  %923 = vmatpush.msra.mxu0 0.0
  %924 = vmatpush.msra.mxu0 0.0
  %925 = vmatpush.msra.mxu0 0.0
  %926 = vmatpush.msra.mxu0 0.0
  %927 = vmatpush.msra.mxu0 0.0
  %928 = vmatpush.msra.mxu0 0.0
  %929 = vmatpush.msra.mxu0 0.0
  %930 = vmatpush.msra.mxu0 0.0
  %931 = vmatpush.msra.mxu0 %v252
  %932 = vmatpush.msra.mxu0 %v251
  %933 = vmatmul.f32.gmra.mxu0 %v833
  %v934 = vpop.f32.mrf.mxu0
  %v935 = vadd.f32 %v459, %v934
  %936 = vdwg.mxu0
  %v937 = vmul.f32 %v874, %v935
  %v938 = vadd.f32 %v916, %v937
  %v939 = vtanh.pop %v938
  %v940 = vsub.f32 1.0, %v915
  %v941 = vmul.f32 %v940, %v939
  %v942 = vmul.f32 %v915, %v715
  %v943 = vadd.f32 %v941, %v942
  %944 = vst.msk [vmem:[#allocation4 + $0xa] sm:$0x3] %vm373, %v943
  %v945 = vld [vmem:[#allocation2 + $0x6] sm:$0x3]
  %v947 = vsel %vm34, %v829, 0
  %949 = vmatpush.msra.mxu0 0.0
  %950 = vmatpush.msra.mxu0 0.0
  %951 = vmatpush.msra.mxu0 0.0
  %952 = vmatpush.msra.mxu0 0.0
  %953 = vmatpush.msra.mxu0 0.0
  %954 = vmatpush.msra.mxu0 0.0
  %955 = vmatpush.msra.mxu0 0.0
  %956 = vmatpush.msra.mxu0 0.0
  %957 = vmatpush.msra.mxu0 0.0
  %958 = vmatpush.msra.mxu0 0.0
  %959 = vmatpush.msra.mxu0 0.0
  %960 = vmatpush.msra.mxu0 0.0
  %961 = vmatpush.msra.mxu0 0.0
  %962 = vmatpush.msra.mxu0 0.0
  %963 = vmatpush.msra.mxu0 %v237
  %964 = vmatpush.msra.mxu0 %v236
  %965 = vmatmul.f32.gmra.mxu0 %v947
  %v966 = vpop.f32.mrf.mxu0
  %v967 = vadd.f32 0.0, %v966
  %968 = vdwg.mxu0
  %v969 = vadd.f32 %v945, %v967
  %v970 = vxor.u32 %v969, 2147483648
  %v971 = vmul.f32 %v970, 1.442695
  %v972 = vpow.pop %v971
  %v973 = vadd.f32 %v972, 1.0
  %v974 = vrcp.pop %v973
  %v975 = vmul.f32 %v973, %v974
  %v976 = vsub.f32 1.0, %v975
  %v977 = vmul.f32 %v974, %v976
  %v978 = vadd.f32 %v974, %v977
  %vm979 = vweird.f32 %v973
  %vm980 = vweird.f32 %v974
  %vm981 = vmor %vm979, %vm980
  %v982 = vsel %vm981, %v974, %v978
  %v983 = vand.u32 2147483647, %v973
  %vm984 = vcmp.eq.f32.partialorder %v983, 8.507059e+37
  %v985 = vand.u32 %v973, 2147483648
  %v986 = vor.u32 1.1754944e-38, %v985
  %v987 = vsel %vm984, %v986, %v982
  %v988 = vmul.f32 1.0, %v987
  %v989 = vld [vmem:[%s97 + $0x6] sm:$0x3]
  %990 = vmatpush.msra.mxu0 0.0
  %991 = vmatpush.msra.mxu0 0.0
  %992 = vmatpush.msra.mxu0 0.0
  %993 = vmatpush.msra.mxu0 0.0
  %994 = vmatpush.msra.mxu0 0.0
  %995 = vmatpush.msra.mxu0 0.0
  %996 = vmatpush.msra.mxu0 0.0
  %997 = vmatpush.msra.mxu0 0.0
  %998 = vmatpush.msra.mxu0 0.0
  %999 = vmatpush.msra.mxu0 0.0
  %1000 = vmatpush.msra.mxu0 0.0
  %1001 = vmatpush.msra.mxu0 0.0
  %1002 = vmatpush.msra.mxu0 0.0
  %1003 = vmatpush.msra.mxu0 0.0
  %1004 = vmatpush.msra.mxu0 %v240
  %1005 = vmatpush.msra.mxu0 %v239
  %1006 = vmatmul.f32.gmra.mxu0 %v947
  %v1007 = vpop.f32.mrf.mxu0
  %v1008 = vadd.f32 0.0, %v1007
  %1009 = vdwg.mxu0
  %v1010 = vadd.f32 %v989, %v1008
  %v1011 = vxor.u32 %v1010, 2147483648
  %v1012 = vmul.f32 %v1011, 1.442695
  %v1013 = vpow.pop %v1012
  %v1014 = vadd.f32 %v1013, 1.0
  %v1015 = vrcp.pop %v1014
  %v1016 = vmul.f32 %v1014, %v1015
  %v1017 = vsub.f32 1.0, %v1016
  %v1018 = vmul.f32 %v1015, %v1017
  %v1019 = vadd.f32 %v1015, %v1018
  %vm1020 = vweird.f32 %v1014
  %vm1021 = vweird.f32 %v1015
  %vm1022 = vmor %vm1020, %vm1021
  %v1023 = vsel %vm1022, %v1015, %v1019
  %v1024 = vand.u32 2147483647, %v1014
  %vm1025 = vcmp.eq.f32.partialorder %v1024, 8.507059e+37
  %v1026 = vand.u32 %v1014, 2147483648
  %v1027 = vor.u32 1.1754944e-38, %v1026
  %v1028 = vsel %vm1025, %v1027, %v1023
  %v1029 = vmul.f32 1.0, %v1028
  %v1030 = vld [vmem:[%s131 + $0x6] sm:$0x3]
  %1031 = vmatpush.msra.mxu0 0.0
  %1032 = vmatpush.msra.mxu0 0.0
  %1033 = vmatpush.msra.mxu0 0.0
  %1034 = vmatpush.msra.mxu0 0.0
  %1035 = vmatpush.msra.mxu0 0.0
  %1036 = vmatpush.msra.mxu0 0.0
  %1037 = vmatpush.msra.mxu0 0.0
  %1038 = vmatpush.msra.mxu0 0.0
  %1039 = vmatpush.msra.mxu0 0.0
  %1040 = vmatpush.msra.mxu0 0.0
  %1041 = vmatpush.msra.mxu0 0.0
  %1042 = vmatpush.msra.mxu0 0.0
  %1043 = vmatpush.msra.mxu0 0.0
  %1044 = vmatpush.msra.mxu0 0.0
  %1045 = vmatpush.msra.mxu0 %v243
  %1046 = vmatpush.msra.mxu0 %v242
  %1047 = vmatmul.f32.gmra.mxu0 %v947
  %v1048 = vpop.f32.mrf.mxu0
  %v1049 = vadd.f32 %v344, %v1048
  %1050 = vdwg.mxu0
  %v1051 = vmul.f32 %v988, %v1049
  %v1052 = vadd.f32 %v1030, %v1051
  %v1053 = vtanh.pop %v1052
  %v1054 = vsub.f32 1.0, %v1029
  %v1055 = vmul.f32 %v1054, %v1053
  %v1056 = vmul.f32 %v1029, %v829
  %v1057 = vadd.f32 %v1055, %v1056
  %1058 = vst.msk [vmem:[#allocation3 + $0x6] sm:$0x3] %vm373, %v1057
  %v1059 = vld [vmem:[%s165 + $0x8] sm:$0x3]
  %v1061 = vsel %vm34, %v943, 0
  %1063 = vmatpush.msra.mxu0 0.0
  %1064 = vmatpush.msra.mxu0 0.0
  %1065 = vmatpush.msra.mxu0 0.0
  %1066 = vmatpush.msra.mxu0 0.0
  %1067 = vmatpush.msra.mxu0 0.0
  %1068 = vmatpush.msra.mxu0 0.0
  %1069 = vmatpush.msra.mxu0 0.0
  %1070 = vmatpush.msra.mxu0 0.0
  %1071 = vmatpush.msra.mxu0 0.0
  %1072 = vmatpush.msra.mxu0 0.0
  %1073 = vmatpush.msra.mxu0 0.0
  %1074 = vmatpush.msra.mxu0 0.0
  %1075 = vmatpush.msra.mxu0 0.0
  %1076 = vmatpush.msra.mxu0 0.0
  %1077 = vmatpush.msra.mxu0 %v246
  %1078 = vmatpush.msra.mxu0 %v245
  %1079 = vmatmul.f32.gmra.mxu0 %v1061
  %v1080 = vpop.f32.mrf.mxu0
  %v1081 = vadd.f32 0.0, %v1080
  %1082 = vdwg.mxu0
  %v1083 = vadd.f32 %v1059, %v1081
  %v1084 = vxor.u32 %v1083, 2147483648
  %v1085 = vmul.f32 %v1084, 1.442695
  %v1086 = vpow.pop %v1085
  %v1087 = vadd.f32 %v1086, 1.0
  %v1088 = vrcp.pop %v1087
  %v1089 = vmul.f32 %v1087, %v1088
  %v1090 = vsub.f32 1.0, %v1089
  %v1091 = vmul.f32 %v1088, %v1090
  %v1092 = vadd.f32 %v1088, %v1091
  %vm1093 = vweird.f32 %v1087
  %vm1094 = vweird.f32 %v1088
  %vm1095 = vmor %vm1093, %vm1094
  %v1096 = vsel %vm1095, %v1088, %v1092
  %v1097 = vand.u32 2147483647, %v1087
  %vm1098 = vcmp.eq.f32.partialorder %v1097, 8.507059e+37
  %v1099 = vand.u32 %v1087, 2147483648
  %v1100 = vor.u32 1.1754944e-38, %v1099
  %v1101 = vsel %vm1098, %v1100, %v1096
  %v1102 = vmul.f32 1.0, %v1101
  %v1103 = vld [vmem:[%s199 + $0x8] sm:$0x3]
  %1104 = vmatpush.msra.mxu0 0.0
  %1105 = vmatpush.msra.mxu0 0.0
  %1106 = vmatpush.msra.mxu0 0.0
  %1107 = vmatpush.msra.mxu0 0.0
  %1108 = vmatpush.msra.mxu0 0.0
  %1109 = vmatpush.msra.mxu0 0.0
  %1110 = vmatpush.msra.mxu0 0.0
  %1111 = vmatpush.msra.mxu0 0.0
  %1112 = vmatpush.msra.mxu0 0.0
  %1113 = vmatpush.msra.mxu0 0.0
  %1114 = vmatpush.msra.mxu0 0.0
  %1115 = vmatpush.msra.mxu0 0.0
  %1116 = vmatpush.msra.mxu0 0.0
  %1117 = vmatpush.msra.mxu0 0.0
  %1118 = vmatpush.msra.mxu0 %v249
  %1119 = vmatpush.msra.mxu0 %v248
  %1120 = vmatmul.f32.gmra.mxu0 %v1061
  %v1121 = vpop.f32.mrf.mxu0
  %v1122 = vadd.f32 0.0, %v1121
  %1123 = vdwg.mxu0
  %v1124 = vadd.f32 %v1103, %v1122
  %v1125 = vxor.u32 %v1124, 2147483648
  %v1126 = vmul.f32 %v1125, 1.442695
  %v1127 = vpow.pop %v1126
  %v1128 = vadd.f32 %v1127, 1.0
  %v1129 = vrcp.pop %v1128
  %v1130 = vmul.f32 %v1128, %v1129
  %v1131 = vsub.f32 1.0, %v1130
  %v1132 = vmul.f32 %v1129, %v1131
  %v1133 = vadd.f32 %v1129, %v1132
  %vm1134 = vweird.f32 %v1128
  %vm1135 = vweird.f32 %v1129
  %vm1136 = vmor %vm1134, %vm1135
  %v1137 = vsel %vm1136, %v1129, %v1133
  %v1138 = vand.u32 2147483647, %v1128
  %vm1139 = vcmp.eq.f32.partialorder %v1138, 8.507059e+37
  %v1140 = vand.u32 %v1128, 2147483648
  %v1141 = vor.u32 1.1754944e-38, %v1140
  %v1142 = vsel %vm1139, %v1141, %v1137
  %v1143 = vmul.f32 1.0, %v1142
  %v1144 = vld [vmem:[%s233 + $0x8] sm:$0x3]
  %1145 = vmatpush.msra.mxu0 0.0
  %1146 = vmatpush.msra.mxu0 0.0
  %1147 = vmatpush.msra.mxu0 0.0
  %1148 = vmatpush.msra.mxu0 0.0
  %1149 = vmatpush.msra.mxu0 0.0
  %1150 = vmatpush.msra.mxu0 0.0
  %1151 = vmatpush.msra.mxu0 0.0
  %1152 = vmatpush.msra.mxu0 0.0
  %1153 = vmatpush.msra.mxu0 0.0
  %1154 = vmatpush.msra.mxu0 0.0
  %1155 = vmatpush.msra.mxu0 0.0
  %1156 = vmatpush.msra.mxu0 0.0
  %1157 = vmatpush.msra.mxu0 0.0
  %1158 = vmatpush.msra.mxu0 0.0
  %1159 = vmatpush.msra.mxu0 %v252
  %1160 = vmatpush.msra.mxu0 %v251
  %1161 = vmatmul.f32.gmra.mxu0 %v1061
  %v1162 = vpop.f32.mrf.mxu0
  %v1163 = vadd.f32 %v459, %v1162
  %1164 = vdwg.mxu0
  %v1165 = vmul.f32 %v1102, %v1163
  %v1166 = vadd.f32 %v1144, %v1165
  %v1167 = vtanh.pop %v1166
  %v1168 = vsub.f32 1.0, %v1143
  %v1169 = vmul.f32 %v1168, %v1167
  %v1170 = vmul.f32 %v1143, %v943
  %v1171 = vadd.f32 %v1169, %v1170
  %1172 = vst.msk [vmem:[#allocation4 + $0x8] sm:$0x3] %vm373, %v1171
  %v1173 = vld [vmem:[#allocation2 + $0x8] sm:$0x3]
  %v1175 = vsel %vm34, %v1057, 0
  %1177 = vmatpush.msra.mxu0 0.0
  %1178 = vmatpush.msra.mxu0 0.0
  %1179 = vmatpush.msra.mxu0 0.0
  %1180 = vmatpush.msra.mxu0 0.0
  %1181 = vmatpush.msra.mxu0 0.0
  %1182 = vmatpush.msra.mxu0 0.0
  %1183 = vmatpush.msra.mxu0 0.0
  %1184 = vmatpush.msra.mxu0 0.0
  %1185 = vmatpush.msra.mxu0 0.0
  %1186 = vmatpush.msra.mxu0 0.0
  %1187 = vmatpush.msra.mxu0 0.0
  %1188 = vmatpush.msra.mxu0 0.0
  %1189 = vmatpush.msra.mxu0 0.0
  %1190 = vmatpush.msra.mxu0 0.0
  %1191 = vmatpush.msra.mxu0 %v237
  %1192 = vmatpush.msra.mxu0 %v236
  %1193 = vmatmul.f32.gmra.mxu0 %v1175
  %v1194 = vpop.f32.mrf.mxu0
  %v1195 = vadd.f32 0.0, %v1194
  %1196 = vdwg.mxu0
  %v1197 = vadd.f32 %v1173, %v1195
  %v1198 = vxor.u32 %v1197, 2147483648
  %v1199 = vmul.f32 %v1198, 1.442695
  %v1200 = vpow.pop %v1199
  %v1201 = vadd.f32 %v1200, 1.0
  %v1202 = vrcp.pop %v1201
  %v1203 = vmul.f32 %v1201, %v1202
  %v1204 = vsub.f32 1.0, %v1203
  %v1205 = vmul.f32 %v1202, %v1204
  %v1206 = vadd.f32 %v1202, %v1205
  %vm1207 = vweird.f32 %v1201
  %vm1208 = vweird.f32 %v1202
  %vm1209 = vmor %vm1207, %vm1208
  %v1210 = vsel %vm1209, %v1202, %v1206
  %v1211 = vand.u32 2147483647, %v1201
  %vm1212 = vcmp.eq.f32.partialorder %v1211, 8.507059e+37
  %v1213 = vand.u32 %v1201, 2147483648
  %v1214 = vor.u32 1.1754944e-38, %v1213
  %v1215 = vsel %vm1212, %v1214, %v1210
  %v1216 = vmul.f32 1.0, %v1215
  %v1217 = vld [vmem:[%s97 + $0x8] sm:$0x3]
  %1218 = vmatpush.msra.mxu0 0.0
  %1219 = vmatpush.msra.mxu0 0.0
  %1220 = vmatpush.msra.mxu0 0.0
  %1221 = vmatpush.msra.mxu0 0.0
  %1222 = vmatpush.msra.mxu0 0.0
  %1223 = vmatpush.msra.mxu0 0.0
  %1224 = vmatpush.msra.mxu0 0.0
  %1225 = vmatpush.msra.mxu0 0.0
  %1226 = vmatpush.msra.mxu0 0.0
  %1227 = vmatpush.msra.mxu0 0.0
  %1228 = vmatpush.msra.mxu0 0.0
  %1229 = vmatpush.msra.mxu0 0.0
  %1230 = vmatpush.msra.mxu0 0.0
  %1231 = vmatpush.msra.mxu0 0.0
  %1232 = vmatpush.msra.mxu0 %v240
  %1233 = vmatpush.msra.mxu0 %v239
  %1234 = vmatmul.f32.gmra.mxu0 %v1175
  %v1235 = vpop.f32.mrf.mxu0
  %v1236 = vadd.f32 0.0, %v1235
  %1237 = vdwg.mxu0
  %v1238 = vadd.f32 %v1217, %v1236
  %v1239 = vxor.u32 %v1238, 2147483648
  %v1240 = vmul.f32 %v1239, 1.442695
  %v1241 = vpow.pop %v1240
  %v1242 = vadd.f32 %v1241, 1.0
  %v1243 = vrcp.pop %v1242
  %v1244 = vmul.f32 %v1242, %v1243
  %v1245 = vsub.f32 1.0, %v1244
  %v1246 = vmul.f32 %v1243, %v1245
  %v1247 = vadd.f32 %v1243, %v1246
  %vm1248 = vweird.f32 %v1242
  %vm1249 = vweird.f32 %v1243
  %vm1250 = vmor %vm1248, %vm1249
  %v1251 = vsel %vm1250, %v1243, %v1247
  %v1252 = vand.u32 2147483647, %v1242
  %vm1253 = vcmp.eq.f32.partialorder %v1252, 8.507059e+37
  %v1254 = vand.u32 %v1242, 2147483648
  %v1255 = vor.u32 1.1754944e-38, %v1254
  %v1256 = vsel %vm1253, %v1255, %v1251
  %v1257 = vmul.f32 1.0, %v1256
  %v1258 = vld [vmem:[%s131 + $0x8] sm:$0x3]
  %1259 = vmatpush.msra.mxu0 0.0
  %1260 = vmatpush.msra.mxu0 0.0
  %1261 = vmatpush.msra.mxu0 0.0
  %1262 = vmatpush.msra.mxu0 0.0
  %1263 = vmatpush.msra.mxu0 0.0
  %1264 = vmatpush.msra.mxu0 0.0
  %1265 = vmatpush.msra.mxu0 0.0
  %1266 = vmatpush.msra.mxu0 0.0
  %1267 = vmatpush.msra.mxu0 0.0
  %1268 = vmatpush.msra.mxu0 0.0
  %1269 = vmatpush.msra.mxu0 0.0
  %1270 = vmatpush.msra.mxu0 0.0
  %1271 = vmatpush.msra.mxu0 0.0
  %1272 = vmatpush.msra.mxu0 0.0
  %1273 = vmatpush.msra.mxu0 %v243
  %1274 = vmatpush.msra.mxu0 %v242
  %1275 = vmatmul.f32.gmra.mxu0 %v1175
  %v1276 = vpop.f32.mrf.mxu0
  %v1277 = vadd.f32 %v344, %v1276
  %1278 = vdwg.mxu0
  %v1279 = vmul.f32 %v1216, %v1277
  %v1280 = vadd.f32 %v1258, %v1279
  %v1281 = vtanh.pop %v1280
  %v1282 = vsub.f32 1.0, %v1257
  %v1283 = vmul.f32 %v1282, %v1281
  %v1284 = vmul.f32 %v1257, %v1057
  %v1285 = vadd.f32 %v1283, %v1284
  %1286 = vst.msk [vmem:[#allocation3 + $0x8] sm:$0x3] %vm373, %v1285
  %v1287 = vld [vmem:[%s165 + $0x6] sm:$0x3]
  %v1289 = vsel %vm34, %v1171, 0
  %1291 = vmatpush.msra.mxu0 0.0
  %1292 = vmatpush.msra.mxu0 0.0
  %1293 = vmatpush.msra.mxu0 0.0
  %1294 = vmatpush.msra.mxu0 0.0
  %1295 = vmatpush.msra.mxu0 0.0
  %1296 = vmatpush.msra.mxu0 0.0
  %1297 = vmatpush.msra.mxu0 0.0
  %1298 = vmatpush.msra.mxu0 0.0
  %1299 = vmatpush.msra.mxu0 0.0
  %1300 = vmatpush.msra.mxu0 0.0
  %1301 = vmatpush.msra.mxu0 0.0
  %1302 = vmatpush.msra.mxu0 0.0
  %1303 = vmatpush.msra.mxu0 0.0
  %1304 = vmatpush.msra.mxu0 0.0
  %1305 = vmatpush.msra.mxu0 %v246
  %1306 = vmatpush.msra.mxu0 %v245
  %1307 = vmatmul.f32.gmra.mxu0 %v1289
  %v1308 = vpop.f32.mrf.mxu0
  %v1309 = vadd.f32 0.0, %v1308
  %1310 = vdwg.mxu0
  %v1311 = vadd.f32 %v1287, %v1309
  %v1312 = vxor.u32 %v1311, 2147483648
  %v1313 = vmul.f32 %v1312, 1.442695
  %v1314 = vpow.pop %v1313
  %v1315 = vadd.f32 %v1314, 1.0
  %v1316 = vrcp.pop %v1315
  %v1317 = vmul.f32 %v1315, %v1316
  %v1318 = vsub.f32 1.0, %v1317
  %v1319 = vmul.f32 %v1316, %v1318
  %v1320 = vadd.f32 %v1316, %v1319
  %vm1321 = vweird.f32 %v1315
  %vm1322 = vweird.f32 %v1316
  %vm1323 = vmor %vm1321, %vm1322
  %v1324 = vsel %vm1323, %v1316, %v1320
  %v1325 = vand.u32 2147483647, %v1315
  %vm1326 = vcmp.eq.f32.partialorder %v1325, 8.507059e+37
  %v1327 = vand.u32 %v1315, 2147483648
  %v1328 = vor.u32 1.1754944e-38, %v1327
  %v1329 = vsel %vm1326, %v1328, %v1324
  %v1330 = vmul.f32 1.0, %v1329
  %v1331 = vld [vmem:[%s199 + $0x6] sm:$0x3]
  %1332 = vmatpush.msra.mxu0 0.0
  %1333 = vmatpush.msra.mxu0 0.0
  %1334 = vmatpush.msra.mxu0 0.0
  %1335 = vmatpush.msra.mxu0 0.0
  %1336 = vmatpush.msra.mxu0 0.0
  %1337 = vmatpush.msra.mxu0 0.0
  %1338 = vmatpush.msra.mxu0 0.0
  %1339 = vmatpush.msra.mxu0 0.0
  %1340 = vmatpush.msra.mxu0 0.0
  %1341 = vmatpush.msra.mxu0 0.0
  %1342 = vmatpush.msra.mxu0 0.0
  %1343 = vmatpush.msra.mxu0 0.0
  %1344 = vmatpush.msra.mxu0 0.0
  %1345 = vmatpush.msra.mxu0 0.0
  %1346 = vmatpush.msra.mxu0 %v249
  %1347 = vmatpush.msra.mxu0 %v248
  %1348 = vmatmul.f32.gmra.mxu0 %v1289
  %v1349 = vpop.f32.mrf.mxu0
  %v1350 = vadd.f32 0.0, %v1349
  %1351 = vdwg.mxu0
  %v1352 = vadd.f32 %v1331, %v1350
  %v1353 = vxor.u32 %v1352, 2147483648
  %v1354 = vmul.f32 %v1353, 1.442695
  %v1355 = vpow.pop %v1354
  %v1356 = vadd.f32 %v1355, 1.0
  %v1357 = vrcp.pop %v1356
  %v1358 = vmul.f32 %v1356, %v1357
  %v1359 = vsub.f32 1.0, %v1358
  %v1360 = vmul.f32 %v1357, %v1359
  %v1361 = vadd.f32 %v1357, %v1360
  %vm1362 = vweird.f32 %v1356
  %vm1363 = vweird.f32 %v1357
  %vm1364 = vmor %vm1362, %vm1363
  %v1365 = vsel %vm1364, %v1357, %v1361
  %v1366 = vand.u32 2147483647, %v1356
  %vm1367 = vcmp.eq.f32.partialorder %v1366, 8.507059e+37
  %v1368 = vand.u32 %v1356, 2147483648
  %v1369 = vor.u32 1.1754944e-38, %v1368
  %v1370 = vsel %vm1367, %v1369, %v1365
  %v1371 = vmul.f32 1.0, %v1370
  %v1372 = vld [vmem:[%s233 + $0x6] sm:$0x3]
  %1373 = vmatpush.msra.mxu0 0.0
  %1374 = vmatpush.msra.mxu0 0.0
  %1375 = vmatpush.msra.mxu0 0.0
  %1376 = vmatpush.msra.mxu0 0.0
  %1377 = vmatpush.msra.mxu0 0.0
  %1378 = vmatpush.msra.mxu0 0.0
  %1379 = vmatpush.msra.mxu0 0.0
  %1380 = vmatpush.msra.mxu0 0.0
  %1381 = vmatpush.msra.mxu0 0.0
  %1382 = vmatpush.msra.mxu0 0.0
  %1383 = vmatpush.msra.mxu0 0.0
  %1384 = vmatpush.msra.mxu0 0.0
  %1385 = vmatpush.msra.mxu0 0.0
  %1386 = vmatpush.msra.mxu0 0.0
  %1387 = vmatpush.msra.mxu0 %v252
  %1388 = vmatpush.msra.mxu0 %v251
  %1389 = vmatmul.f32.gmra.mxu0 %v1289
  %v1390 = vpop.f32.mrf.mxu0
  %v1391 = vadd.f32 %v459, %v1390
  %1392 = vdwg.mxu0
  %v1393 = vmul.f32 %v1330, %v1391
  %v1394 = vadd.f32 %v1372, %v1393
  %v1395 = vtanh.pop %v1394
  %v1396 = vsub.f32 1.0, %v1371
  %v1397 = vmul.f32 %v1396, %v1395
  %v1398 = vmul.f32 %v1371, %v1171
  %v1399 = vadd.f32 %v1397, %v1398
  %1400 = vst.msk [vmem:[#allocation4 + $0x6] sm:$0x3] %vm373, %v1399
  %v1401 = vld [vmem:[#allocation2 + $0xa] sm:$0x3]
  %v1403 = vsel %vm34, %v1285, 0
  %1405 = vmatpush.msra.mxu0 0.0
  %1406 = vmatpush.msra.mxu0 0.0
  %1407 = vmatpush.msra.mxu0 0.0
  %1408 = vmatpush.msra.mxu0 0.0
  %1409 = vmatpush.msra.mxu0 0.0
  %1410 = vmatpush.msra.mxu0 0.0
  %1411 = vmatpush.msra.mxu0 0.0
  %1412 = vmatpush.msra.mxu0 0.0
  %1413 = vmatpush.msra.mxu0 0.0
  %1414 = vmatpush.msra.mxu0 0.0
  %1415 = vmatpush.msra.mxu0 0.0
  %1416 = vmatpush.msra.mxu0 0.0
  %1417 = vmatpush.msra.mxu0 0.0
  %1418 = vmatpush.msra.mxu0 0.0
  %1419 = vmatpush.msra.mxu0 %v237
  %1420 = vmatpush.msra.mxu0 %v236
  %1421 = vmatmul.f32.gmra.mxu0 %v1403
  %v1422 = vpop.f32.mrf.mxu0
  %v1423 = vadd.f32 0.0, %v1422
  %1424 = vdwg.mxu0
  %v1425 = vadd.f32 %v1401, %v1423
  %v1426 = vxor.u32 %v1425, 2147483648
  %v1427 = vmul.f32 %v1426, 1.442695
  %v1428 = vpow.pop %v1427
  %v1429 = vadd.f32 %v1428, 1.0
  %v1430 = vrcp.pop %v1429
  %v1431 = vmul.f32 %v1429, %v1430
  %v1432 = vsub.f32 1.0, %v1431
  %v1433 = vmul.f32 %v1430, %v1432
  %v1434 = vadd.f32 %v1430, %v1433
  %vm1435 = vweird.f32 %v1429
  %vm1436 = vweird.f32 %v1430
  %vm1437 = vmor %vm1435, %vm1436
  %v1438 = vsel %vm1437, %v1430, %v1434
  %v1439 = vand.u32 2147483647, %v1429
  %vm1440 = vcmp.eq.f32.partialorder %v1439, 8.507059e+37
  %v1441 = vand.u32 %v1429, 2147483648
  %v1442 = vor.u32 1.1754944e-38, %v1441
  %v1443 = vsel %vm1440, %v1442, %v1438
  %v1444 = vmul.f32 1.0, %v1443
  %v1445 = vld [vmem:[%s97 + $0xa] sm:$0x3]
  %1446 = vmatpush.msra.mxu0 0.0
  %1447 = vmatpush.msra.mxu0 0.0
  %1448 = vmatpush.msra.mxu0 0.0
  %1449 = vmatpush.msra.mxu0 0.0
  %1450 = vmatpush.msra.mxu0 0.0
  %1451 = vmatpush.msra.mxu0 0.0
  %1452 = vmatpush.msra.mxu0 0.0
  %1453 = vmatpush.msra.mxu0 0.0
  %1454 = vmatpush.msra.mxu0 0.0
  %1455 = vmatpush.msra.mxu0 0.0
  %1456 = vmatpush.msra.mxu0 0.0
  %1457 = vmatpush.msra.mxu0 0.0
  %1458 = vmatpush.msra.mxu0 0.0
  %1459 = vmatpush.msra.mxu0 0.0
  %1460 = vmatpush.msra.mxu0 %v240
  %1461 = vmatpush.msra.mxu0 %v239
  %1462 = vmatmul.f32.gmra.mxu0 %v1403
  %v1463 = vpop.f32.mrf.mxu0
  %v1464 = vadd.f32 0.0, %v1463
  %1465 = vdwg.mxu0
  %v1466 = vadd.f32 %v1445, %v1464
  %v1467 = vxor.u32 %v1466, 2147483648
  %v1468 = vmul.f32 %v1467, 1.442695
  %v1469 = vpow.pop %v1468
  %v1470 = vadd.f32 %v1469, 1.0
  %v1471 = vrcp.pop %v1470
  %v1472 = vmul.f32 %v1470, %v1471
  %v1473 = vsub.f32 1.0, %v1472
  %v1474 = vmul.f32 %v1471, %v1473
  %v1475 = vadd.f32 %v1471, %v1474
  %vm1476 = vweird.f32 %v1470
  %vm1477 = vweird.f32 %v1471
  %vm1478 = vmor %vm1476, %vm1477
  %v1479 = vsel %vm1478, %v1471, %v1475
  %v1480 = vand.u32 2147483647, %v1470
  %vm1481 = vcmp.eq.f32.partialorder %v1480, 8.507059e+37
  %v1482 = vand.u32 %v1470, 2147483648
  %v1483 = vor.u32 1.1754944e-38, %v1482
  %v1484 = vsel %vm1481, %v1483, %v1479
  %v1485 = vmul.f32 1.0, %v1484
  %v1486 = vld [vmem:[%s131 + $0xa] sm:$0x3]
  %1487 = vmatpush.msra.mxu0 0.0
  %1488 = vmatpush.msra.mxu0 0.0
  %1489 = vmatpush.msra.mxu0 0.0
  %1490 = vmatpush.msra.mxu0 0.0
  %1491 = vmatpush.msra.mxu0 0.0
  %1492 = vmatpush.msra.mxu0 0.0
  %1493 = vmatpush.msra.mxu0 0.0
  %1494 = vmatpush.msra.mxu0 0.0
  %1495 = vmatpush.msra.mxu0 0.0
  %1496 = vmatpush.msra.mxu0 0.0
  %1497 = vmatpush.msra.mxu0 0.0
  %1498 = vmatpush.msra.mxu0 0.0
  %1499 = vmatpush.msra.mxu0 0.0
  %1500 = vmatpush.msra.mxu0 0.0
  %1501 = vmatpush.msra.mxu0 %v243
  %1502 = vmatpush.msra.mxu0 %v242
  %1503 = vmatmul.f32.gmra.mxu0 %v1403
  %v1504 = vpop.f32.mrf.mxu0
  %v1505 = vadd.f32 %v344, %v1504
  %1506 = vdwg.mxu0
  %v1507 = vmul.f32 %v1444, %v1505
  %v1508 = vadd.f32 %v1486, %v1507
  %v1509 = vtanh.pop %v1508
  %v1510 = vsub.f32 1.0, %v1485
  %v1511 = vmul.f32 %v1510, %v1509
  %v1512 = vmul.f32 %v1485, %v1285
  %v1513 = vadd.f32 %v1511, %v1512
  %1514 = vst.msk [vmem:[#allocation3 + $0xa] sm:$0x3] %vm373, %v1513
  %v1515 = vld [vmem:[%s165 + $0x4] sm:$0x3]
  %v1517 = vsel %vm34, %v1399, 0
  %1519 = vmatpush.msra.mxu0 0.0
  %1520 = vmatpush.msra.mxu0 0.0
  %1521 = vmatpush.msra.mxu0 0.0
  %1522 = vmatpush.msra.mxu0 0.0
  %1523 = vmatpush.msra.mxu0 0.0
  %1524 = vmatpush.msra.mxu0 0.0
  %1525 = vmatpush.msra.mxu0 0.0
  %1526 = vmatpush.msra.mxu0 0.0
  %1527 = vmatpush.msra.mxu0 0.0
  %1528 = vmatpush.msra.mxu0 0.0
  %1529 = vmatpush.msra.mxu0 0.0
  %1530 = vmatpush.msra.mxu0 0.0
  %1531 = vmatpush.msra.mxu0 0.0
  %1532 = vmatpush.msra.mxu0 0.0
  %1533 = vmatpush.msra.mxu0 %v246
  %1534 = vmatpush.msra.mxu0 %v245
  %1535 = vmatmul.f32.gmra.mxu0 %v1517
  %v1536 = vpop.f32.mrf.mxu0
  %v1537 = vadd.f32 0.0, %v1536
  %1538 = vdwg.mxu0
  %v1539 = vadd.f32 %v1515, %v1537
  %v1540 = vxor.u32 %v1539, 2147483648
  %v1541 = vmul.f32 %v1540, 1.442695
  %v1542 = vpow.pop %v1541
  %v1543 = vadd.f32 %v1542, 1.0
  %v1544 = vrcp.pop %v1543
  %v1545 = vmul.f32 %v1543, %v1544
  %v1546 = vsub.f32 1.0, %v1545
  %v1547 = vmul.f32 %v1544, %v1546
  %v1548 = vadd.f32 %v1544, %v1547
  %vm1549 = vweird.f32 %v1543
  %vm1550 = vweird.f32 %v1544
  %vm1551 = vmor %vm1549, %vm1550
  %v1552 = vsel %vm1551, %v1544, %v1548
  %v1553 = vand.u32 2147483647, %v1543
  %vm1554 = vcmp.eq.f32.partialorder %v1553, 8.507059e+37
  %v1555 = vand.u32 %v1543, 2147483648
  %v1556 = vor.u32 1.1754944e-38, %v1555
  %v1557 = vsel %vm1554, %v1556, %v1552
  %v1558 = vmul.f32 1.0, %v1557
  %v1559 = vld [vmem:[%s199 + $0x4] sm:$0x3]
  %1560 = vmatpush.msra.mxu0 0.0
  %1561 = vmatpush.msra.mxu0 0.0
  %1562 = vmatpush.msra.mxu0 0.0
  %1563 = vmatpush.msra.mxu0 0.0
  %1564 = vmatpush.msra.mxu0 0.0
  %1565 = vmatpush.msra.mxu0 0.0
  %1566 = vmatpush.msra.mxu0 0.0
  %1567 = vmatpush.msra.mxu0 0.0
  %1568 = vmatpush.msra.mxu0 0.0
  %1569 = vmatpush.msra.mxu0 0.0
  %1570 = vmatpush.msra.mxu0 0.0
  %1571 = vmatpush.msra.mxu0 0.0
  %1572 = vmatpush.msra.mxu0 0.0
  %1573 = vmatpush.msra.mxu0 0.0
  %1574 = vmatpush.msra.mxu0 %v249
  %1575 = vmatpush.msra.mxu0 %v248
  %1576 = vmatmul.f32.gmra.mxu0 %v1517
  %v1577 = vpop.f32.mrf.mxu0
  %v1578 = vadd.f32 0.0, %v1577
  %1579 = vdwg.mxu0
  %v1580 = vadd.f32 %v1559, %v1578
  %v1581 = vxor.u32 %v1580, 2147483648
  %v1582 = vmul.f32 %v1581, 1.442695
  %v1583 = vpow.pop %v1582
  %v1584 = vadd.f32 %v1583, 1.0
  %v1585 = vrcp.pop %v1584
  %v1586 = vmul.f32 %v1584, %v1585
  %v1587 = vsub.f32 1.0, %v1586
  %v1588 = vmul.f32 %v1585, %v1587
  %v1589 = vadd.f32 %v1585, %v1588
  %vm1590 = vweird.f32 %v1584
  %vm1591 = vweird.f32 %v1585
  %vm1592 = vmor %vm1590, %vm1591
  %v1593 = vsel %vm1592, %v1585, %v1589
  %v1594 = vand.u32 2147483647, %v1584
  %vm1595 = vcmp.eq.f32.partialorder %v1594, 8.507059e+37
  %v1596 = vand.u32 %v1584, 2147483648
  %v1597 = vor.u32 1.1754944e-38, %v1596
  %v1598 = vsel %vm1595, %v1597, %v1593
  %v1599 = vmul.f32 1.0, %v1598
  %v1600 = vld [vmem:[%s233 + $0x4] sm:$0x3]
  %1601 = vmatpush.msra.mxu0 0.0
  %1602 = vmatpush.msra.mxu0 0.0
  %1603 = vmatpush.msra.mxu0 0.0
  %1604 = vmatpush.msra.mxu0 0.0
  %1605 = vmatpush.msra.mxu0 0.0
  %1606 = vmatpush.msra.mxu0 0.0
  %1607 = vmatpush.msra.mxu0 0.0
  %1608 = vmatpush.msra.mxu0 0.0
  %1609 = vmatpush.msra.mxu0 0.0
  %1610 = vmatpush.msra.mxu0 0.0
  %1611 = vmatpush.msra.mxu0 0.0
  %1612 = vmatpush.msra.mxu0 0.0
  %1613 = vmatpush.msra.mxu0 0.0
  %1614 = vmatpush.msra.mxu0 0.0
  %1615 = vmatpush.msra.mxu0 %v252
  %1616 = vmatpush.msra.mxu0 %v251
  %1617 = vmatmul.f32.gmra.mxu0 %v1517
  %v1618 = vpop.f32.mrf.mxu0
  %v1619 = vadd.f32 %v459, %v1618
  %1620 = vdwg.mxu0
  %v1621 = vmul.f32 %v1558, %v1619
  %v1622 = vadd.f32 %v1600, %v1621
  %v1623 = vtanh.pop %v1622
  %v1624 = vsub.f32 1.0, %v1599
  %v1625 = vmul.f32 %v1624, %v1623
  %v1626 = vmul.f32 %v1599, %v1399
  %v1627 = vadd.f32 %v1625, %v1626
  %1628 = vst.msk [vmem:[#allocation4 + $0x4] sm:$0x3] %vm373, %v1627
  %v1629 = vld [vmem:[#allocation2 + $0xc] sm:$0x3]
  %v1631 = vsel %vm34, %v1513, 0
  %1633 = vmatpush.msra.mxu0 0.0
  %1634 = vmatpush.msra.mxu0 0.0
  %1635 = vmatpush.msra.mxu0 0.0
  %1636 = vmatpush.msra.mxu0 0.0
  %1637 = vmatpush.msra.mxu0 0.0
  %1638 = vmatpush.msra.mxu0 0.0
  %1639 = vmatpush.msra.mxu0 0.0
  %1640 = vmatpush.msra.mxu0 0.0
  %1641 = vmatpush.msra.mxu0 0.0
  %1642 = vmatpush.msra.mxu0 0.0
  %1643 = vmatpush.msra.mxu0 0.0
  %1644 = vmatpush.msra.mxu0 0.0
  %1645 = vmatpush.msra.mxu0 0.0
  %1646 = vmatpush.msra.mxu0 0.0
  %1647 = vmatpush.msra.mxu0 %v237
  %1648 = vmatpush.msra.mxu0 %v236
  %1649 = vmatmul.f32.gmra.mxu0 %v1631
  %v1650 = vpop.f32.mrf.mxu0
  %v1651 = vadd.f32 0.0, %v1650
  %1652 = vdwg.mxu0
  %v1653 = vadd.f32 %v1629, %v1651
  %v1654 = vxor.u32 %v1653, 2147483648
  %v1655 = vmul.f32 %v1654, 1.442695
  %v1656 = vpow.pop %v1655
  %v1657 = vadd.f32 %v1656, 1.0
  %v1658 = vrcp.pop %v1657
  %v1659 = vmul.f32 %v1657, %v1658
  %v1660 = vsub.f32 1.0, %v1659
  %v1661 = vmul.f32 %v1658, %v1660
  %v1662 = vadd.f32 %v1658, %v1661
  %vm1663 = vweird.f32 %v1657
  %vm1664 = vweird.f32 %v1658
  %vm1665 = vmor %vm1663, %vm1664
  %v1666 = vsel %vm1665, %v1658, %v1662
  %v1667 = vand.u32 2147483647, %v1657
  %vm1668 = vcmp.eq.f32.partialorder %v1667, 8.507059e+37
  %v1669 = vand.u32 %v1657, 2147483648
  %v1670 = vor.u32 1.1754944e-38, %v1669
  %v1671 = vsel %vm1668, %v1670, %v1666
  %v1672 = vmul.f32 1.0, %v1671
  %v1673 = vld [vmem:[%s97 + $0xc] sm:$0x3]
  %1674 = vmatpush.msra.mxu0 0.0
  %1675 = vmatpush.msra.mxu0 0.0
  %1676 = vmatpush.msra.mxu0 0.0
  %1677 = vmatpush.msra.mxu0 0.0
  %1678 = vmatpush.msra.mxu0 0.0
  %1679 = vmatpush.msra.mxu0 0.0
  %1680 = vmatpush.msra.mxu0 0.0
  %1681 = vmatpush.msra.mxu0 0.0
  %1682 = vmatpush.msra.mxu0 0.0
  %1683 = vmatpush.msra.mxu0 0.0
  %1684 = vmatpush.msra.mxu0 0.0
  %1685 = vmatpush.msra.mxu0 0.0
  %1686 = vmatpush.msra.mxu0 0.0
  %1687 = vmatpush.msra.mxu0 0.0
  %1688 = vmatpush.msra.mxu0 %v240
  %1689 = vmatpush.msra.mxu0 %v239
  %1690 = vmatmul.f32.gmra.mxu0 %v1631
  %v1691 = vpop.f32.mrf.mxu0
  %v1692 = vadd.f32 0.0, %v1691
  %1693 = vdwg.mxu0
  %v1694 = vadd.f32 %v1673, %v1692
  %v1695 = vxor.u32 %v1694, 2147483648
  %v1696 = vmul.f32 %v1695, 1.442695
  %v1697 = vpow.pop %v1696
  %v1698 = vadd.f32 %v1697, 1.0
  %v1699 = vrcp.pop %v1698
  %v1700 = vmul.f32 %v1698, %v1699
  %v1701 = vsub.f32 1.0, %v1700
  %v1702 = vmul.f32 %v1699, %v1701
  %v1703 = vadd.f32 %v1699, %v1702
  %vm1704 = vweird.f32 %v1698
  %vm1705 = vweird.f32 %v1699
  %vm1706 = vmor %vm1704, %vm1705
  %v1707 = vsel %vm1706, %v1699, %v1703
  %v1708 = vand.u32 2147483647, %v1698
  %vm1709 = vcmp.eq.f32.partialorder %v1708, 8.507059e+37
  %v1710 = vand.u32 %v1698, 2147483648
  %v1711 = vor.u32 1.1754944e-38, %v1710
  %v1712 = vsel %vm1709, %v1711, %v1707
  %v1713 = vmul.f32 1.0, %v1712
  %v1714 = vld [vmem:[%s131 + $0xc] sm:$0x3]
  %1715 = vmatpush.msra.mxu0 0.0
  %1716 = vmatpush.msra.mxu0 0.0
  %1717 = vmatpush.msra.mxu0 0.0
  %1718 = vmatpush.msra.mxu0 0.0
  %1719 = vmatpush.msra.mxu0 0.0
  %1720 = vmatpush.msra.mxu0 0.0
  %1721 = vmatpush.msra.mxu0 0.0
  %1722 = vmatpush.msra.mxu0 0.0
  %1723 = vmatpush.msra.mxu0 0.0
  %1724 = vmatpush.msra.mxu0 0.0
  %1725 = vmatpush.msra.mxu0 0.0
  %1726 = vmatpush.msra.mxu0 0.0
  %1727 = vmatpush.msra.mxu0 0.0
  %1728 = vmatpush.msra.mxu0 0.0
  %1729 = vmatpush.msra.mxu0 %v243
  %1730 = vmatpush.msra.mxu0 %v242
  %1731 = vmatmul.f32.gmra.mxu0 %v1631
  %v1732 = vpop.f32.mrf.mxu0
  %v1733 = vadd.f32 %v344, %v1732
  %1734 = vdwg.mxu0
  %v1735 = vmul.f32 %v1672, %v1733
  %v1736 = vadd.f32 %v1714, %v1735
  %v1737 = vtanh.pop %v1736
  %v1738 = vsub.f32 1.0, %v1713
  %v1739 = vmul.f32 %v1738, %v1737
  %v1740 = vmul.f32 %v1713, %v1513
  %v1741 = vadd.f32 %v1739, %v1740
  %1742 = vst.msk [vmem:[#allocation3 + $0xc] sm:$0x3] %vm373, %v1741
  %v1743 = vld [vmem:[%s165 + $0x2] sm:$0x3]
  %v1745 = vsel %vm34, %v1627, 0
  %1747 = vmatpush.msra.mxu0 0.0
  %1748 = vmatpush.msra.mxu0 0.0
  %1749 = vmatpush.msra.mxu0 0.0
  %1750 = vmatpush.msra.mxu0 0.0
  %1751 = vmatpush.msra.mxu0 0.0
  %1752 = vmatpush.msra.mxu0 0.0
  %1753 = vmatpush.msra.mxu0 0.0
  %1754 = vmatpush.msra.mxu0 0.0
  %1755 = vmatpush.msra.mxu0 0.0
  %1756 = vmatpush.msra.mxu0 0.0
  %1757 = vmatpush.msra.mxu0 0.0
  %1758 = vmatpush.msra.mxu0 0.0
  %1759 = vmatpush.msra.mxu0 0.0
  %1760 = vmatpush.msra.mxu0 0.0
  %1761 = vmatpush.msra.mxu0 %v246
  %1762 = vmatpush.msra.mxu0 %v245
  %1763 = vmatmul.f32.gmra.mxu0 %v1745
  %v1764 = vpop.f32.mrf.mxu0
  %v1765 = vadd.f32 0.0, %v1764
  %1766 = vdwg.mxu0
  %v1767 = vadd.f32 %v1743, %v1765
  %v1768 = vxor.u32 %v1767, 2147483648
  %v1769 = vmul.f32 %v1768, 1.442695
  %v1770 = vpow.pop %v1769
  %v1771 = vadd.f32 %v1770, 1.0
  %v1772 = vrcp.pop %v1771
  %v1773 = vmul.f32 %v1771, %v1772
  %v1774 = vsub.f32 1.0, %v1773
  %v1775 = vmul.f32 %v1772, %v1774
  %v1776 = vadd.f32 %v1772, %v1775
  %vm1777 = vweird.f32 %v1771
  %vm1778 = vweird.f32 %v1772
  %vm1779 = vmor %vm1777, %vm1778
  %v1780 = vsel %vm1779, %v1772, %v1776
  %v1781 = vand.u32 2147483647, %v1771
  %vm1782 = vcmp.eq.f32.partialorder %v1781, 8.507059e+37
  %v1783 = vand.u32 %v1771, 2147483648
  %v1784 = vor.u32 1.1754944e-38, %v1783
  %v1785 = vsel %vm1782, %v1784, %v1780
  %v1786 = vmul.f32 1.0, %v1785
  %v1787 = vld [vmem:[%s199 + $0x2] sm:$0x3]
  %1788 = vmatpush.msra.mxu0 0.0
  %1789 = vmatpush.msra.mxu0 0.0
  %1790 = vmatpush.msra.mxu0 0.0
  %1791 = vmatpush.msra.mxu0 0.0
  %1792 = vmatpush.msra.mxu0 0.0
  %1793 = vmatpush.msra.mxu0 0.0
  %1794 = vmatpush.msra.mxu0 0.0
  %1795 = vmatpush.msra.mxu0 0.0
  %1796 = vmatpush.msra.mxu0 0.0
  %1797 = vmatpush.msra.mxu0 0.0
  %1798 = vmatpush.msra.mxu0 0.0
  %1799 = vmatpush.msra.mxu0 0.0
  %1800 = vmatpush.msra.mxu0 0.0
  %1801 = vmatpush.msra.mxu0 0.0
  %1802 = vmatpush.msra.mxu0 %v249
  %1803 = vmatpush.msra.mxu0 %v248
  %1804 = vmatmul.f32.gmra.mxu0 %v1745
  %v1805 = vpop.f32.mrf.mxu0
  %v1806 = vadd.f32 0.0, %v1805
  %1807 = vdwg.mxu0
  %v1808 = vadd.f32 %v1787, %v1806
  %v1809 = vxor.u32 %v1808, 2147483648
  %v1810 = vmul.f32 %v1809, 1.442695
  %v1811 = vpow.pop %v1810
  %v1812 = vadd.f32 %v1811, 1.0
  %v1813 = vrcp.pop %v1812
  %v1814 = vmul.f32 %v1812, %v1813
  %v1815 = vsub.f32 1.0, %v1814
  %v1816 = vmul.f32 %v1813, %v1815
  %v1817 = vadd.f32 %v1813, %v1816
  %vm1818 = vweird.f32 %v1812
  %vm1819 = vweird.f32 %v1813
  %vm1820 = vmor %vm1818, %vm1819
  %v1821 = vsel %vm1820, %v1813, %v1817
  %v1822 = vand.u32 2147483647, %v1812
  %vm1823 = vcmp.eq.f32.partialorder %v1822, 8.507059e+37
  %v1824 = vand.u32 %v1812, 2147483648
  %v1825 = vor.u32 1.1754944e-38, %v1824
  %v1826 = vsel %vm1823, %v1825, %v1821
  %v1827 = vmul.f32 1.0, %v1826
  %v1828 = vld [vmem:[%s233 + $0x2] sm:$0x3]
  %1829 = vmatpush.msra.mxu0 0.0
  %1830 = vmatpush.msra.mxu0 0.0
  %1831 = vmatpush.msra.mxu0 0.0
  %1832 = vmatpush.msra.mxu0 0.0
  %1833 = vmatpush.msra.mxu0 0.0
  %1834 = vmatpush.msra.mxu0 0.0
  %1835 = vmatpush.msra.mxu0 0.0
  %1836 = vmatpush.msra.mxu0 0.0
  %1837 = vmatpush.msra.mxu0 0.0
  %1838 = vmatpush.msra.mxu0 0.0
  %1839 = vmatpush.msra.mxu0 0.0
  %1840 = vmatpush.msra.mxu0 0.0
  %1841 = vmatpush.msra.mxu0 0.0
  %1842 = vmatpush.msra.mxu0 0.0
  %1843 = vmatpush.msra.mxu0 %v252
  %1844 = vmatpush.msra.mxu0 %v251
  %1845 = vmatmul.f32.gmra.mxu0 %v1745
  %v1846 = vpop.f32.mrf.mxu0
  %v1847 = vadd.f32 %v459, %v1846
  %1848 = vdwg.mxu0
  %v1849 = vmul.f32 %v1786, %v1847
  %v1850 = vadd.f32 %v1828, %v1849
  %v1851 = vtanh.pop %v1850
  %v1852 = vsub.f32 1.0, %v1827
  %v1853 = vmul.f32 %v1852, %v1851
  %v1854 = vmul.f32 %v1827, %v1627
  %v1855 = vadd.f32 %v1853, %v1854
  %1856 = vst.msk [vmem:[#allocation4 + $0x2] sm:$0x3] %vm373, %v1855
  %v1857 = vld [vmem:[#allocation2 + $0xe] sm:$0x3]
  %v1859 = vsel %vm34, %v1741, 0
  %1861 = vmatpush.msra.mxu0 0.0
  %1862 = vmatpush.msra.mxu0 0.0
  %1863 = vmatpush.msra.mxu0 0.0
  %1864 = vmatpush.msra.mxu0 0.0
  %1865 = vmatpush.msra.mxu0 0.0
  %1866 = vmatpush.msra.mxu0 0.0
  %1867 = vmatpush.msra.mxu0 0.0
  %1868 = vmatpush.msra.mxu0 0.0
  %1869 = vmatpush.msra.mxu0 0.0
  %1870 = vmatpush.msra.mxu0 0.0
  %1871 = vmatpush.msra.mxu0 0.0
  %1872 = vmatpush.msra.mxu0 0.0
  %1873 = vmatpush.msra.mxu0 0.0
  %1874 = vmatpush.msra.mxu0 0.0
  %1875 = vmatpush.msra.mxu0 %v237
  %1876 = vmatpush.msra.mxu0 %v236
  %1877 = vmatmul.f32.gmra.mxu0 %v1859
  %v1878 = vpop.f32.mrf.mxu0
  %v1879 = vadd.f32 0.0, %v1878
  %1880 = vdwg.mxu0
  %v1881 = vadd.f32 %v1857, %v1879
  %v1882 = vxor.u32 %v1881, 2147483648
  %v1883 = vmul.f32 %v1882, 1.442695
  %v1884 = vpow.pop %v1883
  %v1885 = vadd.f32 %v1884, 1.0
  %v1886 = vrcp.pop %v1885
  %v1887 = vmul.f32 %v1885, %v1886
  %v1888 = vsub.f32 1.0, %v1887
  %v1889 = vmul.f32 %v1886, %v1888
  %v1890 = vadd.f32 %v1886, %v1889
  %vm1891 = vweird.f32 %v1885
  %vm1892 = vweird.f32 %v1886
  %vm1893 = vmor %vm1891, %vm1892
  %v1894 = vsel %vm1893, %v1886, %v1890
  %v1895 = vand.u32 2147483647, %v1885
  %vm1896 = vcmp.eq.f32.partialorder %v1895, 8.507059e+37
  %v1897 = vand.u32 %v1885, 2147483648
  %v1898 = vor.u32 1.1754944e-38, %v1897
  %v1899 = vsel %vm1896, %v1898, %v1894
  %v1900 = vmul.f32 1.0, %v1899
  %v1901 = vld [vmem:[%s97 + $0xe] sm:$0x3]
  %1902 = vmatpush.msra.mxu0 0.0
  %1903 = vmatpush.msra.mxu0 0.0
  %1904 = vmatpush.msra.mxu0 0.0
  %1905 = vmatpush.msra.mxu0 0.0
  %1906 = vmatpush.msra.mxu0 0.0
  %1907 = vmatpush.msra.mxu0 0.0
  %1908 = vmatpush.msra.mxu0 0.0
  %1909 = vmatpush.msra.mxu0 0.0
  %1910 = vmatpush.msra.mxu0 0.0
  %1911 = vmatpush.msra.mxu0 0.0
  %1912 = vmatpush.msra.mxu0 0.0
  %1913 = vmatpush.msra.mxu0 0.0
  %1914 = vmatpush.msra.mxu0 0.0
  %1915 = vmatpush.msra.mxu0 0.0
  %1916 = vmatpush.msra.mxu0 %v240
  %1917 = vmatpush.msra.mxu0 %v239
  %1918 = vmatmul.f32.gmra.mxu0 %v1859
  %v1919 = vpop.f32.mrf.mxu0
  %v1920 = vadd.f32 0.0, %v1919
  %1921 = vdwg.mxu0
  %v1922 = vadd.f32 %v1901, %v1920
  %v1923 = vxor.u32 %v1922, 2147483648
  %v1924 = vmul.f32 %v1923, 1.442695
  %v1925 = vpow.pop %v1924
  %v1926 = vadd.f32 %v1925, 1.0
  %v1927 = vrcp.pop %v1926
  %v1928 = vmul.f32 %v1926, %v1927
  %v1929 = vsub.f32 1.0, %v1928
  %v1930 = vmul.f32 %v1927, %v1929
  %v1931 = vadd.f32 %v1927, %v1930
  %vm1932 = vweird.f32 %v1926
  %vm1933 = vweird.f32 %v1927
  %vm1934 = vmor %vm1932, %vm1933
  %v1935 = vsel %vm1934, %v1927, %v1931
  %v1936 = vand.u32 2147483647, %v1926
  %vm1937 = vcmp.eq.f32.partialorder %v1936, 8.507059e+37
  %v1938 = vand.u32 %v1926, 2147483648
  %v1939 = vor.u32 1.1754944e-38, %v1938
  %v1940 = vsel %vm1937, %v1939, %v1935
  %v1941 = vmul.f32 1.0, %v1940
  %v1942 = vld [vmem:[%s131 + $0xe] sm:$0x3]
  %1943 = vmatpush.msra.mxu0 0.0
  %1944 = vmatpush.msra.mxu0 0.0
  %1945 = vmatpush.msra.mxu0 0.0
  %1946 = vmatpush.msra.mxu0 0.0
  %1947 = vmatpush.msra.mxu0 0.0
  %1948 = vmatpush.msra.mxu0 0.0
  %1949 = vmatpush.msra.mxu0 0.0
  %1950 = vmatpush.msra.mxu0 0.0
  %1951 = vmatpush.msra.mxu0 0.0
  %1952 = vmatpush.msra.mxu0 0.0
  %1953 = vmatpush.msra.mxu0 0.0
  %1954 = vmatpush.msra.mxu0 0.0
  %1955 = vmatpush.msra.mxu0 0.0
  %1956 = vmatpush.msra.mxu0 0.0
  %1957 = vmatpush.msra.mxu0 %v243
  %1958 = vmatpush.msra.mxu0 %v242
  %1959 = vmatmul.f32.gmra.mxu0 %v1859
  %v1960 = vpop.f32.mrf.mxu0
  %v1961 = vadd.f32 %v344, %v1960
  %1962 = vdwg.mxu0
  %v1963 = vmul.f32 %v1900, %v1961
  %v1964 = vadd.f32 %v1942, %v1963
  %v1965 = vtanh.pop %v1964
  %v1966 = vsub.f32 1.0, %v1941
  %v1967 = vmul.f32 %v1966, %v1965
  %v1968 = vmul.f32 %v1941, %v1741
  %v1969 = vadd.f32 %v1967, %v1968
  %1970 = vst.msk [vmem:[#allocation3 + $0xe] sm:$0x3] %vm373, %v1969
  %v1971 = vld [vmem:[%s165] sm:$0x3]
  %v1973 = vsel %vm34, %v1855, 0
  %1975 = vmatpush.msra.mxu0 0.0
  %1976 = vmatpush.msra.mxu0 0.0
  %1977 = vmatpush.msra.mxu0 0.0
  %1978 = vmatpush.msra.mxu0 0.0
  %1979 = vmatpush.msra.mxu0 0.0
  %1980 = vmatpush.msra.mxu0 0.0
  %1981 = vmatpush.msra.mxu0 0.0
  %1982 = vmatpush.msra.mxu0 0.0
  %1983 = vmatpush.msra.mxu0 0.0
  %1984 = vmatpush.msra.mxu0 0.0
  %1985 = vmatpush.msra.mxu0 0.0
  %1986 = vmatpush.msra.mxu0 0.0
  %1987 = vmatpush.msra.mxu0 0.0
  %1988 = vmatpush.msra.mxu0 0.0
  %1989 = vmatpush.msra.mxu0 %v246
  %1990 = vmatpush.msra.mxu0 %v245
  %1991 = vmatmul.f32.gmra.mxu0 %v1973
  %v1992 = vpop.f32.mrf.mxu0
  %v1993 = vadd.f32 0.0, %v1992
  %1994 = vdwg.mxu0
  %v1995 = vadd.f32 %v1971, %v1993
  %v1996 = vxor.u32 %v1995, 2147483648
  %v1997 = vmul.f32 %v1996, 1.442695
  %v1998 = vpow.pop %v1997
  %v1999 = vadd.f32 %v1998, 1.0
  %v2000 = vrcp.pop %v1999
  %v2001 = vmul.f32 %v1999, %v2000
  %v2002 = vsub.f32 1.0, %v2001
  %v2003 = vmul.f32 %v2000, %v2002
  %v2004 = vadd.f32 %v2000, %v2003
  %vm2005 = vweird.f32 %v1999
  %vm2006 = vweird.f32 %v2000
  %vm2007 = vmor %vm2005, %vm2006
  %v2008 = vsel %vm2007, %v2000, %v2004
  %v2009 = vand.u32 2147483647, %v1999
  %vm2010 = vcmp.eq.f32.partialorder %v2009, 8.507059e+37
  %v2011 = vand.u32 %v1999, 2147483648
  %v2012 = vor.u32 1.1754944e-38, %v2011
  %v2013 = vsel %vm2010, %v2012, %v2008
  %v2014 = vmul.f32 1.0, %v2013
  %v2015 = vld [vmem:[%s199] sm:$0x3]
  %2016 = vmatpush.msra.mxu0 0.0
  %2017 = vmatpush.msra.mxu0 0.0
  %2018 = vmatpush.msra.mxu0 0.0
  %2019 = vmatpush.msra.mxu0 0.0
  %2020 = vmatpush.msra.mxu0 0.0
  %2021 = vmatpush.msra.mxu0 0.0
  %2022 = vmatpush.msra.mxu0 0.0
  %2023 = vmatpush.msra.mxu0 0.0
  %2024 = vmatpush.msra.mxu0 0.0
  %2025 = vmatpush.msra.mxu0 0.0
  %2026 = vmatpush.msra.mxu0 0.0
  %2027 = vmatpush.msra.mxu0 0.0
  %2028 = vmatpush.msra.mxu0 0.0
  %2029 = vmatpush.msra.mxu0 0.0
  %2030 = vmatpush.msra.mxu0 %v249
  %2031 = vmatpush.msra.mxu0 %v248
  %2032 = vmatmul.f32.gmra.mxu0 %v1973
  %v2033 = vpop.f32.mrf.mxu0
  %v2034 = vadd.f32 0.0, %v2033
  %2035 = vdwg.mxu0
  %v2036 = vadd.f32 %v2015, %v2034
  %v2037 = vxor.u32 %v2036, 2147483648
  %v2038 = vmul.f32 %v2037, 1.442695
  %v2039 = vpow.pop %v2038
  %v2040 = vadd.f32 %v2039, 1.0
  %v2041 = vrcp.pop %v2040
  %v2042 = vmul.f32 %v2040, %v2041
  %v2043 = vsub.f32 1.0, %v2042
  %v2044 = vmul.f32 %v2041, %v2043
  %v2045 = vadd.f32 %v2041, %v2044
  %vm2046 = vweird.f32 %v2040
  %vm2047 = vweird.f32 %v2041
  %vm2048 = vmor %vm2046, %vm2047
  %v2049 = vsel %vm2048, %v2041, %v2045
  %v2050 = vand.u32 2147483647, %v2040
  %vm2051 = vcmp.eq.f32.partialorder %v2050, 8.507059e+37
  %v2052 = vand.u32 %v2040, 2147483648
  %v2053 = vor.u32 1.1754944e-38, %v2052
  %v2054 = vsel %vm2051, %v2053, %v2049
  %v2055 = vmul.f32 1.0, %v2054
  %v2056 = vld [vmem:[%s233] sm:$0x3]
  %2057 = vmatpush.msra.mxu0 0.0
  %2058 = vmatpush.msra.mxu0 0.0
  %2059 = vmatpush.msra.mxu0 0.0
  %2060 = vmatpush.msra.mxu0 0.0
  %2061 = vmatpush.msra.mxu0 0.0
  %2062 = vmatpush.msra.mxu0 0.0
  %2063 = vmatpush.msra.mxu0 0.0
  %2064 = vmatpush.msra.mxu0 0.0
  %2065 = vmatpush.msra.mxu0 0.0
  %2066 = vmatpush.msra.mxu0 0.0
  %2067 = vmatpush.msra.mxu0 0.0
  %2068 = vmatpush.msra.mxu0 0.0
  %2069 = vmatpush.msra.mxu0 0.0
  %2070 = vmatpush.msra.mxu0 0.0
  %2071 = vmatpush.msra.mxu0 %v252
  %2072 = vmatpush.msra.mxu0 %v251
  %2073 = vmatmul.f32.gmra.mxu0 %v1973
  %v2074 = vpop.f32.mrf.mxu0
  %v2075 = vadd.f32 %v459, %v2074
  %2076 = vdwg.mxu0
  %v2077 = vmul.f32 %v2014, %v2075
  %v2078 = vadd.f32 %v2056, %v2077
  %v2079 = vtanh.pop %v2078
  %v2080 = vsub.f32 1.0, %v2055
  %v2081 = vmul.f32 %v2080, %v2079
  %v2082 = vmul.f32 %v2055, %v1855
  %v2083 = vadd.f32 %v2081, %v2082
  %2084 = vst.msk [vmem:[#allocation4] sm:$0x3] %vm373, %v2083
  %v2085 = vld [vmem:[#allocation3] sm:$0xff]
  %v2086 = vld [vmem:[#allocation3 + $0x8] sm:$0xff]
  %v2087 = vld [vmem:[%s4] sm:$0xff]
  %v2088 = vld [vmem:[%s4 + $0x8] sm:$0xff]
  %v2089 = vld [vmem:[#allocation4] sm:$0xff]
  %v2090 = vld [vmem:[#allocation4 + $0x8] sm:$0xff]
  %v2091 = vld [vmem:[%s5] sm:$0xff]
  %v2092 = vld [vmem:[%s5 + $0x8] sm:$0xff]
  %v2094 = vsel %vm34, %v2089, 0
  %v2097 = vsel %vm34, %v2090, 0
  %2099 = vmatpush.msra.mxu0 0.0
  %2100 = vmatpush.msra.mxu0 0.0
  %2101 = vmatpush.msra.mxu0 0.0
  %2102 = vmatpush.msra.mxu0 0.0
  %2103 = vmatpush.msra.mxu0 0.0
  %2104 = vmatpush.msra.mxu0 0.0
  %2105 = vmatpush.msra.mxu0 0.0
  %2106 = vmatpush.msra.mxu0 0.0
  %2107 = vmatpush.msra.mxu0 0.0
  %2108 = vmatpush.msra.mxu0 0.0
  %2109 = vmatpush.msra.mxu0 0.0
  %2110 = vmatpush.msra.mxu0 0.0
  %2111 = vmatpush.msra.mxu0 0.0
  %2112 = vmatpush.msra.mxu0 0.0
  %2113 = vmatpush.msra.mxu0 %v2092
  %2114 = vmatpush.msra.mxu0 %v2091
  %2115 = vmatmul.f32.gmra.mxu0 %v2094
  %v2116 = vpop.f32.mrf.mxu0
  %v2117 = vadd.f32 0.0, %v2116
  %2118 = vmatmul.f32.gmra.mxu0 %v2097
  %v2119 = vpop.f32.mrf.mxu0
  %v2120 = vadd.f32 0.0, %v2119
  %2121 = vdwg.mxu0
  %v2123 = vsel %vm34, %v2085, 0
  %v2126 = vsel %vm34, %v2086, 0
  %2128 = vmatpush.msra.mxu0 0.0
  %2129 = vmatpush.msra.mxu0 0.0
  %2130 = vmatpush.msra.mxu0 0.0
  %2131 = vmatpush.msra.mxu0 0.0
  %2132 = vmatpush.msra.mxu0 0.0
  %2133 = vmatpush.msra.mxu0 0.0
  %2134 = vmatpush.msra.mxu0 0.0
  %2135 = vmatpush.msra.mxu0 0.0
  %2136 = vmatpush.msra.mxu0 0.0
  %2137 = vmatpush.msra.mxu0 0.0
  %2138 = vmatpush.msra.mxu0 0.0
  %2139 = vmatpush.msra.mxu0 0.0
  %2140 = vmatpush.msra.mxu0 0.0
  %2141 = vmatpush.msra.mxu0 0.0
  %2142 = vmatpush.msra.mxu0 %v2088
  %2143 = vmatpush.msra.mxu0 %v2087
  %2144 = vmatmul.f32.gmra.mxu0 %v2123
  %v2145 = vpop.f32.mrf.mxu0
  %v2146 = vadd.f32 %v2117, %v2145
  %2147 = vmatmul.f32.gmra.mxu0 %v2126
  %v2148 = vpop.f32.mrf.mxu0
  %v2149 = vadd.f32 %v2120, %v2148
  %2150 = vdwg.mxu0
  %v2151 = vld [vmem:[%s6] sm:$0x1]
  %v2153 = vperm.slane %v2151, 0
  %v2155 = vadd.f32 %v2146, %v2153
  %v2156 = vadd.f32 %v2149, %v2153
  %v2157 = vxor.u32 %v2155, 2147483648
  %v2158 = vxor.u32 %v2156, 2147483648
  %v2159 = vmul.f32 %v2157, 1.442695
  %v2160 = vpow.pop %v2159
  %v2161 = vmul.f32 %v2158, 1.442695
  %v2162 = vpow.pop %v2161
  %v2163 = vadd.f32 %v2160, 1.0
  %v2164 = vadd.f32 %v2162, 1.0
  %v2165 = vrcp.pop %v2163
  %v2166 = vmul.f32 %v2163, %v2165
  %v2167 = vsub.f32 1.0, %v2166
  %v2168 = vmul.f32 %v2165, %v2167
  %v2169 = vadd.f32 %v2165, %v2168
  %vm2170 = vweird.f32 %v2163
  %vm2171 = vweird.f32 %v2165
  %vm2172 = vmor %vm2170, %vm2171
  %v2173 = vsel %vm2172, %v2165, %v2169
  %v2174 = vand.u32 2147483647, %v2163
  %vm2175 = vcmp.eq.f32.partialorder %v2174, 8.507059e+37
  %v2176 = vand.u32 %v2163, 2147483648
  %v2177 = vor.u32 1.1754944e-38, %v2176
  %v2178 = vsel %vm2175, %v2177, %v2173
  %v2179 = vmul.f32 1.0, %v2178
  %v2180 = vrcp.pop %v2164
  %v2181 = vmul.f32 %v2164, %v2180
  %v2182 = vsub.f32 1.0, %v2181
  %v2183 = vmul.f32 %v2180, %v2182
  %v2184 = vadd.f32 %v2180, %v2183
  %vm2185 = vweird.f32 %v2164
  %vm2186 = vweird.f32 %v2180
  %vm2187 = vmor %vm2185, %vm2186
  %v2188 = vsel %vm2187, %v2180, %v2184
  %v2189 = vand.u32 2147483647, %v2164
  %vm2190 = vcmp.eq.f32.partialorder %v2189, 8.507059e+37
  %v2191 = vand.u32 %v2164, 2147483648
  %v2192 = vor.u32 1.1754944e-38, %v2191
  %v2193 = vsel %vm2190, %v2192, %v2188
  %v2194 = vmul.f32 1.0, %v2193
  %vm2195 = vcmask 31744
  %2196 = vst.msk [vmem:[%s7] sm:$0xff] %vm2195, %v2179
  %2197 = vst.msk [vmem:[%s7 + $0x8] sm:$0xff] %vm2195, %v2194
  // Predicated region
  $region30: #{rnn_attention_pallas.4} parent=0 // pred_check
    _
  $region31: #{rnn_attention_pallas.4} parent=0 // pred_check_branch
    %2199 = sbr.rel (0) target = $region33
  $region32: #{rnn_attention_pallas.4} parent=0 // pred_region
    _
  $region33: #{rnn_attention_pallas.4} parent=0 // pred_fallthru
    _
  // Predicated region
  $region34: #{rnn_attention_pallas.4} parent=0 // pred_check
    _
  $region35: #{rnn_attention_pallas.4} parent=0 // pred_check_branch
    %2201 = sbr.rel (0) target = $region37
  $region36: #{rnn_attention_pallas.4} parent=0 // pred_region
    _
  $region37: #{rnn_attention_pallas.4} parent=0 // pred_fallthru
    _

</llo_original>
